<compile_context>
chip_gen: v7x
topology: tpu7x:2x2x1
jax: 0.10.0
libtpu: 0.0.40
codegen_flags: <defaults>
</compile_context>

<pallas_src>
import functools

import jax
import jax.numpy as jnp
from jax.experimental import pallas as pl
from jax.experimental.pallas import tpu as pltpu

LANE = 128  # lane width: pad feature axes to multiples of this


def _round_up(x, m):
    return (x + m - 1) // m * m


# ----------------------------------------------------------------------------
# Kernel 1: fused conv3x3(stride1, pad1) + bias + ReLU + GeM pooling
#   per grid step (one batch element):
#     x_ref      : [1, H+2, W+2, Cin_p]  bf16  (halo-padded NHWC)
#     w_ref      : [9, Cin_p, Cout_p]    bf16  (tap-major conv weights)
#     b_ref      : [1, Cout_p]           f32
#     pooled_ref : [1, 1, Cout_p]        f32   (GeM-pooled channels)
# ----------------------------------------------------------------------------
def _conv_gem_kernel(x_ref, w_ref, b_ref, pooled_ref, *, H, W, p, eps):
    cout = w_ref.shape[-1]
    xslab = x_ref[...]                                  # [1, H+2, W+2, Cin_p]
    acc = jnp.zeros((H * W, cout), jnp.float32)
    # 9 shifted-window MXU matmuls (fused im2col), f32 accumulation.
    for idx in range(9):
        di, dj = idx // 3, idx % 3
        patch = xslab[0, di:di + H, dj:dj + W, :].reshape(H * W, -1)
        acc = acc + jnp.dot(patch, w_ref[idx],
                            preferred_element_type=jnp.float32)
    feat = jnp.maximum(acc + b_ref[...], 0.0)           # bias + ReLU

    # GeM: clamp(min=eps)**p -> spatial mean -> **(1/p)
    c = jnp.maximum(feat, eps)
    if float(p) == 3.0:
        cp = c * c * c                                  # VALU mul chain, not EUP pow
    else:
        cp = c ** p
    m = jnp.mean(cp, axis=0, keepdims=True)             # [1, Cout_p] cross-sublane reduce
    root = m ** (1.0 / p)                               # only Cout_p transcendentals
    pooled_ref[...] = jnp.reshape(root, (1, 1, cout)).astype(pooled_ref.dtype)


def conv3x3_relu_gem(x_p, w9, b, *, H, W, p=3.0, eps=1e-6):
    B = x_p.shape[0]
    Cin_p = x_p.shape[-1]
    Cout_p = w9.shape[-1]
    ce = pl.CostEstimate(
        flops=2 * B * H * W * 9 * Cin_p * Cout_p,
        transcendentals=B * Cout_p,
        bytes_accessed=(x_p.size * 2 + w9.size * 2 + b.size * 4
                        + B * Cout_p * 4),
    )
    pooled3 = pl.pallas_call(
        functools.partial(_conv_gem_kernel, H=H, W=W, p=p, eps=eps),
        out_shape=jax.ShapeDtypeStruct((B, 1, Cout_p), jnp.float32),
        grid=(B,),
        in_specs=[
            pl.BlockSpec((1, H + 2, W + 2, Cin_p), lambda i: (i, 0, 0, 0)),
            pl.BlockSpec((9, Cin_p, Cout_p), lambda i: (0, 0, 0)),
            pl.BlockSpec((1, Cout_p), lambda i: (0, 0)),
        ],
        out_specs=pl.BlockSpec((1, 1, Cout_p), lambda i: (i, 0, 0)),
        compiler_params=pltpu.CompilerParams(
            dimension_semantics=("parallel",),
        ),
        cost_estimate=ce,
    )(x_p, w9, b)
    return pooled3[:, 0, :]                              # [B, Cout_p]


# ----------------------------------------------------------------------------
# Kernel 2: fused tail — fc_emb (Linear) + classifier (plain or cosine)
#   pooled_ref : [B, Cp]    f32
#   wemb_ref   : [Cp, Ep]   f32  (pre-transposed, zero-padded)
#   bemb_ref   : [1, Ep]    f32
#   wcls_ref   : [Ep, Np]   f32  (pre-transposed, zero-padded)
#   emb_ref    : [B, Ep]    f32
#   cla_ref    : [B, Np]    f32
# ----------------------------------------------------------------------------
def _tail_kernel(pooled_ref, wemb_ref, bemb_ref, wcls_ref, emb_ref, cla_ref,
                 *, use_cosine):
    pooled = pooled_ref[...]
    emb = jnp.dot(pooled, wemb_ref[...],
                  preferred_element_type=jnp.float32) + bemb_ref[...]
    emb_ref[...] = emb.astype(emb_ref.dtype)

    w = wcls_ref[...]
    if use_cosine:
        # F.linear(F.normalize(x), F.normalize(W)):  1/max(||.||, 1e-12) via rsqrt
        xn = emb * jax.lax.rsqrt(
            jnp.maximum(jnp.sum(emb * emb, axis=-1, keepdims=True), 1e-24))
        wn = w * jax.lax.rsqrt(
            jnp.maximum(jnp.sum(w * w, axis=0, keepdims=True), 1e-24))
        cla = jnp.dot(xn, wn, preferred_element_type=jnp.float32)
    else:
        cla = jnp.dot(emb, w, preferred_element_type=jnp.float32)
    cla_ref[...] = cla.astype(cla_ref.dtype)


def fused_tail(pooled, wemb, bemb, wcls, *, use_cosine):
    B, Cp = pooled.shape
    Ep = wemb.shape[1]
    Np = wcls.shape[1]
    return pl.pallas_call(
        functools.partial(_tail_kernel, use_cosine=use_cosine),
        out_shape=(
            jax.ShapeDtypeStruct((B, Ep), jnp.float32),
            jax.ShapeDtypeStruct((B, Np), jnp.float32),
        ),
        in_specs=[
            pl.BlockSpec((B, Cp), lambda: (0, 0)),
            pl.BlockSpec((Cp, Ep), lambda: (0, 0)),
            pl.BlockSpec((1, Ep), lambda: (0, 0)),
            pl.BlockSpec((Ep, Np), lambda: (0, 0)),
        ],
        out_specs=(
            pl.BlockSpec((B, Ep), lambda: (0, 0)),
            pl.BlockSpec((B, Np), lambda: (0, 0)),
        ),
    )(pooled, wemb, bemb, wcls)


# ----------------------------------------------------------------------------
# One-time parameter packing (transpose / pad / cast happens once, not per call)
# ----------------------------------------------------------------------------
def pack_params(params):
    conv_w, conv_b = params["conv_w"], params["conv_b"]
    fc_emb_w, fc_emb_b = params["fc_emb_w"], params["fc_emb_b"]
    fc_cls_w = params["fc_cls_w"]

    Cout, Cin, kh, kw = conv_w.shape
    emb_dim = fc_emb_w.shape[0]
    num_classes = fc_cls_w.shape[0]

    Cin_p = _round_up(Cin, LANE)
    Cout_p = _round_up(Cout, LANE)
    Ep = _round_up(emb_dim, LANE)
    Np = _round_up(num_classes, LANE)

    # conv taps: [Cout, Cin, 3, 3] -> [9, Cin_p, Cout_p], bf16, zero padded.
    w9 = jnp.transpose(conv_w, (2, 3, 1, 0)).reshape(kh * kw, Cin, Cout)
    w9 = jnp.pad(w9, ((0, 0), (0, Cin_p - Cin),
                      (0, Cout_p - Cout))).astype(jnp.bfloat16)
    b = jnp.pad(conv_b, (0, Cout_p - Cout)).reshape(1, Cout_p).astype(jnp.float32)

    # fc_emb weight [emb, C] -> [Cout_p, Ep]; zero pad keeps padded lanes exact 0.
    wemb = jnp.pad(fc_emb_w.T, ((0, Cout_p - Cout),
                                (0, Ep - emb_dim))).astype(jnp.float32)
    bemb = jnp.pad(fc_emb_b, (0, Ep - emb_dim)).reshape(1, Ep).astype(jnp.float32)

    # classifier weight [N, E] -> pre-transposed [Ep, Np] (no in-kernel .T).
    wcls = jnp.pad(fc_cls_w.T, ((0, Ep - emb_dim),
                                (0, Np - num_classes))).astype(jnp.float32)

    return {
        "w9": w9, "b": b, "wemb": wemb, "bemb": bemb, "wcls": wcls,
        "Cin": Cin, "Cin_p": Cin_p,
        "emb_dim": emb_dim, "num_classes": num_classes,
    }


# ----------------------------------------------------------------------------
# Resnet_GeM forward
# ----------------------------------------------------------------------------
def resnet_gem_forward(x, packed, use_cosine_cla_score=False):
    # TODO(synk): full ResNet backbone (injected external module) not
    # reproduced; a single conv3x3+ReLU stage stands in for `self.backbone`
    # up to its avgpool (which the module replaces with GeM).
    B, Cin, H, W = x.shape
    Cin_p = packed["Cin_p"]

    # NCHW -> NHWC (channels lane-dense), halo pad for 3x3/pad=1, channel pad,
    # bf16 operands for the MXU.
    x_nhwc = jnp.transpose(x, (0, 2, 3, 1))
    x_p = jnp.pad(x_nhwc, ((0, 0), (1, 1), (1, 1),
                           (0, Cin_p - Cin))).astype(jnp.bfloat16)

    # conv3x3 + bias + ReLU + GeM pooling, fused (no feature-map HBM round trip).
    pooled = conv3x3_relu_gem(x_p, packed["w9"], packed["b"],
                              H=H, W=W, p=3.0, eps=1e-6)      # [B, Cout_p] f32

    # fc_emb + classifier (plain / cosine) fused into one call.
    emb_p, cla_p = fused_tail(pooled, packed["wemb"], packed["bemb"],
                              packed["wcls"], use_cosine=use_cosine_cla_score)

    emb = emb_p[:, :packed["emb_dim"]]
    cla = cla_p[:, :packed["num_classes"]]
    return emb, cla


# ----------------------------------------------------------------------------
# Deterministic parameter init + demo
# ----------------------------------------------------------------------------
def init_params(key, in_ch=4, feat_ch=8, emb_dim=16, num_classes=10):
    k = jax.random.split(key, 5)
    return {
        "conv_w": 0.1 * jax.random.normal(k[0], (feat_ch, in_ch, 3, 3), jnp.float32),
        "conv_b": 0.1 * jax.random.normal(k[1], (feat_ch,), jnp.float32),
        "fc_emb_w": 0.1 * jax.random.normal(k[2], (emb_dim, feat_ch), jnp.float32),
        "fc_emb_b": 0.1 * jax.random.normal(k[3], (emb_dim,), jnp.float32),
        "fc_cls_w": 0.1 * jax.random.normal(k[4], (num_classes, emb_dim), jnp.float32),
    }


if __name__ == "__main__":
    key = jax.random.PRNGKey(0)
    kx, kp = jax.random.split(key)

    # Small NCHW input consistent with an image backbone.
    x = jax.random.normal(kx, (2, 4, 16, 16), jnp.float32)
    params = init_params(kp)
    packed = pack_params(params)   # one-time weight transpose / pad / cast

    emb, cla = resnet_gem_forward(x, packed, use_cosine_cla_score=False)
    emb_c, cla_c = resnet_gem_forward(x, packed, use_cosine_cla_score=True)

    jax.block_until_ready((emb, cla, emb_c, cla_c))

    assert emb.shape == (2, 16) and cla.shape == (2, 10)
    assert emb_c.shape == (2, 16) and cla_c.shape == (2, 10)
    print("KERNEL_OK")
</pallas_src>

<mosaic_0001>
module attributes {stable_mosaic.version = 11 : i64} {
  func.func @_conv_gem_kernel(%arg0: i32, %arg1: memref<1x18x18x128xbf16, #tpu.memory_space<vmem>>, %arg2: memref<9x128x128xbf16, #tpu.memory_space<vmem>>, %arg3: memref<1x128xf32, #tpu.memory_space<vmem>>, %arg4: memref<1x1x128xf32, #tpu.memory_space<vmem>>) attributes {dimension_semantics = [#tpu.dimension_semantics<parallel>], iteration_bounds = array<i64: 2>, scalar_prefetch = 0 : i64, scratch_operands = 0 : i64, tpu.core_type = #tpu.core_type<tc>, window_params = [{transform_indices = @transform_0, window_bounds = array<i64: 1, 18, 18, 128>}, {pipeline_mode = #tpu.pipeline_mode<synchronous>, transform_indices = @transform_1, window_bounds = array<i64: 9, 128, 128>}, {pipeline_mode = #tpu.pipeline_mode<synchronous>, transform_indices = @transform_2, window_bounds = array<i64: 1, 128>}, {transform_indices = @transform_3, window_bounds = array<i64: 1, 1, 128>}]} {
    %c0 = arith.constant 0 : index
    %c0_0 = arith.constant 0 : index
    %c0_1 = arith.constant 0 : index
    %c0_2 = arith.constant 0 : index
    %0 = vector.load %arg1[%c0, %c0_0, %c0_1, %c0_2] : memref<1x18x18x128xbf16, #tpu.memory_space<vmem>>, vector<1x18x18x128xbf16>
    %cst = arith.constant 0.000000e+00 : f32
    %1 = vector.broadcast %cst : f32 to vector<256x128xf32>
    %2 = vector.extract_strided_slice %0 {offsets = [0, 0, 0, 0], sizes = [1, 16, 16, 128], strides = [1, 1, 1, 1]} : vector<1x18x18x128xbf16> to vector<1x16x16x128xbf16>
    %3 = vector.shape_cast %2 : vector<1x16x16x128xbf16> to vector<16x16x128xbf16>
    %4 = vector.shape_cast %3 : vector<16x16x128xbf16> to vector<256x128xbf16>
    %c0_3 = arith.constant 0 : index
    %c0_4 = arith.constant 0 : index
    %c0_5 = arith.constant 0 : index
    %5 = vector.load %arg2[%c0_3, %c0_4, %c0_5] : memref<9x128x128xbf16, #tpu.memory_space<vmem>>, vector<1x128x128xbf16>
    %6 = vector.shape_cast %5 : vector<1x128x128xbf16> to vector<128x128xbf16>
    %cst_6 = arith.constant dense<0.000000e+00> : vector<256x128xf32>
    %7 = tpu.matmul %4, %6, %cst_6 {dimension_numbers = #tpu.dot_dimension_numbers<[1], [0], [0], [1], [0, 0, 1, 1], [], []>} : vector<256x128xbf16>, vector<128x128xbf16>, vector<256x128xf32> -> vector<256x128xf32>
    %8 = arith.addf %1, %7 : vector<256x128xf32>
    %9 = vector.extract_strided_slice %0 {offsets = [0, 0, 1, 0], sizes = [1, 16, 16, 128], strides = [1, 1, 1, 1]} : vector<1x18x18x128xbf16> to vector<1x16x16x128xbf16>
    %10 = vector.shape_cast %9 : vector<1x16x16x128xbf16> to vector<16x16x128xbf16>
    %11 = vector.shape_cast %10 : vector<16x16x128xbf16> to vector<256x128xbf16>
    %c1 = arith.constant 1 : index
    %c0_7 = arith.constant 0 : index
    %c0_8 = arith.constant 0 : index
    %12 = vector.load %arg2[%c1, %c0_7, %c0_8] : memref<9x128x128xbf16, #tpu.memory_space<vmem>>, vector<1x128x128xbf16>
    %13 = vector.shape_cast %12 : vector<1x128x128xbf16> to vector<128x128xbf16>
    %cst_9 = arith.constant dense<0.000000e+00> : vector<256x128xf32>
    %14 = tpu.matmul %11, %13, %cst_9 {dimension_numbers = #tpu.dot_dimension_numbers<[1], [0], [0], [1], [0, 0, 1, 1], [], []>} : vector<256x128xbf16>, vector<128x128xbf16>, vector<256x128xf32> -> vector<256x128xf32>
    %15 = arith.addf %8, %14 : vector<256x128xf32>
    %16 = vector.extract_strided_slice %0 {offsets = [0, 0, 2, 0], sizes = [1, 16, 16, 128], strides = [1, 1, 1, 1]} : vector<1x18x18x128xbf16> to vector<1x16x16x128xbf16>
    %17 = vector.shape_cast %16 : vector<1x16x16x128xbf16> to vector<16x16x128xbf16>
    %18 = vector.shape_cast %17 : vector<16x16x128xbf16> to vector<256x128xbf16>
    %c2 = arith.constant 2 : index
    %c0_10 = arith.constant 0 : index
    %c0_11 = arith.constant 0 : index
    %19 = vector.load %arg2[%c2, %c0_10, %c0_11] : memref<9x128x128xbf16, #tpu.memory_space<vmem>>, vector<1x128x128xbf16>
    %20 = vector.shape_cast %19 : vector<1x128x128xbf16> to vector<128x128xbf16>
    %cst_12 = arith.constant dense<0.000000e+00> : vector<256x128xf32>
    %21 = tpu.matmul %18, %20, %cst_12 {dimension_numbers = #tpu.dot_dimension_numbers<[1], [0], [0], [1], [0, 0, 1, 1], [], []>} : vector<256x128xbf16>, vector<128x128xbf16>, vector<256x128xf32> -> vector<256x128xf32>
    %22 = arith.addf %15, %21 : vector<256x128xf32>
    %23 = vector.extract_strided_slice %0 {offsets = [0, 1, 0, 0], sizes = [1, 16, 16, 128], strides = [1, 1, 1, 1]} : vector<1x18x18x128xbf16> to vector<1x16x16x128xbf16>
    %24 = vector.shape_cast %23 : vector<1x16x16x128xbf16> to vector<16x16x128xbf16>
    %25 = vector.shape_cast %24 : vector<16x16x128xbf16> to vector<256x128xbf16>
    %c3 = arith.constant 3 : index
    %c0_13 = arith.constant 0 : index
    %c0_14 = arith.constant 0 : index
    %26 = vector.load %arg2[%c3, %c0_13, %c0_14] : memref<9x128x128xbf16, #tpu.memory_space<vmem>>, vector<1x128x128xbf16>
    %27 = vector.shape_cast %26 : vector<1x128x128xbf16> to vector<128x128xbf16>
    %cst_15 = arith.constant dense<0.000000e+00> : vector<256x128xf32>
    %28 = tpu.matmul %25, %27, %cst_15 {dimension_numbers = #tpu.dot_dimension_numbers<[1], [0], [0], [1], [0, 0, 1, 1], [], []>} : vector<256x128xbf16>, vector<128x128xbf16>, vector<256x128xf32> -> vector<256x128xf32>
    %29 = arith.addf %22, %28 : vector<256x128xf32>
    %30 = vector.extract_strided_slice %0 {offsets = [0, 1, 1, 0], sizes = [1, 16, 16, 128], strides = [1, 1, 1, 1]} : vector<1x18x18x128xbf16> to vector<1x16x16x128xbf16>
    %31 = vector.shape_cast %30 : vector<1x16x16x128xbf16> to vector<16x16x128xbf16>
    %32 = vector.shape_cast %31 : vector<16x16x128xbf16> to vector<256x128xbf16>
    %c4 = arith.constant 4 : index
    %c0_16 = arith.constant 0 : index
    %c0_17 = arith.constant 0 : index
    %33 = vector.load %arg2[%c4, %c0_16, %c0_17] : memref<9x128x128xbf16, #tpu.memory_space<vmem>>, vector<1x128x128xbf16>
    %34 = vector.shape_cast %33 : vector<1x128x128xbf16> to vector<128x128xbf16>
    %cst_18 = arith.constant dense<0.000000e+00> : vector<256x128xf32>
    %35 = tpu.matmul %32, %34, %cst_18 {dimension_numbers = #tpu.dot_dimension_numbers<[1], [0], [0], [1], [0, 0, 1, 1], [], []>} : vector<256x128xbf16>, vector<128x128xbf16>, vector<256x128xf32> -> vector<256x128xf32>
    %36 = arith.addf %29, %35 : vector<256x128xf32>
    %37 = vector.extract_strided_slice %0 {offsets = [0, 1, 2, 0], sizes = [1, 16, 16, 128], strides = [1, 1, 1, 1]} : vector<1x18x18x128xbf16> to vector<1x16x16x128xbf16>
    %38 = vector.shape_cast %37 : vector<1x16x16x128xbf16> to vector<16x16x128xbf16>
    %39 = vector.shape_cast %38 : vector<16x16x128xbf16> to vector<256x128xbf16>
    %c5 = arith.constant 5 : index
    %c0_19 = arith.constant 0 : index
    %c0_20 = arith.constant 0 : index
    %40 = vector.load %arg2[%c5, %c0_19, %c0_20] : memref<9x128x128xbf16, #tpu.memory_space<vmem>>, vector<1x128x128xbf16>
    %41 = vector.shape_cast %40 : vector<1x128x128xbf16> to vector<128x128xbf16>
    %cst_21 = arith.constant dense<0.000000e+00> : vector<256x128xf32>
    %42 = tpu.matmul %39, %41, %cst_21 {dimension_numbers = #tpu.dot_dimension_numbers<[1], [0], [0], [1], [0, 0, 1, 1], [], []>} : vector<256x128xbf16>, vector<128x128xbf16>, vector<256x128xf32> -> vector<256x128xf32>
    %43 = arith.addf %36, %42 : vector<256x128xf32>
    %44 = vector.extract_strided_slice %0 {offsets = [0, 2, 0, 0], sizes = [1, 16, 16, 128], strides = [1, 1, 1, 1]} : vector<1x18x18x128xbf16> to vector<1x16x16x128xbf16>
    %45 = vector.shape_cast %44 : vector<1x16x16x128xbf16> to vector<16x16x128xbf16>
    %46 = vector.shape_cast %45 : vector<16x16x128xbf16> to vector<256x128xbf16>
    %c6 = arith.constant 6 : index
    %c0_22 = arith.constant 0 : index
    %c0_23 = arith.constant 0 : index
    %47 = vector.load %arg2[%c6, %c0_22, %c0_23] : memref<9x128x128xbf16, #tpu.memory_space<vmem>>, vector<1x128x128xbf16>
    %48 = vector.shape_cast %47 : vector<1x128x128xbf16> to vector<128x128xbf16>
    %cst_24 = arith.constant dense<0.000000e+00> : vector<256x128xf32>
    %49 = tpu.matmul %46, %48, %cst_24 {dimension_numbers = #tpu.dot_dimension_numbers<[1], [0], [0], [1], [0, 0, 1, 1], [], []>} : vector<256x128xbf16>, vector<128x128xbf16>, vector<256x128xf32> -> vector<256x128xf32>
    %50 = arith.addf %43, %49 : vector<256x128xf32>
    %51 = vector.extract_strided_slice %0 {offsets = [0, 2, 1, 0], sizes = [1, 16, 16, 128], strides = [1, 1, 1, 1]} : vector<1x18x18x128xbf16> to vector<1x16x16x128xbf16>
    %52 = vector.shape_cast %51 : vector<1x16x16x128xbf16> to vector<16x16x128xbf16>
    %53 = vector.shape_cast %52 : vector<16x16x128xbf16> to vector<256x128xbf16>
    %c7 = arith.constant 7 : index
    %c0_25 = arith.constant 0 : index
    %c0_26 = arith.constant 0 : index
    %54 = vector.load %arg2[%c7, %c0_25, %c0_26] : memref<9x128x128xbf16, #tpu.memory_space<vmem>>, vector<1x128x128xbf16>
    %55 = vector.shape_cast %54 : vector<1x128x128xbf16> to vector<128x128xbf16>
    %cst_27 = arith.constant dense<0.000000e+00> : vector<256x128xf32>
    %56 = tpu.matmul %53, %55, %cst_27 {dimension_numbers = #tpu.dot_dimension_numbers<[1], [0], [0], [1], [0, 0, 1, 1], [], []>} : vector<256x128xbf16>, vector<128x128xbf16>, vector<256x128xf32> -> vector<256x128xf32>
    %57 = arith.addf %50, %56 : vector<256x128xf32>
    %58 = vector.extract_strided_slice %0 {offsets = [0, 2, 2, 0], sizes = [1, 16, 16, 128], strides = [1, 1, 1, 1]} : vector<1x18x18x128xbf16> to vector<1x16x16x128xbf16>
    %59 = vector.shape_cast %58 : vector<1x16x16x128xbf16> to vector<16x16x128xbf16>
    %60 = vector.shape_cast %59 : vector<16x16x128xbf16> to vector<256x128xbf16>
    %c8 = arith.constant 8 : index
    %c0_28 = arith.constant 0 : index
    %c0_29 = arith.constant 0 : index
    %61 = vector.load %arg2[%c8, %c0_28, %c0_29] : memref<9x128x128xbf16, #tpu.memory_space<vmem>>, vector<1x128x128xbf16>
    %62 = vector.shape_cast %61 : vector<1x128x128xbf16> to vector<128x128xbf16>
    %cst_30 = arith.constant dense<0.000000e+00> : vector<256x128xf32>
    %63 = tpu.matmul %60, %62, %cst_30 {dimension_numbers = #tpu.dot_dimension_numbers<[1], [0], [0], [1], [0, 0, 1, 1], [], []>} : vector<256x128xbf16>, vector<128x128xbf16>, vector<256x128xf32> -> vector<256x128xf32>
    %64 = arith.addf %57, %63 : vector<256x128xf32>
    %c0_31 = arith.constant 0 : index
    %c0_32 = arith.constant 0 : index
    %65 = vector.load %arg3[%c0_31, %c0_32] : memref<1x128xf32, #tpu.memory_space<vmem>>, vector<1x128xf32>
    %66 = vector.broadcast %65 : vector<1x128xf32> to vector<256x128xf32>
    %67 = arith.addf %64, %66 : vector<256x128xf32>
    %cst_33 = arith.constant 0.000000e+00 : f32
    %68 = vector.broadcast %cst_33 : f32 to vector<256x128xf32>
    %69 = arith.maximumf %67, %68 : vector<256x128xf32>
    %cst_34 = arith.constant 9.99999997E-7 : f32
    %70 = vector.broadcast %cst_34 : f32 to vector<256x128xf32>
    %71 = arith.maximumf %69, %70 : vector<256x128xf32>
    %72 = arith.mulf %71, %71 : vector<256x128xf32>
    %73 = arith.mulf %72, %71 : vector<256x128xf32>
    %cst_35 = arith.constant dense<0.000000e+00> : vector<128xf32>
    %74 = vector.multi_reduction <add>, %73, %cst_35 [0] : vector<256x128xf32> to vector<128xf32>
    %75 = vector.shape_cast %74 : vector<128xf32> to vector<1x128xf32>
    %cst_36 = arith.constant 2.560000e+02 : f32
    %76 = vector.broadcast %cst_36 : f32 to vector<1x128xf32>
    %77 = arith.divf %75, %76 : vector<1x128xf32>
    %cst_37 = arith.constant 0.333333343 : f32
    %78 = vector.broadcast %cst_37 : f32 to vector<1x128xf32>
    %79 = math.powf %77, %78 : vector<1x128xf32>
    %80 = vector.shape_cast %79 : vector<1x128xf32> to vector<1x1x128xf32>
    %c0_38 = arith.constant 0 : index
    %c0_39 = arith.constant 0 : index
    %c0_40 = arith.constant 0 : index
    %81 = vector.load %arg4[%c0_38, %c0_39, %c0_40] : memref<1x1x128xf32, #tpu.memory_space<vmem>>, vector<1x1x128xf32>
    tpu.vector_store %arg4[%c0_38, %c0_39, %c0_40], %80 {strides = array<i32>} : memref<1x1x128xf32, #tpu.memory_space<vmem>>, vector<1x1x128xf32>,
    return
  }
  func.func @transform_0(%arg0: i32) -> (i32, i32, i32, i32) {
    %c0_i32 = arith.constant 0 : i32
    %c0_i32_0 = arith.constant 0 : i32
    %c0_i32_1 = arith.constant 0 : i32
    %c0_i32_2 = arith.constant 0 : i32
    return %arg0, %c0_i32, %c0_i32_0, %c0_i32_1 : i32, i32, i32, i32
  }
  func.func @transform_1(%arg0: i32) -> (i32, i32, i32) {
    %c0_i32 = arith.constant 0 : i32
    %c0_i32_0 = arith.constant 0 : i32
    %c0_i32_1 = arith.constant 0 : i32
    %c0_i32_2 = arith.constant 0 : i32
    return %c0_i32, %c0_i32_0, %c0_i32_1 : i32, i32, i32
  }
  func.func @transform_2(%arg0: i32) -> (i32, i32) {
    %c0_i32 = arith.constant 0 : i32
    %c0_i32_0 = arith.constant 0 : i32
    %c0_i32_1 = arith.constant 0 : i32
    return %c0_i32, %c0_i32_0 : i32, i32
  }
  func.func @transform_3(%arg0: i32) -> (i32, i32, i32) {
    %c0_i32 = arith.constant 0 : i32
    %c0_i32_0 = arith.constant 0 : i32
    %c0_i32_1 = arith.constant 0 : i32
    return %arg0, %c0_i32, %c0_i32_0 : i32, i32, i32
  }
}

</mosaic_0001>

<llo_original>
// kernel: tpu_custom_call.1
$region0: #{tpu_custom_call.1}
  #allocation0 [shape = 'u32[]', space=smem, size = 0x4, offset = 0x4, fixed_abs, tag = 'smem constant byte address 0x4 - core index']
  #allocation1 [shape = 'u32[144,128]{1,0:T(1,128)}', space=vmem, size = 0x12000, scoped, tag = 'internal scratch']
  %s0 = inlined_call_operand.vmem [shape: bf16[2,18,18,128], index: 0, kind: input, shape index: {}]
  %s1 = inlined_call_operand.vmem [shape: bf16[9,128,128], index: 1, kind: input, shape index: {}]
  %s2 = inlined_call_operand.vmem [shape: f32[1,128], index: 2, kind: input, shape index: {}]
  %s3 = inlined_call_operand.hbm [shape: f32[2,1,128], index: 3, kind: output, shape index: {}]
  %s4 = sld [smem:[#allocation0]]
  $region45: #{tpu_custom_call.1} parent=0
    _
  %s6 = ssub.s32 1, %s4
  %s7 = scalar_select 0, %s6, %s4
  $region1: #{tpu_custom_call.1} parent=0
    #allocation2 [shape = 'u8[1024]{0}', space=vmem, size = 0x400, scoped, tag = 'output window, operand 0']
    #allocation3 [shape = 's32[2]{0}', space=sflag, size = 0x8, scoped, tag = 'scoped memory for tpu_custom_call.1']
    %8 = vsyncpa [#allocation3], 0
    %s9 = scalar_lea.sflag [#allocation3], 1
    %10 = vsyncpa %s9, 0
    loop: start=0, step=1, limit=4
    $region2: #{tpu_custom_call.1} parent=1 // loop_pre_header
      _
    $region3: #{tpu_custom_call.1} parent=1 // loop_header
      %s12 = sphi 0, %s16
      %p13 = scmp.ge.s32.totalorder %s12, 4
      %s22 = sphi 0, %s24
      %s25 = sphi 0, %s22
      %s26 = sphi 0, %s25
      %s42 = sphi 0, %s26
      %s46 = sphi 0, %s46
      %s48 = sphi 0, %s46
      %s49 = sphi 0, %s48
      %s63 = sphi 0, %s49
      %s67 = sphi 0, %s67
      %s69 = sphi 0, %s67
      %s70 = sphi 0, %s69
      %s84 = sphi 0, %s70
      %s90 = sphi 0, %s92
      %s93 = sphi 0, %s90
      %s94 = sphi 0, %s93
      %s110 = sphi 0, %s94
    $region4: #{tpu_custom_call.1} parent=1 // loop_header_branch
      %15 = sbr.rel (%p13) target = $region8
    $region5: #{tpu_custom_call.1} parent=1 // loop_body
      %s17 = ssub.s32 %s12, 1
      %s18 = ssub.s32 %s12, 2
      %s19 = sadd.s32 %s12, 1
      %s20 = ssub.s32 %s12, %s19
      %p21 = scmp.eq.s32.totalorder %s20, 0
      %s23 = sadd.s32 %s22, 1
      %s24 = scalar_select %p21, %s22, %s23
      %p27 = pneg %p21
      %p28 = scmp.eq.s32.totalorder %s12, 1
      %p29 = por %p27, %p28
      %p30 = scmp.ne.s32.totalorder %s22, %s25
      %p31 = scmp.eq.s32.totalorder %s12, 0
      %p32 = por %p30, %p31
      %p33 = scmp.ne.s32.totalorder %s22, %s25
      %p34 = scmp.eq.s32.totalorder %s17, 1
      %p35 = por %p33, %p34
      %p36 = scmp.ne.s32.totalorder %s25, %s26
      %p37 = scmp.eq.s32.totalorder %s17, 0
      %p38 = por %p36, %p37
      %p39 = scmp.ne.s32.totalorder %s25, %s26
      %p40 = scmp.eq.s32.totalorder %s18, 1
      %p41 = por %p39, %p40
      %p43 = scmp.ne.s32.totalorder %s26, %s42
      %p44 = scmp.eq.s32.totalorder %s18, 0
      %p45 = por %p43, %p44
      %s47 = sadd.s32 %s46, 1
      %p50 = scmp.eq.s32.totalorder %s12, 1
      %p51 = scmp.ne.s32.totalorder %s46, %s48
      %p52 = scmp.eq.s32.totalorder %s12, 0
      %p53 = por %p51, %p52
      %p54 = scmp.ne.s32.totalorder %s46, %s48
      %p55 = scmp.eq.s32.totalorder %s17, 1
      %p56 = por %p54, %p55
      %p57 = scmp.ne.s32.totalorder %s48, %s49
      %p58 = scmp.eq.s32.totalorder %s17, 0
      %p59 = por %p57, %p58
      %p60 = scmp.ne.s32.totalorder %s48, %s49
      %p61 = scmp.eq.s32.totalorder %s18, 1
      %p62 = por %p60, %p61
      %p64 = scmp.ne.s32.totalorder %s49, %s63
      %p65 = scmp.eq.s32.totalorder %s18, 0
      %p66 = por %p64, %p65
      %s68 = sadd.s32 %s67, 1
      %p71 = scmp.eq.s32.totalorder %s12, 1
      %p72 = scmp.ne.s32.totalorder %s67, %s69
      %p73 = scmp.eq.s32.totalorder %s12, 0
      %p74 = por %p72, %p73
      %p75 = scmp.ne.s32.totalorder %s67, %s69
      %p76 = scmp.eq.s32.totalorder %s17, 1
      %p77 = por %p75, %p76
      %p78 = scmp.ne.s32.totalorder %s69, %s70
      %p79 = scmp.eq.s32.totalorder %s17, 0
      %p80 = por %p78, %p79
      %p81 = scmp.ne.s32.totalorder %s69, %s70
      %p82 = scmp.eq.s32.totalorder %s18, 1
      %p83 = por %p81, %p82
      %p85 = scmp.ne.s32.totalorder %s70, %s84
      %p86 = scmp.eq.s32.totalorder %s18, 0
      %p87 = por %p85, %p86
      %s88 = ssub.s32 %s12, %s19
      %p89 = scmp.eq.s32.totalorder %s88, 0
      %s91 = sadd.s32 %s90, 1
      %s92 = scalar_select %p89, %s90, %s91
      %p95 = pneg %p89
      %p96 = scmp.eq.s32.totalorder %s12, 1
      %p97 = por %p95, %p96
      %p98 = scmp.ne.s32.totalorder %s90, %s93
      %p99 = scmp.eq.s32.totalorder %s12, 0
      %p100 = por %p98, %p99
      %p101 = scmp.ne.s32.totalorder %s90, %s93
      %p102 = scmp.eq.s32.totalorder %s17, 1
      %p103 = por %p101, %p102
      %p104 = scmp.ne.s32.totalorder %s93, %s94
      %p105 = scmp.eq.s32.totalorder %s17, 0
      %p106 = por %p104, %p105
      %p107 = scmp.ne.s32.totalorder %s93, %s94
      %p108 = scmp.eq.s32.totalorder %s18, 1
      %p109 = por %p107, %p108
      %p111 = scmp.ne.s32.totalorder %s94, %s110
      %p112 = scmp.eq.s32.totalorder %s18, 0
      %p113 = por %p111, %p112
      %p114 = scmp.le.s32.totalorder 1, %s12
      %p115 = scmp.lt.s32.totalorder %s12, 3
      %p116 = pnand %p114, %p115
      %p117 = pneg %p116
      // Predicated region
      $region9: #{tpu_custom_call.1} parent=5 // pred_check
        _
      $region10: #{tpu_custom_call.1} parent=5 // pred_check_branch
        %119 = sbr.rel (%p116) target = $region12
      $region11: #{tpu_custom_call.1} parent=5 // pred_region
        %s120 = ssub.s32 %s12, 1
        // Predicated region
        $region13: #{tpu_custom_call.1} parent=11 // pred_check
          %p121 = pneg %p59
        $region14: #{tpu_custom_call.1} parent=11 // pred_check_branch
          %123 = sbr.rel (%p121) target = $region16
        $region15: #{tpu_custom_call.1} parent=11 // pred_region
          _
        $region16: #{tpu_custom_call.1} parent=11 // pred_fallthru
          _
        // Predicated region
        $region17: #{tpu_custom_call.1} parent=11 // pred_check
          %p124 = pneg %p80
        $region18: #{tpu_custom_call.1} parent=11 // pred_check_branch
          %126 = sbr.rel (%p124) target = $region20
        $region19: #{tpu_custom_call.1} parent=11 // pred_region
          _
        $region20: #{tpu_custom_call.1} parent=11 // pred_fallthru
          _
      $region12: #{tpu_custom_call.1} parent=5 // pred_fallthru
        _
      %p127 = scmp.lt.s32.totalorder %s12, 2
      // Predicated region
      $region21: #{tpu_custom_call.1} parent=5 // pred_check
        %p128 = pneg %p127
      $region22: #{tpu_custom_call.1} parent=5 // pred_check_branch
        %130 = sbr.rel (%p128) target = $region24
      $region23: #{tpu_custom_call.1} parent=5 // pred_region
        // Predicated region
        $region25: #{tpu_custom_call.1} parent=23 // pred_check
          %p131 = pneg %p32
        $region26: #{tpu_custom_call.1} parent=23 // pred_check_branch
          %133 = sbr.rel (%p131) target = $region28
        $region27: #{tpu_custom_call.1} parent=23 // pred_region
          %p134 = scmp.lt.s32.totalorder %s12, 1
          %s135 = scalar_select %p134, %s12, 1
          %s136 = smul.addr %s135, 54
          %s137 = smul.addr %s136, 4
          %s138 = scalar_lea.vmem %s0, %s137
        $region28: #{tpu_custom_call.1} parent=23 // pred_fallthru
          _
      $region24: #{tpu_custom_call.1} parent=5 // pred_fallthru
        _
      %p139 = scmp.le.s32.totalorder 1, %s12
      %p140 = scmp.lt.s32.totalorder %s12, 3
      %p141 = pnand %p139, %p140
      %p142 = pneg %p141
      // Predicated region
      $region29: #{tpu_custom_call.1} parent=5 // pred_check
        _
      $region30: #{tpu_custom_call.1} parent=5 // pred_check_branch
        %144 = sbr.rel (%p141) target = $region32
      $region31: #{tpu_custom_call.1} parent=5 // pred_region
        %s145 = ssub.s32 %s12, 1
        %p146 = scmp.lt.s32.totalorder %s17, 1
        %s147 = scalar_select %p146, %s17, 1
        %s148 = smul.addr %s147, 54
        %s149 = smul.addr %s148, 4
        %s150 = scalar_lea.vmem %s0, %s149
        %p151 = pneg %p38
        %p152 = pneg %p35
        %p153 = pneg %p59
        %p154 = pneg %p56
        %p155 = pneg %p80
        %p156 = pneg %p77
        %p157 = pneg %p106
        %p158 = pneg %p103
        %s159 = sand.u32 %s93, 1
        %s160 = scalar_lea.sflag [#allocation3], %s159
        %s161 = sand.u32 %s93, 1
        %s162 = scalar_lea.vmem [#allocation2], %s161
        %p163 = scmp.lt.s32.totalorder %s17, 1
        %s164 = scalar_select %p163, %s17, 1
        %s165 = smul.addr %s164, 54
        %s166 = smul.addr %s165, 4
        %s167 = scalar_lea.vmem %s0, %s166
        %v169 = vld [vmem:[%s167] sm:$0xf]
        %v170 = vld [vmem:[%s167 + $0x4] sm:$0xf]
        %v171 = vld [vmem:[%s167 + $0x8] sm:$0x1]
        %v172 = vld [vmem:[%s167 + $0xc] sm:$0xf]
        %v173 = vld [vmem:[%s167 + $0x10] sm:$0xf]
        %v174 = vld [vmem:[%s167 + $0x14] sm:$0x1]
        %v175 = vld [vmem:[%s167 + $0x18] sm:$0xf]
        %v176 = vld [vmem:[%s167 + $0x1c] sm:$0xf]
        %v177 = vld [vmem:[%s167 + $0x20] sm:$0x1]
        %v178 = vld [vmem:[%s167 + $0x24] sm:$0xf]
        %v179 = vld [vmem:[%s167 + $0x28] sm:$0xf]
        %v180 = vld [vmem:[%s167 + $0x2c] sm:$0x1]
        %v181 = vld [vmem:[%s167 + $0x30] sm:$0xf]
        %v182 = vld [vmem:[%s167 + $0x34] sm:$0xf]
        %v183 = vld [vmem:[%s167 + $0x38] sm:$0x1]
        %v184 = vld [vmem:[%s167 + $0x3c] sm:$0xf]
        %v185 = vld [vmem:[%s167 + $0x40] sm:$0xf]
        %v186 = vld [vmem:[%s167 + $0x44] sm:$0x1]
        %v187 = vld [vmem:[%s167 + $0x48] sm:$0xf]
        %v188 = vld [vmem:[%s167 + $0x4c] sm:$0xf]
        %v189 = vld [vmem:[%s167 + $0x50] sm:$0x1]
        %v190 = vld [vmem:[%s167 + $0x54] sm:$0xf]
        %v191 = vld [vmem:[%s167 + $0x58] sm:$0xf]
        %v192 = vld [vmem:[%s167 + $0x5c] sm:$0x1]
        %v193 = vld [vmem:[%s167 + $0x60] sm:$0xf]
        %v194 = vld [vmem:[%s167 + $0x64] sm:$0xf]
        %v195 = vld [vmem:[%s167 + $0x68] sm:$0x1]
        %v196 = vld [vmem:[%s167 + $0x6c] sm:$0xf]
        %v197 = vld [vmem:[%s167 + $0x70] sm:$0xf]
        %v198 = vld [vmem:[%s167 + $0x74] sm:$0x1]
        %v199 = vld [vmem:[%s167 + $0x78] sm:$0xf]
        %v200 = vld [vmem:[%s167 + $0x7c] sm:$0xf]
        %v201 = vld [vmem:[%s167 + $0x80] sm:$0x1]
        %v202 = vld [vmem:[%s167 + $0x84] sm:$0xf]
        %v203 = vld [vmem:[%s167 + $0x88] sm:$0xf]
        %v204 = vld [vmem:[%s167 + $0x8c] sm:$0x1]
        %v205 = vld [vmem:[%s167 + $0x90] sm:$0xf]
        %v206 = vld [vmem:[%s167 + $0x94] sm:$0xf]
        %v207 = vld [vmem:[%s167 + $0x98] sm:$0x1]
        %v208 = vld [vmem:[%s167 + $0x9c] sm:$0xf]
        %v209 = vld [vmem:[%s167 + $0xa0] sm:$0xf]
        %v210 = vld [vmem:[%s167 + $0xa4] sm:$0x1]
        %v211 = vld [vmem:[%s167 + $0xa8] sm:$0xf]
        %v212 = vld [vmem:[%s167 + $0xac] sm:$0xf]
        %v213 = vld [vmem:[%s167 + $0xb0] sm:$0x1]
        %v214 = vld [vmem:[%s167 + $0xb4] sm:$0xf]
        %v215 = vld [vmem:[%s167 + $0xb8] sm:$0xf]
        %v216 = vld [vmem:[%s167 + $0xbc] sm:$0x1]
        %v217 = vld [vmem:[%s167 + $0xc0] sm:$0xf]
        %v218 = vld [vmem:[%s167 + $0xc4] sm:$0xf]
        %v219 = vld [vmem:[%s167 + $0xc8] sm:$0x1]
        %v220 = vld [vmem:[%s167 + $0xcc] sm:$0xf]
        %v221 = vld [vmem:[%s167 + $0xd0] sm:$0xf]
        %v222 = vld [vmem:[%s167 + $0xd4] sm:$0x1]
        %v223 = vld [vmem:[%s1] sm:$0xf]
        %v224 = vld [vmem:[%s1 + $0x4] sm:$0xf]
        %v225 = vld [vmem:[%s1 + $0x8] sm:$0xf]
        %v226 = vld [vmem:[%s1 + $0xc] sm:$0xf]
        %v227 = vld [vmem:[%s1 + $0x10] sm:$0xf]
        %v228 = vld [vmem:[%s1 + $0x14] sm:$0xf]
        %v229 = vld [vmem:[%s1 + $0x18] sm:$0xf]
        %v230 = vld [vmem:[%s1 + $0x1c] sm:$0xf]
        %v231 = vld [vmem:[%s1 + $0x20] sm:$0xf]
        %v232 = vld [vmem:[%s1 + $0x24] sm:$0xf]
        %v233 = vld [vmem:[%s1 + $0x28] sm:$0xf]
        %v234 = vld [vmem:[%s1 + $0x2c] sm:$0xf]
        %v235 = vld [vmem:[%s1 + $0x30] sm:$0xf]
        %v236 = vld [vmem:[%s1 + $0x34] sm:$0xf]
        %v237 = vld [vmem:[%s1 + $0x38] sm:$0xf]
        %v238 = vld [vmem:[%s1 + $0x3c] sm:$0xf]
        %vm239 = vsmask.f32 3328
        %vm240 = vsmask.f32 7440
        %vm241 = vmor %vm239, %vm240
        %v243 = vshrl.u32 %v169, 16
        %v245 = vrot.slane %v243, 4
        %v246 = vshll.u32 %v169, 16
        %v248 = vrot.slane %v246, 5
        %v249 = vor.u32 %v245, %v248
        %v250 = vrot.slane %v249, 4
        %v252 = vshll.u32 %v170, 16
        %v254 = vrot.slane %v252, 5
        %v255 = vsel %vm241, %v250, %v254
        %v256 = vshrl.u32 %v170, 16
        %v258 = vrot.slane %v256, 4
        %v259 = vor.u32 %v258, %v254
        %v260 = vrot.slane %v259, 4
        %v262 = vshll.u32 %v171, 16
        %v264 = vrot.slane %v262, 5
        %v265 = vsel %vm241, %v260, %v264
        %v267 = vshrl.u32 %v172, 16
        %v269 = vrot.slane %v267, 4
        %v270 = vshll.u32 %v172, 16
        %v272 = vrot.slane %v270, 5
        %v273 = vor.u32 %v269, %v272
        %v274 = vrot.slane %v273, 4
        %v276 = vshll.u32 %v173, 16
        %v278 = vrot.slane %v276, 5
        %v279 = vsel %vm241, %v274, %v278
        %v280 = vshrl.u32 %v173, 16
        %v282 = vrot.slane %v280, 4
        %v283 = vor.u32 %v282, %v278
        %v284 = vrot.slane %v283, 4
        %v286 = vshll.u32 %v174, 16
        %v288 = vrot.slane %v286, 5
        %v289 = vsel %vm241, %v284, %v288
        %v291 = vshrl.u32 %v175, 16
        %v293 = vrot.slane %v291, 4
        %v294 = vshll.u32 %v175, 16
        %v296 = vrot.slane %v294, 5
        %v297 = vor.u32 %v293, %v296
        %v298 = vrot.slane %v297, 4
        %v300 = vshll.u32 %v176, 16
        %v302 = vrot.slane %v300, 5
        %v303 = vsel %vm241, %v298, %v302
        %v304 = vshrl.u32 %v176, 16
        %v306 = vrot.slane %v304, 4
        %v307 = vor.u32 %v306, %v302
        %v308 = vrot.slane %v307, 4
        %v310 = vshll.u32 %v177, 16
        %v312 = vrot.slane %v310, 5
        %v313 = vsel %vm241, %v308, %v312
        %v315 = vshrl.u32 %v178, 16
        %v317 = vrot.slane %v315, 4
        %v318 = vshll.u32 %v178, 16
        %v320 = vrot.slane %v318, 5
        %v321 = vor.u32 %v317, %v320
        %v322 = vrot.slane %v321, 4
        %v324 = vshll.u32 %v179, 16
        %v326 = vrot.slane %v324, 5
        %v327 = vsel %vm241, %v322, %v326
        %v328 = vshrl.u32 %v179, 16
        %v330 = vrot.slane %v328, 4
        %v331 = vor.u32 %v330, %v326
        %v332 = vrot.slane %v331, 4
        %v334 = vshll.u32 %v180, 16
        %v336 = vrot.slane %v334, 5
        %v337 = vsel %vm241, %v332, %v336
        %v339 = vshrl.u32 %v181, 16
        %v341 = vrot.slane %v339, 4
        %v342 = vshll.u32 %v181, 16
        %v344 = vrot.slane %v342, 5
        %v345 = vor.u32 %v341, %v344
        %v346 = vrot.slane %v345, 4
        %v348 = vshll.u32 %v182, 16
        %v350 = vrot.slane %v348, 5
        %v351 = vsel %vm241, %v346, %v350
        %v352 = vshrl.u32 %v182, 16
        %v354 = vrot.slane %v352, 4
        %v355 = vor.u32 %v354, %v350
        %v356 = vrot.slane %v355, 4
        %v358 = vshll.u32 %v183, 16
        %v360 = vrot.slane %v358, 5
        %v361 = vsel %vm241, %v356, %v360
        %v363 = vshrl.u32 %v184, 16
        %v365 = vrot.slane %v363, 4
        %v366 = vshll.u32 %v184, 16
        %v368 = vrot.slane %v366, 5
        %v369 = vor.u32 %v365, %v368
        %v370 = vrot.slane %v369, 4
        %v372 = vshll.u32 %v185, 16
        %v374 = vrot.slane %v372, 5
        %v375 = vsel %vm241, %v370, %v374
        %v376 = vshrl.u32 %v185, 16
        %v378 = vrot.slane %v376, 4
        %v379 = vor.u32 %v378, %v374
        %v380 = vrot.slane %v379, 4
        %v382 = vshll.u32 %v186, 16
        %v384 = vrot.slane %v382, 5
        %v385 = vsel %vm241, %v380, %v384
        %v387 = vshrl.u32 %v187, 16
        %v389 = vrot.slane %v387, 4
        %v390 = vshll.u32 %v187, 16
        %v392 = vrot.slane %v390, 5
        %v393 = vor.u32 %v389, %v392
        %v394 = vrot.slane %v393, 4
        %v396 = vshll.u32 %v188, 16
        %v398 = vrot.slane %v396, 5
        %v399 = vsel %vm241, %v394, %v398
        %v400 = vshrl.u32 %v188, 16
        %v402 = vrot.slane %v400, 4
        %v403 = vor.u32 %v402, %v398
        %v404 = vrot.slane %v403, 4
        %v406 = vshll.u32 %v189, 16
        %v408 = vrot.slane %v406, 5
        %v409 = vsel %vm241, %v404, %v408
        %v411 = vshrl.u32 %v190, 16
        %v413 = vrot.slane %v411, 4
        %v414 = vshll.u32 %v190, 16
        %v416 = vrot.slane %v414, 5
        %v417 = vor.u32 %v413, %v416
        %v418 = vrot.slane %v417, 4
        %v420 = vshll.u32 %v191, 16
        %v422 = vrot.slane %v420, 5
        %v423 = vsel %vm241, %v418, %v422
        %v424 = vshrl.u32 %v191, 16
        %v426 = vrot.slane %v424, 4
        %v427 = vor.u32 %v426, %v422
        %v428 = vrot.slane %v427, 4
        %v430 = vshll.u32 %v192, 16
        %v432 = vrot.slane %v430, 5
        %v433 = vsel %vm241, %v428, %v432
        %v435 = vshrl.u32 %v193, 16
        %v437 = vrot.slane %v435, 4
        %v438 = vshll.u32 %v193, 16
        %v440 = vrot.slane %v438, 5
        %v441 = vor.u32 %v437, %v440
        %v442 = vrot.slane %v441, 4
        %v444 = vshll.u32 %v194, 16
        %v446 = vrot.slane %v444, 5
        %v447 = vsel %vm241, %v442, %v446
        %v448 = vshrl.u32 %v194, 16
        %v450 = vrot.slane %v448, 4
        %v451 = vor.u32 %v450, %v446
        %v452 = vrot.slane %v451, 4
        %v454 = vshll.u32 %v195, 16
        %v456 = vrot.slane %v454, 5
        %v457 = vsel %vm241, %v452, %v456
        %v459 = vshrl.u32 %v196, 16
        %v461 = vrot.slane %v459, 4
        %v462 = vshll.u32 %v196, 16
        %v464 = vrot.slane %v462, 5
        %v465 = vor.u32 %v461, %v464
        %v466 = vrot.slane %v465, 4
        %v468 = vshll.u32 %v197, 16
        %v470 = vrot.slane %v468, 5
        %v471 = vsel %vm241, %v466, %v470
        %v472 = vshrl.u32 %v197, 16
        %v474 = vrot.slane %v472, 4
        %v475 = vor.u32 %v474, %v470
        %v476 = vrot.slane %v475, 4
        %v478 = vshll.u32 %v198, 16
        %v480 = vrot.slane %v478, 5
        %v481 = vsel %vm241, %v476, %v480
        %v483 = vshrl.u32 %v199, 16
        %v485 = vrot.slane %v483, 4
        %v486 = vshll.u32 %v199, 16
        %v488 = vrot.slane %v486, 5
        %v489 = vor.u32 %v485, %v488
        %v490 = vrot.slane %v489, 4
        %v492 = vshll.u32 %v200, 16
        %v494 = vrot.slane %v492, 5
        %v495 = vsel %vm241, %v490, %v494
        %v496 = vshrl.u32 %v200, 16
        %v498 = vrot.slane %v496, 4
        %v499 = vor.u32 %v498, %v494
        %v500 = vrot.slane %v499, 4
        %v502 = vshll.u32 %v201, 16
        %v504 = vrot.slane %v502, 5
        %v505 = vsel %vm241, %v500, %v504
        %v507 = vshrl.u32 %v202, 16
        %v509 = vrot.slane %v507, 4
        %v510 = vshll.u32 %v202, 16
        %v512 = vrot.slane %v510, 5
        %v513 = vor.u32 %v509, %v512
        %v514 = vrot.slane %v513, 4
        %v516 = vshll.u32 %v203, 16
        %v518 = vrot.slane %v516, 5
        %v519 = vsel %vm241, %v514, %v518
        %v520 = vshrl.u32 %v203, 16
        %v522 = vrot.slane %v520, 4
        %v523 = vor.u32 %v522, %v518
        %v524 = vrot.slane %v523, 4
        %v526 = vshll.u32 %v204, 16
        %v528 = vrot.slane %v526, 5
        %v529 = vsel %vm241, %v524, %v528
        %v531 = vshrl.u32 %v205, 16
        %v533 = vrot.slane %v531, 4
        %v534 = vshll.u32 %v205, 16
        %v536 = vrot.slane %v534, 5
        %v537 = vor.u32 %v533, %v536
        %v538 = vrot.slane %v537, 4
        %v540 = vshll.u32 %v206, 16
        %v542 = vrot.slane %v540, 5
        %v543 = vsel %vm241, %v538, %v542
        %v544 = vshrl.u32 %v206, 16
        %v546 = vrot.slane %v544, 4
        %v547 = vor.u32 %v546, %v542
        %v548 = vrot.slane %v547, 4
        %v550 = vshll.u32 %v207, 16
        %v552 = vrot.slane %v550, 5
        %v553 = vsel %vm241, %v548, %v552
        %v555 = vshrl.u32 %v208, 16
        %v557 = vrot.slane %v555, 4
        %v558 = vshll.u32 %v208, 16
        %v560 = vrot.slane %v558, 5
        %v561 = vor.u32 %v557, %v560
        %v562 = vrot.slane %v561, 4
        %v564 = vshll.u32 %v209, 16
        %v566 = vrot.slane %v564, 5
        %v567 = vsel %vm241, %v562, %v566
        %v568 = vshrl.u32 %v209, 16
        %v570 = vrot.slane %v568, 4
        %v571 = vor.u32 %v570, %v566
        %v572 = vrot.slane %v571, 4
        %v574 = vshll.u32 %v210, 16
        %v576 = vrot.slane %v574, 5
        %v577 = vsel %vm241, %v572, %v576
        %v579 = vshrl.u32 %v211, 16
        %v581 = vrot.slane %v579, 4
        %v582 = vshll.u32 %v211, 16
        %v584 = vrot.slane %v582, 5
        %v585 = vor.u32 %v581, %v584
        %v586 = vrot.slane %v585, 4
        %v588 = vshll.u32 %v212, 16
        %v590 = vrot.slane %v588, 5
        %v591 = vsel %vm241, %v586, %v590
        %v592 = vshrl.u32 %v212, 16
        %v594 = vrot.slane %v592, 4
        %v595 = vor.u32 %v594, %v590
        %v596 = vrot.slane %v595, 4
        %v598 = vshll.u32 %v213, 16
        %v600 = vrot.slane %v598, 5
        %v601 = vsel %vm241, %v596, %v600
        %v603 = vshrl.u32 %v214, 16
        %v605 = vrot.slane %v603, 4
        %v606 = vshll.u32 %v214, 16
        %v608 = vrot.slane %v606, 5
        %v609 = vor.u32 %v605, %v608
        %v610 = vrot.slane %v609, 4
        %v612 = vshll.u32 %v215, 16
        %v614 = vrot.slane %v612, 5
        %v615 = vsel %vm241, %v610, %v614
        %v616 = vshrl.u32 %v215, 16
        %v618 = vrot.slane %v616, 4
        %v619 = vor.u32 %v618, %v614
        %v620 = vrot.slane %v619, 4
        %v622 = vshll.u32 %v216, 16
        %v624 = vrot.slane %v622, 5
        %v625 = vsel %vm241, %v620, %v624
        %s626 = scalar_lea.vmem %s1, 64
        %v627 = vld [vmem:[%s626] sm:$0xf]
        %v628 = vld [vmem:[%s626 + $0x4] sm:$0xf]
        %v629 = vld [vmem:[%s626 + $0x8] sm:$0xf]
        %v630 = vld [vmem:[%s626 + $0xc] sm:$0xf]
        %v631 = vld [vmem:[%s626 + $0x10] sm:$0xf]
        %v632 = vld [vmem:[%s626 + $0x14] sm:$0xf]
        %v633 = vld [vmem:[%s626 + $0x18] sm:$0xf]
        %v634 = vld [vmem:[%s626 + $0x1c] sm:$0xf]
        %v635 = vld [vmem:[%s626 + $0x20] sm:$0xf]
        %v636 = vld [vmem:[%s626 + $0x24] sm:$0xf]
        %v637 = vld [vmem:[%s626 + $0x28] sm:$0xf]
        %v638 = vld [vmem:[%s626 + $0x2c] sm:$0xf]
        %v639 = vld [vmem:[%s626 + $0x30] sm:$0xf]
        %v640 = vld [vmem:[%s626 + $0x34] sm:$0xf]
        %v641 = vld [vmem:[%s626 + $0x38] sm:$0xf]
        %v642 = vld [vmem:[%s626 + $0x3c] sm:$0xf]
        %v643 = vunpack.c.l.b16 %v255
        %v644 = vunpack.c.l.b16 %v265
        %v645 = vunpack.c.l.b16 %v279
        %v646 = vunpack.c.l.b16 %v289
        %v647 = vunpack.c.l.b16 %v303
        %v648 = vunpack.c.l.b16 %v313
        %v649 = vunpack.c.l.b16 %v327
        %v650 = vunpack.c.l.b16 %v337
        %v651 = vunpack.c.l.b16 %v351
        %v652 = vunpack.c.l.b16 %v361
        %v653 = vunpack.c.l.b16 %v375
        %v654 = vunpack.c.l.b16 %v385
        %v655 = vunpack.c.l.b16 %v399
        %v656 = vunpack.c.l.b16 %v409
        %v657 = vunpack.c.l.b16 %v423
        %v658 = vunpack.c.l.b16 %v433
        %v659 = vunpack.c.l.b16 %v447
        %v660 = vunpack.c.l.b16 %v457
        %v661 = vunpack.c.l.b16 %v471
        %v662 = vunpack.c.l.b16 %v481
        %v663 = vunpack.c.l.b16 %v495
        %v664 = vunpack.c.l.b16 %v505
        %v665 = vunpack.c.l.b16 %v519
        %v666 = vunpack.c.l.b16 %v529
        %v667 = vunpack.c.l.b16 %v543
        %v668 = vunpack.c.l.b16 %v553
        %v669 = vunpack.c.l.b16 %v567
        %v670 = vunpack.c.l.b16 %v577
        %v671 = vunpack.c.l.b16 %v591
        %v672 = vunpack.c.l.b16 %v601
        %v673 = vunpack.c.l.b16 %v615
        %v674 = vunpack.c.l.b16 %v625
        %v675 = vpack.c.b16 %v644, %v643
        %v676 = vpack.c.b16 %v646, %v645
        %v677 = vpack.c.b16 %v648, %v647
        %v678 = vpack.c.b16 %v650, %v649
        %v679 = vpack.c.b16 %v652, %v651
        %v680 = vpack.c.b16 %v654, %v653
        %v681 = vpack.c.b16 %v656, %v655
        %v682 = vpack.c.b16 %v658, %v657
        %v683 = vpack.c.b16 %v660, %v659
        %v684 = vpack.c.b16 %v662, %v661
        %v685 = vpack.c.b16 %v664, %v663
        %v686 = vpack.c.b16 %v666, %v665
        %v687 = vpack.c.b16 %v668, %v667
        %v688 = vpack.c.b16 %v670, %v669
        %v689 = vpack.c.b16 %v672, %v671
        %v690 = vpack.c.b16 %v674, %v673
        %v723 = vunpack.c.l.b16 %v627
        %v724 = vunpack.c.l.b16 %v628
        %v725 = vunpack.c.l.b16 %v629
        %v726 = vunpack.c.l.b16 %v630
        %v727 = vunpack.c.l.b16 %v631
        %v728 = vunpack.c.l.b16 %v632
        %v729 = vunpack.c.l.b16 %v633
        %v730 = vunpack.c.l.b16 %v634
        %v731 = vunpack.c.l.b16 %v635
        %v732 = vunpack.c.l.b16 %v636
        %v733 = vunpack.c.l.b16 %v637
        %v734 = vunpack.c.l.b16 %v638
        %v735 = vunpack.c.l.b16 %v639
        %v736 = vunpack.c.l.b16 %v640
        %v737 = vunpack.c.l.b16 %v641
        %v738 = vunpack.c.l.b16 %v642
        %v739 = vpack.c.b16 %v724, %v723
        %v740 = vpack.c.b16 %v726, %v725
        %v741 = vpack.c.b16 %v728, %v727
        %v742 = vpack.c.b16 %v730, %v729
        %v743 = vpack.c.b16 %v732, %v731
        %v744 = vpack.c.b16 %v734, %v733
        %v745 = vpack.c.b16 %v736, %v735
        %v746 = vpack.c.b16 %v738, %v737
        %755 = vmatprep.subr.bf16.mxu0 0
        %756 = vmatpush1.bf16.msra.mxu0 %v739
        %757 = vmatprep.subr.bf16.mxu0 0
        %758 = vmatpush1.bf16.msra.mxu0 %v740
        %759 = vmatprep.subr.bf16.mxu0 0
        %760 = vmatpush1.bf16.msra.mxu0 %v741
        %761 = vmatprep.subr.bf16.mxu0 0
        %762 = vmatpush1.bf16.msra.mxu0 %v742
        %763 = vmatprep.subr.bf16.mxu0 0
        %764 = vmatpush1.bf16.msra.mxu0 %v743
        %765 = vmatprep.subr.bf16.mxu0 0
        %766 = vmatpush1.bf16.msra.mxu0 %v744
        %767 = vmatprep.subr.bf16.mxu0 0
        %768 = vmatpush1.bf16.msra.mxu0 %v745
        %769 = vmatprep.subr.bf16.mxu0 0
        %770 = vmatpush1.bf16.msra.mxu0 %v746
        %771 = vmatprep.subr.bf16.mxu0 0
        %772 = vmatpush1.bf16.msra.mxu0 0
        %773 = vmatprep.subr.bf16.mxu0 0
        %774 = vmatpush1.bf16.msra.mxu0 0
        %775 = vmatprep.subr.bf16.mxu0 0
        %776 = vmatpush1.bf16.msra.mxu0 0
        %777 = vmatprep.subr.bf16.mxu0 0
        %778 = vmatpush1.bf16.msra.mxu0 0
        %779 = vmatprep.subr.bf16.mxu0 0
        %780 = vmatpush1.bf16.msra.mxu0 0
        %781 = vmatprep.subr.bf16.mxu0 0
        %782 = vmatpush1.bf16.msra.mxu0 0
        %783 = vmatprep.subr.bf16.mxu0 0
        %784 = vmatpush1.bf16.msra.mxu0 0
        %785 = vmatprep.subr.bf16.mxu0 0
        %786 = vmatpush1.bf16.msra.mxu0 0
        %787 = vmatprep.mubr.bf16.mxu0 0
        %788 = vmatmul.mubr.bf16.gmra.mrb[0].mxu0 %v675
        %v789 = vpop.f32.mrb[0].mxu0
        %v790 = vadd.f32 0.0, %v789
        %v791 = vpop.f32.mrb[0].mxu0
        %v792 = vpop.f32.mrb[0].mxu0
        %v793 = vadd.f32 0.0, %v792
        %v794 = vpop.f32.mrb[0].mxu0
        %795 = vmatprep.mubr.bf16.mxu0 0
        %796 = vmatmul.mubr.bf16.gmra.mrb[0].mxu0 %v676
        %v797 = vpop.f32.mrb[0].mxu0
        %v798 = vadd.f32 0.0, %v797
        %v799 = vpop.f32.mrb[0].mxu0
        %v800 = vpop.f32.mrb[0].mxu0
        %v801 = vadd.f32 0.0, %v800
        %v802 = vpop.f32.mrb[0].mxu0
        %803 = vmatprep.mubr.bf16.mxu0 0
        %804 = vmatmul.mubr.bf16.gmra.mrb[0].mxu0 %v677
        %v805 = vpop.f32.mrb[0].mxu0
        %v806 = vadd.f32 0.0, %v805
        %v807 = vpop.f32.mrb[0].mxu0
        %v808 = vpop.f32.mrb[0].mxu0
        %v809 = vadd.f32 0.0, %v808
        %v810 = vpop.f32.mrb[0].mxu0
        %811 = vmatprep.mubr.bf16.mxu0 0
        %812 = vmatmul.mubr.bf16.gmra.mrb[0].mxu0 %v678
        %v813 = vpop.f32.mrb[0].mxu0
        %v814 = vadd.f32 0.0, %v813
        %v815 = vpop.f32.mrb[0].mxu0
        %v816 = vpop.f32.mrb[0].mxu0
        %v817 = vadd.f32 0.0, %v816
        %v818 = vpop.f32.mrb[0].mxu0
        %819 = vmatprep.mubr.bf16.mxu0 0
        %820 = vmatmul.mubr.bf16.gmra.mrb[0].mxu0 %v679
        %v821 = vpop.f32.mrb[0].mxu0
        %v822 = vadd.f32 0.0, %v821
        %v823 = vpop.f32.mrb[0].mxu0
        %v824 = vpop.f32.mrb[0].mxu0
        %v825 = vadd.f32 0.0, %v824
        %v826 = vpop.f32.mrb[0].mxu0
        %827 = vmatprep.mubr.bf16.mxu0 0
        %828 = vmatmul.mubr.bf16.gmra.mrb[0].mxu0 %v680
        %v829 = vpop.f32.mrb[0].mxu0
        %v830 = vadd.f32 0.0, %v829
        %v831 = vpop.f32.mrb[0].mxu0
        %v832 = vpop.f32.mrb[0].mxu0
        %v833 = vadd.f32 0.0, %v832
        %v834 = vpop.f32.mrb[0].mxu0
        %835 = vmatprep.mubr.bf16.mxu0 0
        %836 = vmatmul.mubr.bf16.gmra.mrb[0].mxu0 %v681
        %v837 = vpop.f32.mrb[0].mxu0
        %v838 = vadd.f32 0.0, %v837
        %v839 = vpop.f32.mrb[0].mxu0
        %v840 = vpop.f32.mrb[0].mxu0
        %v841 = vadd.f32 0.0, %v840
        %v842 = vpop.f32.mrb[0].mxu0
        %843 = vmatprep.mubr.bf16.mxu0 0
        %844 = vmatmul.mubr.bf16.gmra.mrb[0].mxu0 %v682
        %v845 = vpop.f32.mrb[0].mxu0
        %v846 = vadd.f32 0.0, %v845
        %v847 = vpop.f32.mrb[0].mxu0
        %v848 = vpop.f32.mrb[0].mxu0
        %v849 = vadd.f32 0.0, %v848
        %v850 = vpop.f32.mrb[0].mxu0
        %851 = vmatprep.mubr.bf16.mxu0 0
        %852 = vmatmul.mubr.bf16.gmra.mrb[0].mxu0 %v683
        %v853 = vpop.f32.mrb[0].mxu0
        %v854 = vadd.f32 0.0, %v853
        %v855 = vpop.f32.mrb[0].mxu0
        %v856 = vpop.f32.mrb[0].mxu0
        %v857 = vadd.f32 0.0, %v856
        %v858 = vpop.f32.mrb[0].mxu0
        %859 = vmatprep.mubr.bf16.mxu0 0
        %860 = vmatmul.mubr.bf16.gmra.mrb[0].mxu0 %v684
        %v861 = vpop.f32.mrb[0].mxu0
        %v862 = vadd.f32 0.0, %v861
        %v863 = vpop.f32.mrb[0].mxu0
        %v864 = vpop.f32.mrb[0].mxu0
        %v865 = vadd.f32 0.0, %v864
        %v866 = vpop.f32.mrb[0].mxu0
        %867 = vmatprep.mubr.bf16.mxu0 0
        %868 = vmatmul.mubr.bf16.gmra.mrb[0].mxu0 %v685
        %v869 = vpop.f32.mrb[0].mxu0
        %v870 = vadd.f32 0.0, %v869
        %v871 = vpop.f32.mrb[0].mxu0
        %v872 = vpop.f32.mrb[0].mxu0
        %v873 = vadd.f32 0.0, %v872
        %v874 = vpop.f32.mrb[0].mxu0
        %875 = vmatprep.mubr.bf16.mxu0 0
        %876 = vmatmul.mubr.bf16.gmra.mrb[0].mxu0 %v686
        %v877 = vpop.f32.mrb[0].mxu0
        %v878 = vadd.f32 0.0, %v877
        %v879 = vpop.f32.mrb[0].mxu0
        %v880 = vpop.f32.mrb[0].mxu0
        %v881 = vadd.f32 0.0, %v880
        %v882 = vpop.f32.mrb[0].mxu0
        %883 = vmatprep.mubr.bf16.mxu0 0
        %884 = vmatmul.mubr.bf16.gmra.mrb[0].mxu0 %v687
        %v885 = vpop.f32.mrb[0].mxu0
        %v886 = vadd.f32 0.0, %v885
        %v887 = vpop.f32.mrb[0].mxu0
        %v888 = vpop.f32.mrb[0].mxu0
        %v889 = vadd.f32 0.0, %v888
        %v890 = vpop.f32.mrb[0].mxu0
        %891 = vmatprep.mubr.bf16.mxu0 0
        %892 = vmatmul.mubr.bf16.gmra.mrb[0].mxu0 %v688
        %v893 = vpop.f32.mrb[0].mxu0
        %v894 = vadd.f32 0.0, %v893
        %v895 = vpop.f32.mrb[0].mxu0
        %v896 = vpop.f32.mrb[0].mxu0
        %v897 = vadd.f32 0.0, %v896
        %v898 = vpop.f32.mrb[0].mxu0
        %899 = vmatprep.mubr.bf16.mxu0 0
        %900 = vmatmul.mubr.bf16.gmra.mrb[0].mxu0 %v689
        %v901 = vpop.f32.mrb[0].mxu0
        %v902 = vadd.f32 0.0, %v901
        %v903 = vpop.f32.mrb[0].mxu0
        %v904 = vpop.f32.mrb[0].mxu0
        %v905 = vadd.f32 0.0, %v904
        %v906 = vpop.f32.mrb[0].mxu0
        %907 = vmatprep.mubr.bf16.mxu0 0
        %908 = vmatmul.mubr.bf16.gmra.mrb[0].mxu0 %v690
        %v909 = vpop.f32.mrb[0].mxu0
        %v910 = vadd.f32 0.0, %v909
        %v911 = vpop.f32.mrb[0].mxu0
        %v912 = vpop.f32.mrb[0].mxu0
        %v913 = vadd.f32 0.0, %v912
        %v914 = vpop.f32.mrb[0].mxu0
        %915 = vdwg.mxu0
        %v948 = vunpack.c.l.b16 %v169
        %v949 = vunpack.c.l.b16 %v170
        %v950 = vunpack.c.l.b16 %v172
        %v951 = vunpack.c.l.b16 %v173
        %v952 = vunpack.c.l.b16 %v175
        %v953 = vunpack.c.l.b16 %v176
        %v954 = vunpack.c.l.b16 %v178
        %v955 = vunpack.c.l.b16 %v179
        %v956 = vunpack.c.l.b16 %v181
        %v957 = vunpack.c.l.b16 %v182
        %v958 = vunpack.c.l.b16 %v184
        %v959 = vunpack.c.l.b16 %v185
        %v960 = vunpack.c.l.b16 %v187
        %v961 = vunpack.c.l.b16 %v188
        %v962 = vunpack.c.l.b16 %v190
        %v963 = vunpack.c.l.b16 %v191
        %v964 = vunpack.c.l.b16 %v193
        %v965 = vunpack.c.l.b16 %v194
        %v966 = vunpack.c.l.b16 %v196
        %v967 = vunpack.c.l.b16 %v197
        %v968 = vunpack.c.l.b16 %v199
        %v969 = vunpack.c.l.b16 %v200
        %v970 = vunpack.c.l.b16 %v202
        %v971 = vunpack.c.l.b16 %v203
        %v972 = vunpack.c.l.b16 %v205
        %v973 = vunpack.c.l.b16 %v206
        %v974 = vunpack.c.l.b16 %v208
        %v975 = vunpack.c.l.b16 %v209
        %v976 = vunpack.c.l.b16 %v211
        %v977 = vunpack.c.l.b16 %v212
        %v978 = vunpack.c.l.b16 %v214
        %v979 = vunpack.c.l.b16 %v215
        %v980 = vpack.c.b16 %v949, %v948
        %v981 = vpack.c.b16 %v951, %v950
        %v982 = vpack.c.b16 %v953, %v952
        %v983 = vpack.c.b16 %v955, %v954
        %v984 = vpack.c.b16 %v957, %v956
        %v985 = vpack.c.b16 %v959, %v958
        %v986 = vpack.c.b16 %v961, %v960
        %v987 = vpack.c.b16 %v963, %v962
        %v988 = vpack.c.b16 %v965, %v964
        %v989 = vpack.c.b16 %v967, %v966
        %v990 = vpack.c.b16 %v969, %v968
        %v991 = vpack.c.b16 %v971, %v970
        %v992 = vpack.c.b16 %v973, %v972
        %v993 = vpack.c.b16 %v975, %v974
        %v994 = vpack.c.b16 %v977, %v976
        %v995 = vpack.c.b16 %v979, %v978
        %v1028 = vunpack.c.l.b16 %v223
        %v1029 = vunpack.c.l.b16 %v224
        %v1030 = vunpack.c.l.b16 %v225
        %v1031 = vunpack.c.l.b16 %v226
        %v1032 = vunpack.c.l.b16 %v227
        %v1033 = vunpack.c.l.b16 %v228
        %v1034 = vunpack.c.l.b16 %v229
        %v1035 = vunpack.c.l.b16 %v230
        %v1036 = vunpack.c.l.b16 %v231
        %v1037 = vunpack.c.l.b16 %v232
        %v1038 = vunpack.c.l.b16 %v233
        %v1039 = vunpack.c.l.b16 %v234
        %v1040 = vunpack.c.l.b16 %v235
        %v1041 = vunpack.c.l.b16 %v236
        %v1042 = vunpack.c.l.b16 %v237
        %v1043 = vunpack.c.l.b16 %v238
        %v1044 = vpack.c.b16 %v1029, %v1028
        %v1045 = vpack.c.b16 %v1031, %v1030
        %v1046 = vpack.c.b16 %v1033, %v1032
        %v1047 = vpack.c.b16 %v1035, %v1034
        %v1048 = vpack.c.b16 %v1037, %v1036
        %v1049 = vpack.c.b16 %v1039, %v1038
        %v1050 = vpack.c.b16 %v1041, %v1040
        %v1051 = vpack.c.b16 %v1043, %v1042
        %1060 = vmatprep.subr.bf16.mxu0 0
        %1061 = vmatpush1.bf16.msra.mxu0 %v1044
        %1062 = vmatprep.subr.bf16.mxu0 0
        %1063 = vmatpush1.bf16.msra.mxu0 %v1045
        %1064 = vmatprep.subr.bf16.mxu0 0
        %1065 = vmatpush1.bf16.msra.mxu0 %v1046
        %1066 = vmatprep.subr.bf16.mxu0 0
        %1067 = vmatpush1.bf16.msra.mxu0 %v1047
        %1068 = vmatprep.subr.bf16.mxu0 0
        %1069 = vmatpush1.bf16.msra.mxu0 %v1048
        %1070 = vmatprep.subr.bf16.mxu0 0
        %1071 = vmatpush1.bf16.msra.mxu0 %v1049
        %1072 = vmatprep.subr.bf16.mxu0 0
        %1073 = vmatpush1.bf16.msra.mxu0 %v1050
        %1074 = vmatprep.subr.bf16.mxu0 0
        %1075 = vmatpush1.bf16.msra.mxu0 %v1051
        %1076 = vmatprep.subr.bf16.mxu0 0
        %1077 = vmatpush1.bf16.msra.mxu0 0
        %1078 = vmatprep.subr.bf16.mxu0 0
        %1079 = vmatpush1.bf16.msra.mxu0 0
        %1080 = vmatprep.subr.bf16.mxu0 0
        %1081 = vmatpush1.bf16.msra.mxu0 0
        %1082 = vmatprep.subr.bf16.mxu0 0
        %1083 = vmatpush1.bf16.msra.mxu0 0
        %1084 = vmatprep.subr.bf16.mxu0 0
        %1085 = vmatpush1.bf16.msra.mxu0 0
        %1086 = vmatprep.subr.bf16.mxu0 0
        %1087 = vmatpush1.bf16.msra.mxu0 0
        %1088 = vmatprep.subr.bf16.mxu0 0
        %1089 = vmatpush1.bf16.msra.mxu0 0
        %1090 = vmatprep.subr.bf16.mxu0 0
        %1091 = vmatpush1.bf16.msra.mxu0 0
        %1092 = vmatprep.mubr.bf16.mxu0 0
        %1093 = vmatmul.mubr.bf16.gmra.mrb[0].mxu0 %v980
        %v1094 = vpop.f32.mrb[0].mxu0
        %v1095 = vadd.f32 %v790, %v1094
        %v1096 = vpop.f32.mrb[0].mxu0
        %v1097 = vpop.f32.mrb[0].mxu0
        %v1098 = vadd.f32 %v793, %v1097
        %v1099 = vpop.f32.mrb[0].mxu0
        %1100 = vmatprep.mubr.bf16.mxu0 0
        %1101 = vmatmul.mubr.bf16.gmra.mrb[0].mxu0 %v981
        %v1102 = vpop.f32.mrb[0].mxu0
        %v1103 = vadd.f32 %v798, %v1102
        %v1104 = vpop.f32.mrb[0].mxu0
        %v1105 = vpop.f32.mrb[0].mxu0
        %v1106 = vadd.f32 %v801, %v1105
        %v1107 = vpop.f32.mrb[0].mxu0
        %1108 = vmatprep.mubr.bf16.mxu0 0
        %1109 = vmatmul.mubr.bf16.gmra.mrb[0].mxu0 %v982
        %v1110 = vpop.f32.mrb[0].mxu0
        %v1111 = vadd.f32 %v806, %v1110
        %v1112 = vpop.f32.mrb[0].mxu0
        %v1113 = vpop.f32.mrb[0].mxu0
        %v1114 = vadd.f32 %v809, %v1113
        %v1115 = vpop.f32.mrb[0].mxu0
        %1116 = vmatprep.mubr.bf16.mxu0 0
        %1117 = vmatmul.mubr.bf16.gmra.mrb[0].mxu0 %v983
        %v1118 = vpop.f32.mrb[0].mxu0
        %v1119 = vadd.f32 %v814, %v1118
        %v1120 = vpop.f32.mrb[0].mxu0
        %v1121 = vpop.f32.mrb[0].mxu0
        %v1122 = vadd.f32 %v817, %v1121
        %v1123 = vpop.f32.mrb[0].mxu0
        %1124 = vmatprep.mubr.bf16.mxu0 0
        %1125 = vmatmul.mubr.bf16.gmra.mrb[0].mxu0 %v984
        %v1126 = vpop.f32.mrb[0].mxu0
        %v1127 = vadd.f32 %v822, %v1126
        %v1128 = vpop.f32.mrb[0].mxu0
        %v1129 = vpop.f32.mrb[0].mxu0
        %v1130 = vadd.f32 %v825, %v1129
        %v1131 = vpop.f32.mrb[0].mxu0
        %1132 = vmatprep.mubr.bf16.mxu0 0
        %1133 = vmatmul.mubr.bf16.gmra.mrb[0].mxu0 %v985
        %v1134 = vpop.f32.mrb[0].mxu0
        %v1135 = vadd.f32 %v830, %v1134
        %v1136 = vpop.f32.mrb[0].mxu0
        %v1137 = vpop.f32.mrb[0].mxu0
        %v1138 = vadd.f32 %v833, %v1137
        %v1139 = vpop.f32.mrb[0].mxu0
        %1140 = vmatprep.mubr.bf16.mxu0 0
        %1141 = vmatmul.mubr.bf16.gmra.mrb[0].mxu0 %v986
        %v1142 = vpop.f32.mrb[0].mxu0
        %v1143 = vadd.f32 %v838, %v1142
        %v1144 = vpop.f32.mrb[0].mxu0
        %v1145 = vpop.f32.mrb[0].mxu0
        %v1146 = vadd.f32 %v841, %v1145
        %v1147 = vpop.f32.mrb[0].mxu0
        %1148 = vmatprep.mubr.bf16.mxu0 0
        %1149 = vmatmul.mubr.bf16.gmra.mrb[0].mxu0 %v987
        %v1150 = vpop.f32.mrb[0].mxu0
        %v1151 = vadd.f32 %v846, %v1150
        %v1152 = vpop.f32.mrb[0].mxu0
        %v1153 = vpop.f32.mrb[0].mxu0
        %v1154 = vadd.f32 %v849, %v1153
        %v1155 = vpop.f32.mrb[0].mxu0
        %1156 = vmatprep.mubr.bf16.mxu0 0
        %1157 = vmatmul.mubr.bf16.gmra.mrb[0].mxu0 %v988
        %v1158 = vpop.f32.mrb[0].mxu0
        %v1159 = vadd.f32 %v854, %v1158
        %v1160 = vpop.f32.mrb[0].mxu0
        %v1161 = vpop.f32.mrb[0].mxu0
        %v1162 = vadd.f32 %v857, %v1161
        %v1163 = vpop.f32.mrb[0].mxu0
        %1164 = vmatprep.mubr.bf16.mxu0 0
        %1165 = vmatmul.mubr.bf16.gmra.mrb[0].mxu0 %v989
        %v1166 = vpop.f32.mrb[0].mxu0
        %v1167 = vadd.f32 %v862, %v1166
        %v1168 = vpop.f32.mrb[0].mxu0
        %v1169 = vpop.f32.mrb[0].mxu0
        %v1170 = vadd.f32 %v865, %v1169
        %v1171 = vpop.f32.mrb[0].mxu0
        %1172 = vmatprep.mubr.bf16.mxu0 0
        %1173 = vmatmul.mubr.bf16.gmra.mrb[0].mxu0 %v990
        %v1174 = vpop.f32.mrb[0].mxu0
        %v1175 = vadd.f32 %v870, %v1174
        %v1176 = vpop.f32.mrb[0].mxu0
        %v1177 = vpop.f32.mrb[0].mxu0
        %v1178 = vadd.f32 %v873, %v1177
        %v1179 = vpop.f32.mrb[0].mxu0
        %1180 = vmatprep.mubr.bf16.mxu0 0
        %1181 = vmatmul.mubr.bf16.gmra.mrb[0].mxu0 %v991
        %v1182 = vpop.f32.mrb[0].mxu0
        %v1183 = vadd.f32 %v878, %v1182
        %v1184 = vpop.f32.mrb[0].mxu0
        %v1185 = vpop.f32.mrb[0].mxu0
        %v1186 = vadd.f32 %v881, %v1185
        %v1187 = vpop.f32.mrb[0].mxu0
        %1188 = vmatprep.mubr.bf16.mxu0 0
        %1189 = vmatmul.mubr.bf16.gmra.mrb[0].mxu0 %v992
        %v1190 = vpop.f32.mrb[0].mxu0
        %v1191 = vadd.f32 %v886, %v1190
        %v1192 = vpop.f32.mrb[0].mxu0
        %v1193 = vpop.f32.mrb[0].mxu0
        %v1194 = vadd.f32 %v889, %v1193
        %v1195 = vpop.f32.mrb[0].mxu0
        %1196 = vmatprep.mubr.bf16.mxu0 0
        %1197 = vmatmul.mubr.bf16.gmra.mrb[0].mxu0 %v993
        %v1198 = vpop.f32.mrb[0].mxu0
        %v1199 = vadd.f32 %v894, %v1198
        %v1200 = vpop.f32.mrb[0].mxu0
        %v1201 = vpop.f32.mrb[0].mxu0
        %v1202 = vadd.f32 %v897, %v1201
        %v1203 = vpop.f32.mrb[0].mxu0
        %1204 = vmatprep.mubr.bf16.mxu0 0
        %1205 = vmatmul.mubr.bf16.gmra.mrb[0].mxu0 %v994
        %v1206 = vpop.f32.mrb[0].mxu0
        %v1207 = vadd.f32 %v902, %v1206
        %v1208 = vpop.f32.mrb[0].mxu0
        %v1209 = vpop.f32.mrb[0].mxu0
        %v1210 = vadd.f32 %v905, %v1209
        %v1211 = vpop.f32.mrb[0].mxu0
        %1212 = vmatprep.mubr.bf16.mxu0 0
        %1213 = vmatmul.mubr.bf16.gmra.mrb[0].mxu0 %v995
        %v1214 = vpop.f32.mrb[0].mxu0
        %v1215 = vadd.f32 %v910, %v1214
        %v1216 = vpop.f32.mrb[0].mxu0
        %v1217 = vpop.f32.mrb[0].mxu0
        %v1218 = vadd.f32 %v913, %v1217
        %v1219 = vpop.f32.mrb[0].mxu0
        %1220 = vdwg.mxu0
        %vm1237 = vcmask 1042432
        %vm1238 = vcmask 1046532
        %vm1239 = vmor %vm1237, %vm1238
        %v1240 = vrot.slane %v169, 5
        %v1241 = vrot.slane %v1240, 4
        %v1242 = vrot.slane %v170, 5
        %v1243 = vsel %vm1239, %v1241, %v1242
        %v1244 = vrot.slane %v1242, 4
        %v1245 = vrot.slane %v171, 5
        %v1246 = vsel %vm1239, %v1244, %v1245
        %v1247 = vrot.slane %v172, 5
        %v1248 = vrot.slane %v1247, 4
        %v1249 = vrot.slane %v173, 5
        %v1250 = vsel %vm1239, %v1248, %v1249
        %v1251 = vrot.slane %v1249, 4
        %v1252 = vrot.slane %v174, 5
        %v1253 = vsel %vm1239, %v1251, %v1252
        %v1254 = vrot.slane %v175, 5
        %v1255 = vrot.slane %v1254, 4
        %v1256 = vrot.slane %v176, 5
        %v1257 = vsel %vm1239, %v1255, %v1256
        %v1258 = vrot.slane %v1256, 4
        %v1259 = vrot.slane %v177, 5
        %v1260 = vsel %vm1239, %v1258, %v1259
        %v1261 = vrot.slane %v178, 5
        %v1262 = vrot.slane %v1261, 4
        %v1263 = vrot.slane %v179, 5
        %v1264 = vsel %vm1239, %v1262, %v1263
        %v1265 = vrot.slane %v1263, 4
        %v1266 = vrot.slane %v180, 5
        %v1267 = vsel %vm1239, %v1265, %v1266
        %v1268 = vrot.slane %v181, 5
        %v1269 = vrot.slane %v1268, 4
        %v1270 = vrot.slane %v182, 5
        %v1271 = vsel %vm1239, %v1269, %v1270
        %v1272 = vrot.slane %v1270, 4
        %v1273 = vrot.slane %v183, 5
        %v1274 = vsel %vm1239, %v1272, %v1273
        %v1275 = vrot.slane %v184, 5
        %v1276 = vrot.slane %v1275, 4
        %v1277 = vrot.slane %v185, 5
        %v1278 = vsel %vm1239, %v1276, %v1277
        %v1279 = vrot.slane %v1277, 4
        %v1280 = vrot.slane %v186, 5
        %v1281 = vsel %vm1239, %v1279, %v1280
        %v1282 = vrot.slane %v187, 5
        %v1283 = vrot.slane %v1282, 4
        %v1284 = vrot.slane %v188, 5
        %v1285 = vsel %vm1239, %v1283, %v1284
        %v1286 = vrot.slane %v1284, 4
        %v1287 = vrot.slane %v189, 5
        %v1288 = vsel %vm1239, %v1286, %v1287
        %v1289 = vrot.slane %v190, 5
        %v1290 = vrot.slane %v1289, 4
        %v1291 = vrot.slane %v191, 5
        %v1292 = vsel %vm1239, %v1290, %v1291
        %v1293 = vrot.slane %v1291, 4
        %v1294 = vrot.slane %v192, 5
        %v1295 = vsel %vm1239, %v1293, %v1294
        %v1296 = vrot.slane %v193, 5
        %v1297 = vrot.slane %v1296, 4
        %v1298 = vrot.slane %v194, 5
        %v1299 = vsel %vm1239, %v1297, %v1298
        %v1300 = vrot.slane %v1298, 4
        %v1301 = vrot.slane %v195, 5
        %v1302 = vsel %vm1239, %v1300, %v1301
        %v1303 = vrot.slane %v196, 5
        %v1304 = vrot.slane %v1303, 4
        %v1305 = vrot.slane %v197, 5
        %v1306 = vsel %vm1239, %v1304, %v1305
        %v1307 = vrot.slane %v1305, 4
        %v1308 = vrot.slane %v198, 5
        %v1309 = vsel %vm1239, %v1307, %v1308
        %v1310 = vrot.slane %v199, 5
        %v1311 = vrot.slane %v1310, 4
        %v1312 = vrot.slane %v200, 5
        %v1313 = vsel %vm1239, %v1311, %v1312
        %v1314 = vrot.slane %v1312, 4
        %v1315 = vrot.slane %v201, 5
        %v1316 = vsel %vm1239, %v1314, %v1315
        %v1317 = vrot.slane %v202, 5
        %v1318 = vrot.slane %v1317, 4
        %v1319 = vrot.slane %v203, 5
        %v1320 = vsel %vm1239, %v1318, %v1319
        %v1321 = vrot.slane %v1319, 4
        %v1322 = vrot.slane %v204, 5
        %v1323 = vsel %vm1239, %v1321, %v1322
        %v1324 = vrot.slane %v205, 5
        %v1325 = vrot.slane %v1324, 4
        %v1326 = vrot.slane %v206, 5
        %v1327 = vsel %vm1239, %v1325, %v1326
        %v1328 = vrot.slane %v1326, 4
        %v1329 = vrot.slane %v207, 5
        %v1330 = vsel %vm1239, %v1328, %v1329
        %v1331 = vrot.slane %v208, 5
        %v1332 = vrot.slane %v1331, 4
        %v1333 = vrot.slane %v209, 5
        %v1334 = vsel %vm1239, %v1332, %v1333
        %v1335 = vrot.slane %v1333, 4
        %v1336 = vrot.slane %v210, 5
        %v1337 = vsel %vm1239, %v1335, %v1336
        %v1338 = vrot.slane %v211, 5
        %v1339 = vrot.slane %v1338, 4
        %v1340 = vrot.slane %v212, 5
        %v1341 = vsel %vm1239, %v1339, %v1340
        %v1342 = vrot.slane %v1340, 4
        %v1343 = vrot.slane %v213, 5
        %v1344 = vsel %vm1239, %v1342, %v1343
        %v1345 = vrot.slane %v214, 5
        %v1346 = vrot.slane %v1345, 4
        %v1347 = vrot.slane %v215, 5
        %v1348 = vsel %vm1239, %v1346, %v1347
        %v1349 = vrot.slane %v1347, 4
        %v1350 = vrot.slane %v216, 5
        %v1351 = vsel %vm1239, %v1349, %v1350
        %s1352 = scalar_lea.vmem %s1, 128
        %v1353 = vld [vmem:[%s1352] sm:$0xf]
        %v1354 = vld [vmem:[%s1352 + $0x4] sm:$0xf]
        %v1355 = vld [vmem:[%s1352 + $0x8] sm:$0xf]
        %v1356 = vld [vmem:[%s1352 + $0xc] sm:$0xf]
        %v1357 = vld [vmem:[%s1352 + $0x10] sm:$0xf]
        %v1358 = vld [vmem:[%s1352 + $0x14] sm:$0xf]
        %v1359 = vld [vmem:[%s1352 + $0x18] sm:$0xf]
        %v1360 = vld [vmem:[%s1352 + $0x1c] sm:$0xf]
        %v1361 = vld [vmem:[%s1352 + $0x20] sm:$0xf]
        %v1362 = vld [vmem:[%s1352 + $0x24] sm:$0xf]
        %v1363 = vld [vmem:[%s1352 + $0x28] sm:$0xf]
        %v1364 = vld [vmem:[%s1352 + $0x2c] sm:$0xf]
        %v1365 = vld [vmem:[%s1352 + $0x30] sm:$0xf]
        %v1366 = vld [vmem:[%s1352 + $0x34] sm:$0xf]
        %v1367 = vld [vmem:[%s1352 + $0x38] sm:$0xf]
        %v1368 = vld [vmem:[%s1352 + $0x3c] sm:$0xf]
        %v1369 = vunpack.c.l.b16 %v1243
        %v1370 = vunpack.c.l.b16 %v1246
        %v1371 = vunpack.c.l.b16 %v1250
        %v1372 = vunpack.c.l.b16 %v1253
        %v1373 = vunpack.c.l.b16 %v1257
        %v1374 = vunpack.c.l.b16 %v1260
        %v1375 = vunpack.c.l.b16 %v1264
        %v1376 = vunpack.c.l.b16 %v1267
        %v1377 = vunpack.c.l.b16 %v1271
        %v1378 = vunpack.c.l.b16 %v1274
        %v1379 = vunpack.c.l.b16 %v1278
        %v1380 = vunpack.c.l.b16 %v1281
        %v1381 = vunpack.c.l.b16 %v1285
        %v1382 = vunpack.c.l.b16 %v1288
        %v1383 = vunpack.c.l.b16 %v1292
        %v1384 = vunpack.c.l.b16 %v1295
        %v1385 = vunpack.c.l.b16 %v1299
        %v1386 = vunpack.c.l.b16 %v1302
        %v1387 = vunpack.c.l.b16 %v1306
        %v1388 = vunpack.c.l.b16 %v1309
        %v1389 = vunpack.c.l.b16 %v1313
        %v1390 = vunpack.c.l.b16 %v1316
        %v1391 = vunpack.c.l.b16 %v1320
        %v1392 = vunpack.c.l.b16 %v1323
        %v1393 = vunpack.c.l.b16 %v1327
        %v1394 = vunpack.c.l.b16 %v1330
        %v1395 = vunpack.c.l.b16 %v1334
        %v1396 = vunpack.c.l.b16 %v1337
        %v1397 = vunpack.c.l.b16 %v1341
        %v1398 = vunpack.c.l.b16 %v1344
        %v1399 = vunpack.c.l.b16 %v1348
        %v1400 = vunpack.c.l.b16 %v1351
        %v1401 = vpack.c.b16 %v1370, %v1369
        %v1402 = vpack.c.b16 %v1372, %v1371
        %v1403 = vpack.c.b16 %v1374, %v1373
        %v1404 = vpack.c.b16 %v1376, %v1375
        %v1405 = vpack.c.b16 %v1378, %v1377
        %v1406 = vpack.c.b16 %v1380, %v1379
        %v1407 = vpack.c.b16 %v1382, %v1381
        %v1408 = vpack.c.b16 %v1384, %v1383
        %v1409 = vpack.c.b16 %v1386, %v1385
        %v1410 = vpack.c.b16 %v1388, %v1387
        %v1411 = vpack.c.b16 %v1390, %v1389
        %v1412 = vpack.c.b16 %v1392, %v1391
        %v1413 = vpack.c.b16 %v1394, %v1393
        %v1414 = vpack.c.b16 %v1396, %v1395
        %v1415 = vpack.c.b16 %v1398, %v1397
        %v1416 = vpack.c.b16 %v1400, %v1399
        %v1449 = vunpack.c.l.b16 %v1353
        %v1450 = vunpack.c.l.b16 %v1354
        %v1451 = vunpack.c.l.b16 %v1355
        %v1452 = vunpack.c.l.b16 %v1356
        %v1453 = vunpack.c.l.b16 %v1357
        %v1454 = vunpack.c.l.b16 %v1358
        %v1455 = vunpack.c.l.b16 %v1359
        %v1456 = vunpack.c.l.b16 %v1360
        %v1457 = vunpack.c.l.b16 %v1361
        %v1458 = vunpack.c.l.b16 %v1362
        %v1459 = vunpack.c.l.b16 %v1363
        %v1460 = vunpack.c.l.b16 %v1364
        %v1461 = vunpack.c.l.b16 %v1365
        %v1462 = vunpack.c.l.b16 %v1366
        %v1463 = vunpack.c.l.b16 %v1367
        %v1464 = vunpack.c.l.b16 %v1368
        %v1465 = vpack.c.b16 %v1450, %v1449
        %v1466 = vpack.c.b16 %v1452, %v1451
        %v1467 = vpack.c.b16 %v1454, %v1453
        %v1468 = vpack.c.b16 %v1456, %v1455
        %v1469 = vpack.c.b16 %v1458, %v1457
        %v1470 = vpack.c.b16 %v1460, %v1459
        %v1471 = vpack.c.b16 %v1462, %v1461
        %v1472 = vpack.c.b16 %v1464, %v1463
        %1481 = vmatprep.subr.bf16.mxu0 0
        %1482 = vmatpush1.bf16.msra.mxu0 %v1465
        %1483 = vmatprep.subr.bf16.mxu0 0
        %1484 = vmatpush1.bf16.msra.mxu0 %v1466
        %1485 = vmatprep.subr.bf16.mxu0 0
        %1486 = vmatpush1.bf16.msra.mxu0 %v1467
        %1487 = vmatprep.subr.bf16.mxu0 0
        %1488 = vmatpush1.bf16.msra.mxu0 %v1468
        %1489 = vmatprep.subr.bf16.mxu0 0
        %1490 = vmatpush1.bf16.msra.mxu0 %v1469
        %1491 = vmatprep.subr.bf16.mxu0 0
        %1492 = vmatpush1.bf16.msra.mxu0 %v1470
        %1493 = vmatprep.subr.bf16.mxu0 0
        %1494 = vmatpush1.bf16.msra.mxu0 %v1471
        %1495 = vmatprep.subr.bf16.mxu0 0
        %1496 = vmatpush1.bf16.msra.mxu0 %v1472
        %1497 = vmatprep.subr.bf16.mxu0 0
        %1498 = vmatpush1.bf16.msra.mxu0 0
        %1499 = vmatprep.subr.bf16.mxu0 0
        %1500 = vmatpush1.bf16.msra.mxu0 0
        %1501 = vmatprep.subr.bf16.mxu0 0
        %1502 = vmatpush1.bf16.msra.mxu0 0
        %1503 = vmatprep.subr.bf16.mxu0 0
        %1504 = vmatpush1.bf16.msra.mxu0 0
        %1505 = vmatprep.subr.bf16.mxu0 0
        %1506 = vmatpush1.bf16.msra.mxu0 0
        %1507 = vmatprep.subr.bf16.mxu0 0
        %1508 = vmatpush1.bf16.msra.mxu0 0
        %1509 = vmatprep.subr.bf16.mxu0 0
        %1510 = vmatpush1.bf16.msra.mxu0 0
        %1511 = vmatprep.subr.bf16.mxu0 0
        %1512 = vmatpush1.bf16.msra.mxu0 0
        %1513 = vmatprep.mubr.bf16.mxu0 0
        %1514 = vmatmul.mubr.bf16.gmra.mrb[0].mxu0 %v1401
        %v1515 = vpop.f32.mrb[0].mxu0
        %v1516 = vadd.f32 0.0, %v1515
        %v1517 = vpop.f32.mrb[0].mxu0
        %v1518 = vpop.f32.mrb[0].mxu0
        %v1519 = vadd.f32 0.0, %v1518
        %v1520 = vpop.f32.mrb[0].mxu0
        %1521 = vmatprep.mubr.bf16.mxu0 0
        %1522 = vmatmul.mubr.bf16.gmra.mrb[0].mxu0 %v1402
        %v1523 = vpop.f32.mrb[0].mxu0
        %v1524 = vadd.f32 0.0, %v1523
        %v1525 = vpop.f32.mrb[0].mxu0
        %v1526 = vpop.f32.mrb[0].mxu0
        %v1527 = vadd.f32 0.0, %v1526
        %v1528 = vpop.f32.mrb[0].mxu0
        %1529 = vmatprep.mubr.bf16.mxu0 0
        %1530 = vmatmul.mubr.bf16.gmra.mrb[0].mxu0 %v1403
        %v1531 = vpop.f32.mrb[0].mxu0
        %v1532 = vadd.f32 0.0, %v1531
        %v1533 = vpop.f32.mrb[0].mxu0
        %v1534 = vpop.f32.mrb[0].mxu0
        %v1535 = vadd.f32 0.0, %v1534
        %v1536 = vpop.f32.mrb[0].mxu0
        %1537 = vmatprep.mubr.bf16.mxu0 0
        %1538 = vmatmul.mubr.bf16.gmra.mrb[0].mxu0 %v1404
        %v1539 = vpop.f32.mrb[0].mxu0
        %v1540 = vadd.f32 0.0, %v1539
        %v1541 = vpop.f32.mrb[0].mxu0
        %v1542 = vpop.f32.mrb[0].mxu0
        %v1543 = vadd.f32 0.0, %v1542
        %v1544 = vpop.f32.mrb[0].mxu0
        %1545 = vmatprep.mubr.bf16.mxu0 0
        %1546 = vmatmul.mubr.bf16.gmra.mrb[0].mxu0 %v1405
        %v1547 = vpop.f32.mrb[0].mxu0
        %v1548 = vadd.f32 0.0, %v1547
        %v1549 = vpop.f32.mrb[0].mxu0
        %v1550 = vpop.f32.mrb[0].mxu0
        %v1551 = vadd.f32 0.0, %v1550
        %v1552 = vpop.f32.mrb[0].mxu0
        %1553 = vmatprep.mubr.bf16.mxu0 0
        %1554 = vmatmul.mubr.bf16.gmra.mrb[0].mxu0 %v1406
        %v1555 = vpop.f32.mrb[0].mxu0
        %v1556 = vadd.f32 0.0, %v1555
        %v1557 = vpop.f32.mrb[0].mxu0
        %v1558 = vpop.f32.mrb[0].mxu0
        %v1559 = vadd.f32 0.0, %v1558
        %v1560 = vpop.f32.mrb[0].mxu0
        %1561 = vmatprep.mubr.bf16.mxu0 0
        %1562 = vmatmul.mubr.bf16.gmra.mrb[0].mxu0 %v1407
        %v1563 = vpop.f32.mrb[0].mxu0
        %v1564 = vadd.f32 0.0, %v1563
        %v1565 = vpop.f32.mrb[0].mxu0
        %v1566 = vpop.f32.mrb[0].mxu0
        %v1567 = vadd.f32 0.0, %v1566
        %v1568 = vpop.f32.mrb[0].mxu0
        %1569 = vmatprep.mubr.bf16.mxu0 0
        %1570 = vmatmul.mubr.bf16.gmra.mrb[0].mxu0 %v1408
        %v1571 = vpop.f32.mrb[0].mxu0
        %v1572 = vadd.f32 0.0, %v1571
        %v1573 = vpop.f32.mrb[0].mxu0
        %v1574 = vpop.f32.mrb[0].mxu0
        %v1575 = vadd.f32 0.0, %v1574
        %v1576 = vpop.f32.mrb[0].mxu0
        %1577 = vmatprep.mubr.bf16.mxu0 0
        %1578 = vmatmul.mubr.bf16.gmra.mrb[0].mxu0 %v1409
        %v1579 = vpop.f32.mrb[0].mxu0
        %v1580 = vadd.f32 0.0, %v1579
        %v1581 = vpop.f32.mrb[0].mxu0
        %v1582 = vpop.f32.mrb[0].mxu0
        %v1583 = vadd.f32 0.0, %v1582
        %v1584 = vpop.f32.mrb[0].mxu0
        %1585 = vmatprep.mubr.bf16.mxu0 0
        %1586 = vmatmul.mubr.bf16.gmra.mrb[0].mxu0 %v1410
        %v1587 = vpop.f32.mrb[0].mxu0
        %v1588 = vadd.f32 0.0, %v1587
        %v1589 = vpop.f32.mrb[0].mxu0
        %v1590 = vpop.f32.mrb[0].mxu0
        %v1591 = vadd.f32 0.0, %v1590
        %v1592 = vpop.f32.mrb[0].mxu0
        %1593 = vmatprep.mubr.bf16.mxu0 0
        %1594 = vmatmul.mubr.bf16.gmra.mrb[0].mxu0 %v1411
        %v1595 = vpop.f32.mrb[0].mxu0
        %v1596 = vadd.f32 0.0, %v1595
        %v1597 = vpop.f32.mrb[0].mxu0
        %v1598 = vpop.f32.mrb[0].mxu0
        %v1599 = vadd.f32 0.0, %v1598
        %v1600 = vpop.f32.mrb[0].mxu0
        %1601 = vmatprep.mubr.bf16.mxu0 0
        %1602 = vmatmul.mubr.bf16.gmra.mrb[0].mxu0 %v1412
        %v1603 = vpop.f32.mrb[0].mxu0
        %v1604 = vadd.f32 0.0, %v1603
        %v1605 = vpop.f32.mrb[0].mxu0
        %v1606 = vpop.f32.mrb[0].mxu0
        %v1607 = vadd.f32 0.0, %v1606
        %v1608 = vpop.f32.mrb[0].mxu0
        %1609 = vmatprep.mubr.bf16.mxu0 0
        %1610 = vmatmul.mubr.bf16.gmra.mrb[0].mxu0 %v1413
        %v1611 = vpop.f32.mrb[0].mxu0
        %v1612 = vadd.f32 0.0, %v1611
        %v1613 = vpop.f32.mrb[0].mxu0
        %v1614 = vpop.f32.mrb[0].mxu0
        %v1615 = vadd.f32 0.0, %v1614
        %v1616 = vpop.f32.mrb[0].mxu0
        %1617 = vmatprep.mubr.bf16.mxu0 0
        %1618 = vmatmul.mubr.bf16.gmra.mrb[0].mxu0 %v1414
        %v1619 = vpop.f32.mrb[0].mxu0
        %v1620 = vadd.f32 0.0, %v1619
        %v1621 = vpop.f32.mrb[0].mxu0
        %v1622 = vpop.f32.mrb[0].mxu0
        %v1623 = vadd.f32 0.0, %v1622
        %v1624 = vpop.f32.mrb[0].mxu0
        %1625 = vmatprep.mubr.bf16.mxu0 0
        %1626 = vmatmul.mubr.bf16.gmra.mrb[0].mxu0 %v1415
        %v1627 = vpop.f32.mrb[0].mxu0
        %v1628 = vadd.f32 0.0, %v1627
        %v1629 = vpop.f32.mrb[0].mxu0
        %v1630 = vpop.f32.mrb[0].mxu0
        %v1631 = vadd.f32 0.0, %v1630
        %v1632 = vpop.f32.mrb[0].mxu0
        %1633 = vmatprep.mubr.bf16.mxu0 0
        %1634 = vmatmul.mubr.bf16.gmra.mrb[0].mxu0 %v1416
        %v1635 = vpop.f32.mrb[0].mxu0
        %v1636 = vadd.f32 0.0, %v1635
        %v1637 = vpop.f32.mrb[0].mxu0
        %v1638 = vpop.f32.mrb[0].mxu0
        %v1639 = vadd.f32 0.0, %v1638
        %v1640 = vpop.f32.mrb[0].mxu0
        %1641 = vdwg.mxu0
        %v1642 = vadd.f32 %v1095, %v1516
        %v1643 = vadd.f32 %v1098, %v1519
        %v1644 = vadd.f32 %v1103, %v1524
        %v1645 = vadd.f32 %v1106, %v1527
        %v1646 = vadd.f32 %v1111, %v1532
        %v1647 = vadd.f32 %v1114, %v1535
        %v1648 = vadd.f32 %v1119, %v1540
        %v1649 = vadd.f32 %v1122, %v1543
        %v1650 = vadd.f32 %v1127, %v1548
        %v1651 = vadd.f32 %v1130, %v1551
        %v1652 = vadd.f32 %v1135, %v1556
        %v1653 = vadd.f32 %v1138, %v1559
        %v1654 = vadd.f32 %v1143, %v1564
        %v1655 = vadd.f32 %v1146, %v1567
        %v1656 = vadd.f32 %v1151, %v1572
        %v1657 = vadd.f32 %v1154, %v1575
        %v1658 = vadd.f32 %v1159, %v1580
        %v1659 = vadd.f32 %v1162, %v1583
        %v1660 = vadd.f32 %v1167, %v1588
        %v1661 = vadd.f32 %v1170, %v1591
        %v1662 = vadd.f32 %v1175, %v1596
        %v1663 = vadd.f32 %v1178, %v1599
        %v1664 = vadd.f32 %v1183, %v1604
        %v1665 = vadd.f32 %v1186, %v1607
        %v1666 = vadd.f32 %v1191, %v1612
        %v1667 = vadd.f32 %v1194, %v1615
        %v1668 = vadd.f32 %v1199, %v1620
        %v1669 = vadd.f32 %v1202, %v1623
        %v1670 = vadd.f32 %v1207, %v1628
        %v1671 = vadd.f32 %v1210, %v1631
        %v1672 = vadd.f32 %v1215, %v1636
        %v1673 = vadd.f32 %v1218, %v1639
        %s1674 = scalar_lea.vmem %s1, 192
        %v1675 = vld [vmem:[%s1674] sm:$0xf]
        %v1676 = vld [vmem:[%s1674 + $0x4] sm:$0xf]
        %v1677 = vld [vmem:[%s1674 + $0x8] sm:$0xf]
        %v1678 = vld [vmem:[%s1674 + $0xc] sm:$0xf]
        %v1679 = vld [vmem:[%s1674 + $0x10] sm:$0xf]
        %v1680 = vld [vmem:[%s1674 + $0x14] sm:$0xf]
        %v1681 = vld [vmem:[%s1674 + $0x18] sm:$0xf]
        %v1682 = vld [vmem:[%s1674 + $0x1c] sm:$0xf]
        %v1683 = vld [vmem:[%s1674 + $0x20] sm:$0xf]
        %v1684 = vld [vmem:[%s1674 + $0x24] sm:$0xf]
        %v1685 = vld [vmem:[%s1674 + $0x28] sm:$0xf]
        %v1686 = vld [vmem:[%s1674 + $0x2c] sm:$0xf]
        %v1687 = vld [vmem:[%s1674 + $0x30] sm:$0xf]
        %v1688 = vld [vmem:[%s1674 + $0x34] sm:$0xf]
        %v1689 = vld [vmem:[%s1674 + $0x38] sm:$0xf]
        %v1690 = vld [vmem:[%s1674 + $0x3c] sm:$0xf]
        %v1693 = vunpack.c.l.b16 %v217
        %v1694 = vunpack.c.l.b16 %v218
        %v1695 = vpack.c.b16 %v1694, %v1693
        %v1713 = vunpack.c.l.b16 %v1675
        %v1714 = vunpack.c.l.b16 %v1676
        %v1715 = vunpack.c.l.b16 %v1677
        %v1716 = vunpack.c.l.b16 %v1678
        %v1717 = vunpack.c.l.b16 %v1679
        %v1718 = vunpack.c.l.b16 %v1680
        %v1719 = vunpack.c.l.b16 %v1681
        %v1720 = vunpack.c.l.b16 %v1682
        %v1721 = vunpack.c.l.b16 %v1683
        %v1722 = vunpack.c.l.b16 %v1684
        %v1723 = vunpack.c.l.b16 %v1685
        %v1724 = vunpack.c.l.b16 %v1686
        %v1725 = vunpack.c.l.b16 %v1687
        %v1726 = vunpack.c.l.b16 %v1688
        %v1727 = vunpack.c.l.b16 %v1689
        %v1728 = vunpack.c.l.b16 %v1690
        %v1729 = vpack.c.b16 %v1714, %v1713
        %v1730 = vpack.c.b16 %v1716, %v1715
        %v1731 = vpack.c.b16 %v1718, %v1717
        %v1732 = vpack.c.b16 %v1720, %v1719
        %v1733 = vpack.c.b16 %v1722, %v1721
        %v1734 = vpack.c.b16 %v1724, %v1723
        %v1735 = vpack.c.b16 %v1726, %v1725
        %v1736 = vpack.c.b16 %v1728, %v1727
        %1745 = vmatprep.subr.bf16.mxu0 0
        %1746 = vmatpush1.bf16.msra.mxu0 %v1729
        %1747 = vmatprep.subr.bf16.mxu0 0
        %1748 = vmatpush1.bf16.msra.mxu0 %v1730
        %1749 = vmatprep.subr.bf16.mxu0 0
        %1750 = vmatpush1.bf16.msra.mxu0 %v1731
        %1751 = vmatprep.subr.bf16.mxu0 0
        %1752 = vmatpush1.bf16.msra.mxu0 %v1732
        %1753 = vmatprep.subr.bf16.mxu0 0
        %1754 = vmatpush1.bf16.msra.mxu0 %v1733
        %1755 = vmatprep.subr.bf16.mxu0 0
        %1756 = vmatpush1.bf16.msra.mxu0 %v1734
        %1757 = vmatprep.subr.bf16.mxu0 0
        %1758 = vmatpush1.bf16.msra.mxu0 %v1735
        %1759 = vmatprep.subr.bf16.mxu0 0
        %1760 = vmatpush1.bf16.msra.mxu0 %v1736
        %1761 = vmatprep.subr.bf16.mxu0 0
        %1762 = vmatpush1.bf16.msra.mxu0 0
        %1763 = vmatprep.subr.bf16.mxu0 0
        %1764 = vmatpush1.bf16.msra.mxu0 0
        %1765 = vmatprep.subr.bf16.mxu0 0
        %1766 = vmatpush1.bf16.msra.mxu0 0
        %1767 = vmatprep.subr.bf16.mxu0 0
        %1768 = vmatpush1.bf16.msra.mxu0 0
        %1769 = vmatprep.subr.bf16.mxu0 0
        %1770 = vmatpush1.bf16.msra.mxu0 0
        %1771 = vmatprep.subr.bf16.mxu0 0
        %1772 = vmatpush1.bf16.msra.mxu0 0
        %1773 = vmatprep.subr.bf16.mxu0 0
        %1774 = vmatpush1.bf16.msra.mxu0 0
        %1775 = vmatprep.subr.bf16.mxu0 0
        %1776 = vmatpush1.bf16.msra.mxu0 0
        %1777 = vmatprep.mubr.bf16.mxu0 0
        %1778 = vmatmul.mubr.bf16.gmra.mrb[0].mxu0 %v981
        %v1779 = vpop.f32.mrb[0].mxu0
        %v1780 = vadd.f32 0.0, %v1779
        %v1781 = vpop.f32.mrb[0].mxu0
        %v1782 = vpop.f32.mrb[0].mxu0
        %v1783 = vadd.f32 0.0, %v1782
        %v1784 = vpop.f32.mrb[0].mxu0
        %1785 = vmatprep.mubr.bf16.mxu0 0
        %1786 = vmatmul.mubr.bf16.gmra.mrb[0].mxu0 %v982
        %v1787 = vpop.f32.mrb[0].mxu0
        %v1788 = vadd.f32 0.0, %v1787
        %v1789 = vpop.f32.mrb[0].mxu0
        %v1790 = vpop.f32.mrb[0].mxu0
        %v1791 = vadd.f32 0.0, %v1790
        %v1792 = vpop.f32.mrb[0].mxu0
        %1793 = vmatprep.mubr.bf16.mxu0 0
        %1794 = vmatmul.mubr.bf16.gmra.mrb[0].mxu0 %v983
        %v1795 = vpop.f32.mrb[0].mxu0
        %v1796 = vadd.f32 0.0, %v1795
        %v1797 = vpop.f32.mrb[0].mxu0
        %v1798 = vpop.f32.mrb[0].mxu0
        %v1799 = vadd.f32 0.0, %v1798
        %v1800 = vpop.f32.mrb[0].mxu0
        %1801 = vmatprep.mubr.bf16.mxu0 0
        %1802 = vmatmul.mubr.bf16.gmra.mrb[0].mxu0 %v984
        %v1803 = vpop.f32.mrb[0].mxu0
        %v1804 = vadd.f32 0.0, %v1803
        %v1805 = vpop.f32.mrb[0].mxu0
        %v1806 = vpop.f32.mrb[0].mxu0
        %v1807 = vadd.f32 0.0, %v1806
        %v1808 = vpop.f32.mrb[0].mxu0
        %1809 = vmatprep.mubr.bf16.mxu0 0
        %1810 = vmatmul.mubr.bf16.gmra.mrb[0].mxu0 %v985
        %v1811 = vpop.f32.mrb[0].mxu0
        %v1812 = vadd.f32 0.0, %v1811
        %v1813 = vpop.f32.mrb[0].mxu0
        %v1814 = vpop.f32.mrb[0].mxu0
        %v1815 = vadd.f32 0.0, %v1814
        %v1816 = vpop.f32.mrb[0].mxu0
        %1817 = vmatprep.mubr.bf16.mxu0 0
        %1818 = vmatmul.mubr.bf16.gmra.mrb[0].mxu0 %v986
        %v1819 = vpop.f32.mrb[0].mxu0
        %v1820 = vadd.f32 0.0, %v1819
        %v1821 = vpop.f32.mrb[0].mxu0
        %v1822 = vpop.f32.mrb[0].mxu0
        %v1823 = vadd.f32 0.0, %v1822
        %v1824 = vpop.f32.mrb[0].mxu0
        %1825 = vmatprep.mubr.bf16.mxu0 0
        %1826 = vmatmul.mubr.bf16.gmra.mrb[0].mxu0 %v987
        %v1827 = vpop.f32.mrb[0].mxu0
        %v1828 = vadd.f32 0.0, %v1827
        %v1829 = vpop.f32.mrb[0].mxu0
        %v1830 = vpop.f32.mrb[0].mxu0
        %v1831 = vadd.f32 0.0, %v1830
        %v1832 = vpop.f32.mrb[0].mxu0
        %1833 = vmatprep.mubr.bf16.mxu0 0
        %1834 = vmatmul.mubr.bf16.gmra.mrb[0].mxu0 %v988
        %v1835 = vpop.f32.mrb[0].mxu0
        %v1836 = vadd.f32 0.0, %v1835
        %v1837 = vpop.f32.mrb[0].mxu0
        %v1838 = vpop.f32.mrb[0].mxu0
        %v1839 = vadd.f32 0.0, %v1838
        %v1840 = vpop.f32.mrb[0].mxu0
        %1841 = vmatprep.mubr.bf16.mxu0 0
        %1842 = vmatmul.mubr.bf16.gmra.mrb[0].mxu0 %v989
        %v1843 = vpop.f32.mrb[0].mxu0
        %v1844 = vadd.f32 0.0, %v1843
        %v1845 = vpop.f32.mrb[0].mxu0
        %v1846 = vpop.f32.mrb[0].mxu0
        %v1847 = vadd.f32 0.0, %v1846
        %v1848 = vpop.f32.mrb[0].mxu0
        %1849 = vmatprep.mubr.bf16.mxu0 0
        %1850 = vmatmul.mubr.bf16.gmra.mrb[0].mxu0 %v990
        %v1851 = vpop.f32.mrb[0].mxu0
        %v1852 = vadd.f32 0.0, %v1851
        %v1853 = vpop.f32.mrb[0].mxu0
        %v1854 = vpop.f32.mrb[0].mxu0
        %v1855 = vadd.f32 0.0, %v1854
        %v1856 = vpop.f32.mrb[0].mxu0
        %1857 = vmatprep.mubr.bf16.mxu0 0
        %1858 = vmatmul.mubr.bf16.gmra.mrb[0].mxu0 %v991
        %v1859 = vpop.f32.mrb[0].mxu0
        %v1860 = vadd.f32 0.0, %v1859
        %v1861 = vpop.f32.mrb[0].mxu0
        %v1862 = vpop.f32.mrb[0].mxu0
        %v1863 = vadd.f32 0.0, %v1862
        %v1864 = vpop.f32.mrb[0].mxu0
        %1865 = vmatprep.mubr.bf16.mxu0 0
        %1866 = vmatmul.mubr.bf16.gmra.mrb[0].mxu0 %v992
        %v1867 = vpop.f32.mrb[0].mxu0
        %v1868 = vadd.f32 0.0, %v1867
        %v1869 = vpop.f32.mrb[0].mxu0
        %v1870 = vpop.f32.mrb[0].mxu0
        %v1871 = vadd.f32 0.0, %v1870
        %v1872 = vpop.f32.mrb[0].mxu0
        %1873 = vmatprep.mubr.bf16.mxu0 0
        %1874 = vmatmul.mubr.bf16.gmra.mrb[0].mxu0 %v993
        %v1875 = vpop.f32.mrb[0].mxu0
        %v1876 = vadd.f32 0.0, %v1875
        %v1877 = vpop.f32.mrb[0].mxu0
        %v1878 = vpop.f32.mrb[0].mxu0
        %v1879 = vadd.f32 0.0, %v1878
        %v1880 = vpop.f32.mrb[0].mxu0
        %1881 = vmatprep.mubr.bf16.mxu0 0
        %1882 = vmatmul.mubr.bf16.gmra.mrb[0].mxu0 %v994
        %v1883 = vpop.f32.mrb[0].mxu0
        %v1884 = vadd.f32 0.0, %v1883
        %v1885 = vpop.f32.mrb[0].mxu0
        %v1886 = vpop.f32.mrb[0].mxu0
        %v1887 = vadd.f32 0.0, %v1886
        %v1888 = vpop.f32.mrb[0].mxu0
        %1889 = vmatprep.mubr.bf16.mxu0 0
        %1890 = vmatmul.mubr.bf16.gmra.mrb[0].mxu0 %v995
        %v1891 = vpop.f32.mrb[0].mxu0
        %v1892 = vadd.f32 0.0, %v1891
        %v1893 = vpop.f32.mrb[0].mxu0
        %v1894 = vpop.f32.mrb[0].mxu0
        %v1895 = vadd.f32 0.0, %v1894
        %v1896 = vpop.f32.mrb[0].mxu0
        %1897 = vmatprep.mubr.bf16.mxu0 0
        %1898 = vmatmul.mubr.bf16.gmra.mrb[0].mxu0 %v1695
        %v1899 = vpop.f32.mrb[0].mxu0
        %v1900 = vadd.f32 0.0, %v1899
        %v1901 = vpop.f32.mrb[0].mxu0
        %v1902 = vpop.f32.mrb[0].mxu0
        %v1903 = vadd.f32 0.0, %v1902
        %v1904 = vpop.f32.mrb[0].mxu0
        %1905 = vdwg.mxu0
        %v1906 = vadd.f32 %v1642, %v1780
        %v1907 = vadd.f32 %v1643, %v1783
        %v1908 = vadd.f32 %v1644, %v1788
        %v1909 = vadd.f32 %v1645, %v1791
        %v1910 = vadd.f32 %v1646, %v1796
        %v1911 = vadd.f32 %v1647, %v1799
        %v1912 = vadd.f32 %v1648, %v1804
        %v1913 = vadd.f32 %v1649, %v1807
        %v1914 = vadd.f32 %v1650, %v1812
        %v1915 = vadd.f32 %v1651, %v1815
        %v1916 = vadd.f32 %v1652, %v1820
        %v1917 = vadd.f32 %v1653, %v1823
        %v1918 = vadd.f32 %v1654, %v1828
        %v1919 = vadd.f32 %v1655, %v1831
        %v1920 = vadd.f32 %v1656, %v1836
        %v1921 = vadd.f32 %v1657, %v1839
        %v1922 = vadd.f32 %v1658, %v1844
        %v1923 = vadd.f32 %v1659, %v1847
        %v1924 = vadd.f32 %v1660, %v1852
        %v1925 = vadd.f32 %v1661, %v1855
        %v1926 = vadd.f32 %v1662, %v1860
        %v1927 = vadd.f32 %v1663, %v1863
        %v1928 = vadd.f32 %v1664, %v1868
        %v1929 = vadd.f32 %v1665, %v1871
        %v1930 = vadd.f32 %v1666, %v1876
        %v1931 = vadd.f32 %v1667, %v1879
        %v1932 = vadd.f32 %v1668, %v1884
        %v1933 = vadd.f32 %v1669, %v1887
        %v1934 = vadd.f32 %v1670, %v1892
        %v1935 = vadd.f32 %v1671, %v1895
        %v1936 = vadd.f32 %v1672, %v1900
        %v1937 = vadd.f32 %v1673, %v1903
        %v1939 = vshrl.u32 %v217, 16
        %v1941 = vrot.slane %v1939, 4
        %v1942 = vshll.u32 %v217, 16
        %v1944 = vrot.slane %v1942, 5
        %v1945 = vor.u32 %v1941, %v1944
        %v1946 = vrot.slane %v1945, 4
        %v1948 = vshll.u32 %v218, 16
        %v1950 = vrot.slane %v1948, 5
        %v1951 = vsel %vm241, %v1946, %v1950
        %v1952 = vshrl.u32 %v218, 16
        %v1954 = vrot.slane %v1952, 4
        %v1955 = vor.u32 %v1954, %v1950
        %v1956 = vrot.slane %v1955, 4
        %v1958 = vshll.u32 %v219, 16
        %v1960 = vrot.slane %v1958, 5
        %v1961 = vsel %vm241, %v1956, %v1960
        %s1962 = scalar_lea.vmem %s1, 256
        %v1963 = vld [vmem:[%s1962] sm:$0xf]
        %v1964 = vld [vmem:[%s1962 + $0x4] sm:$0xf]
        %v1965 = vld [vmem:[%s1962 + $0x8] sm:$0xf]
        %v1966 = vld [vmem:[%s1962 + $0xc] sm:$0xf]
        %v1967 = vld [vmem:[%s1962 + $0x10] sm:$0xf]
        %v1968 = vld [vmem:[%s1962 + $0x14] sm:$0xf]
        %v1969 = vld [vmem:[%s1962 + $0x18] sm:$0xf]
        %v1970 = vld [vmem:[%s1962 + $0x1c] sm:$0xf]
        %v1971 = vld [vmem:[%s1962 + $0x20] sm:$0xf]
        %v1972 = vld [vmem:[%s1962 + $0x24] sm:$0xf]
        %v1973 = vld [vmem:[%s1962 + $0x28] sm:$0xf]
        %v1974 = vld [vmem:[%s1962 + $0x2c] sm:$0xf]
        %v1975 = vld [vmem:[%s1962 + $0x30] sm:$0xf]
        %v1976 = vld [vmem:[%s1962 + $0x34] sm:$0xf]
        %v1977 = vld [vmem:[%s1962 + $0x38] sm:$0xf]
        %v1978 = vld [vmem:[%s1962 + $0x3c] sm:$0xf]
        %v1979 = vunpack.c.l.b16 %v1951
        %v1980 = vunpack.c.l.b16 %v1961
        %v1981 = vpack.c.b16 %v1980, %v1979
        %v1999 = vunpack.c.l.b16 %v1963
        %v2000 = vunpack.c.l.b16 %v1964
        %v2001 = vunpack.c.l.b16 %v1965
        %v2002 = vunpack.c.l.b16 %v1966
        %v2003 = vunpack.c.l.b16 %v1967
        %v2004 = vunpack.c.l.b16 %v1968
        %v2005 = vunpack.c.l.b16 %v1969
        %v2006 = vunpack.c.l.b16 %v1970
        %v2007 = vunpack.c.l.b16 %v1971
        %v2008 = vunpack.c.l.b16 %v1972
        %v2009 = vunpack.c.l.b16 %v1973
        %v2010 = vunpack.c.l.b16 %v1974
        %v2011 = vunpack.c.l.b16 %v1975
        %v2012 = vunpack.c.l.b16 %v1976
        %v2013 = vunpack.c.l.b16 %v1977
        %v2014 = vunpack.c.l.b16 %v1978
        %v2015 = vpack.c.b16 %v2000, %v1999
        %v2016 = vpack.c.b16 %v2002, %v2001
        %v2017 = vpack.c.b16 %v2004, %v2003
        %v2018 = vpack.c.b16 %v2006, %v2005
        %v2019 = vpack.c.b16 %v2008, %v2007
        %v2020 = vpack.c.b16 %v2010, %v2009
        %v2021 = vpack.c.b16 %v2012, %v2011
        %v2022 = vpack.c.b16 %v2014, %v2013
        %2031 = vmatprep.subr.bf16.mxu0 0
        %2032 = vmatpush1.bf16.msra.mxu0 %v2015
        %2033 = vmatprep.subr.bf16.mxu0 0
        %2034 = vmatpush1.bf16.msra.mxu0 %v2016
        %2035 = vmatprep.subr.bf16.mxu0 0
        %2036 = vmatpush1.bf16.msra.mxu0 %v2017
        %2037 = vmatprep.subr.bf16.mxu0 0
        %2038 = vmatpush1.bf16.msra.mxu0 %v2018
        %2039 = vmatprep.subr.bf16.mxu0 0
        %2040 = vmatpush1.bf16.msra.mxu0 %v2019
        %2041 = vmatprep.subr.bf16.mxu0 0
        %2042 = vmatpush1.bf16.msra.mxu0 %v2020
        %2043 = vmatprep.subr.bf16.mxu0 0
        %2044 = vmatpush1.bf16.msra.mxu0 %v2021
        %2045 = vmatprep.subr.bf16.mxu0 0
        %2046 = vmatpush1.bf16.msra.mxu0 %v2022
        %2047 = vmatprep.subr.bf16.mxu0 0
        %2048 = vmatpush1.bf16.msra.mxu0 0
        %2049 = vmatprep.subr.bf16.mxu0 0
        %2050 = vmatpush1.bf16.msra.mxu0 0
        %2051 = vmatprep.subr.bf16.mxu0 0
        %2052 = vmatpush1.bf16.msra.mxu0 0
        %2053 = vmatprep.subr.bf16.mxu0 0
        %2054 = vmatpush1.bf16.msra.mxu0 0
        %2055 = vmatprep.subr.bf16.mxu0 0
        %2056 = vmatpush1.bf16.msra.mxu0 0
        %2057 = vmatprep.subr.bf16.mxu0 0
        %2058 = vmatpush1.bf16.msra.mxu0 0
        %2059 = vmatprep.subr.bf16.mxu0 0
        %2060 = vmatpush1.bf16.msra.mxu0 0
        %2061 = vmatprep.subr.bf16.mxu0 0
        %2062 = vmatpush1.bf16.msra.mxu0 0
        %2063 = vmatprep.mubr.bf16.mxu0 0
        %2064 = vmatmul.mubr.bf16.gmra.mrb[0].mxu0 %v676
        %v2065 = vpop.f32.mrb[0].mxu0
        %v2066 = vadd.f32 0.0, %v2065
        %v2067 = vpop.f32.mrb[0].mxu0
        %v2068 = vpop.f32.mrb[0].mxu0
        %v2069 = vadd.f32 0.0, %v2068
        %v2070 = vpop.f32.mrb[0].mxu0
        %2071 = vmatprep.mubr.bf16.mxu0 0
        %2072 = vmatmul.mubr.bf16.gmra.mrb[0].mxu0 %v677
        %v2073 = vpop.f32.mrb[0].mxu0
        %v2074 = vadd.f32 0.0, %v2073
        %v2075 = vpop.f32.mrb[0].mxu0
        %v2076 = vpop.f32.mrb[0].mxu0
        %v2077 = vadd.f32 0.0, %v2076
        %v2078 = vpop.f32.mrb[0].mxu0
        %2079 = vmatprep.mubr.bf16.mxu0 0
        %2080 = vmatmul.mubr.bf16.gmra.mrb[0].mxu0 %v678
        %v2081 = vpop.f32.mrb[0].mxu0
        %v2082 = vadd.f32 0.0, %v2081
        %v2083 = vpop.f32.mrb[0].mxu0
        %v2084 = vpop.f32.mrb[0].mxu0
        %v2085 = vadd.f32 0.0, %v2084
        %v2086 = vpop.f32.mrb[0].mxu0
        %2087 = vmatprep.mubr.bf16.mxu0 0
        %2088 = vmatmul.mubr.bf16.gmra.mrb[0].mxu0 %v679
        %v2089 = vpop.f32.mrb[0].mxu0
        %v2090 = vadd.f32 0.0, %v2089
        %v2091 = vpop.f32.mrb[0].mxu0
        %v2092 = vpop.f32.mrb[0].mxu0
        %v2093 = vadd.f32 0.0, %v2092
        %v2094 = vpop.f32.mrb[0].mxu0
        %2095 = vmatprep.mubr.bf16.mxu0 0
        %2096 = vmatmul.mubr.bf16.gmra.mrb[0].mxu0 %v680
        %v2097 = vpop.f32.mrb[0].mxu0
        %v2098 = vadd.f32 0.0, %v2097
        %v2099 = vpop.f32.mrb[0].mxu0
        %v2100 = vpop.f32.mrb[0].mxu0
        %v2101 = vadd.f32 0.0, %v2100
        %v2102 = vpop.f32.mrb[0].mxu0
        %2103 = vmatprep.mubr.bf16.mxu0 0
        %2104 = vmatmul.mubr.bf16.gmra.mrb[0].mxu0 %v681
        %v2105 = vpop.f32.mrb[0].mxu0
        %v2106 = vadd.f32 0.0, %v2105
        %v2107 = vpop.f32.mrb[0].mxu0
        %v2108 = vpop.f32.mrb[0].mxu0
        %v2109 = vadd.f32 0.0, %v2108
        %v2110 = vpop.f32.mrb[0].mxu0
        %2111 = vmatprep.mubr.bf16.mxu0 0
        %2112 = vmatmul.mubr.bf16.gmra.mrb[0].mxu0 %v682
        %v2113 = vpop.f32.mrb[0].mxu0
        %v2114 = vadd.f32 0.0, %v2113
        %v2115 = vpop.f32.mrb[0].mxu0
        %v2116 = vpop.f32.mrb[0].mxu0
        %v2117 = vadd.f32 0.0, %v2116
        %v2118 = vpop.f32.mrb[0].mxu0
        %2119 = vmatprep.mubr.bf16.mxu0 0
        %2120 = vmatmul.mubr.bf16.gmra.mrb[0].mxu0 %v683
        %v2121 = vpop.f32.mrb[0].mxu0
        %v2122 = vadd.f32 0.0, %v2121
        %v2123 = vpop.f32.mrb[0].mxu0
        %v2124 = vpop.f32.mrb[0].mxu0
        %v2125 = vadd.f32 0.0, %v2124
        %v2126 = vpop.f32.mrb[0].mxu0
        %2127 = vmatprep.mubr.bf16.mxu0 0
        %2128 = vmatmul.mubr.bf16.gmra.mrb[0].mxu0 %v684
        %v2129 = vpop.f32.mrb[0].mxu0
        %v2130 = vadd.f32 0.0, %v2129
        %v2131 = vpop.f32.mrb[0].mxu0
        %v2132 = vpop.f32.mrb[0].mxu0
        %v2133 = vadd.f32 0.0, %v2132
        %v2134 = vpop.f32.mrb[0].mxu0
        %2135 = vmatprep.mubr.bf16.mxu0 0
        %2136 = vmatmul.mubr.bf16.gmra.mrb[0].mxu0 %v685
        %v2137 = vpop.f32.mrb[0].mxu0
        %v2138 = vadd.f32 0.0, %v2137
        %v2139 = vpop.f32.mrb[0].mxu0
        %v2140 = vpop.f32.mrb[0].mxu0
        %v2141 = vadd.f32 0.0, %v2140
        %v2142 = vpop.f32.mrb[0].mxu0
        %2143 = vmatprep.mubr.bf16.mxu0 0
        %2144 = vmatmul.mubr.bf16.gmra.mrb[0].mxu0 %v686
        %v2145 = vpop.f32.mrb[0].mxu0
        %v2146 = vadd.f32 0.0, %v2145
        %v2147 = vpop.f32.mrb[0].mxu0
        %v2148 = vpop.f32.mrb[0].mxu0
        %v2149 = vadd.f32 0.0, %v2148
        %v2150 = vpop.f32.mrb[0].mxu0
        %2151 = vmatprep.mubr.bf16.mxu0 0
        %2152 = vmatmul.mubr.bf16.gmra.mrb[0].mxu0 %v687
        %v2153 = vpop.f32.mrb[0].mxu0
        %v2154 = vadd.f32 0.0, %v2153
        %v2155 = vpop.f32.mrb[0].mxu0
        %v2156 = vpop.f32.mrb[0].mxu0
        %v2157 = vadd.f32 0.0, %v2156
        %v2158 = vpop.f32.mrb[0].mxu0
        %2159 = vmatprep.mubr.bf16.mxu0 0
        %2160 = vmatmul.mubr.bf16.gmra.mrb[0].mxu0 %v688
        %v2161 = vpop.f32.mrb[0].mxu0
        %v2162 = vadd.f32 0.0, %v2161
        %v2163 = vpop.f32.mrb[0].mxu0
        %v2164 = vpop.f32.mrb[0].mxu0
        %v2165 = vadd.f32 0.0, %v2164
        %v2166 = vpop.f32.mrb[0].mxu0
        %2167 = vmatprep.mubr.bf16.mxu0 0
        %2168 = vmatmul.mubr.bf16.gmra.mrb[0].mxu0 %v689
        %v2169 = vpop.f32.mrb[0].mxu0
        %v2170 = vadd.f32 0.0, %v2169
        %v2171 = vpop.f32.mrb[0].mxu0
        %v2172 = vpop.f32.mrb[0].mxu0
        %v2173 = vadd.f32 0.0, %v2172
        %v2174 = vpop.f32.mrb[0].mxu0
        %2175 = vmatprep.mubr.bf16.mxu0 0
        %2176 = vmatmul.mubr.bf16.gmra.mrb[0].mxu0 %v690
        %v2177 = vpop.f32.mrb[0].mxu0
        %v2178 = vadd.f32 0.0, %v2177
        %v2179 = vpop.f32.mrb[0].mxu0
        %v2180 = vpop.f32.mrb[0].mxu0
        %v2181 = vadd.f32 0.0, %v2180
        %v2182 = vpop.f32.mrb[0].mxu0
        %2183 = vmatprep.mubr.bf16.mxu0 0
        %2184 = vmatmul.mubr.bf16.gmra.mrb[0].mxu0 %v1981
        %v2185 = vpop.f32.mrb[0].mxu0
        %v2186 = vadd.f32 0.0, %v2185
        %v2187 = vpop.f32.mrb[0].mxu0
        %v2188 = vpop.f32.mrb[0].mxu0
        %v2189 = vadd.f32 0.0, %v2188
        %v2190 = vpop.f32.mrb[0].mxu0
        %2191 = vdwg.mxu0
        %v2192 = vadd.f32 %v1906, %v2066
        %v2193 = vadd.f32 %v1907, %v2069
        %v2194 = vadd.f32 %v1908, %v2074
        %v2195 = vadd.f32 %v1909, %v2077
        %v2196 = vadd.f32 %v1910, %v2082
        %v2197 = vadd.f32 %v1911, %v2085
        %v2198 = vadd.f32 %v1912, %v2090
        %v2199 = vadd.f32 %v1913, %v2093
        %v2200 = vadd.f32 %v1914, %v2098
        %v2201 = vadd.f32 %v1915, %v2101
        %v2202 = vadd.f32 %v1916, %v2106
        %v2203 = vadd.f32 %v1917, %v2109
        %v2204 = vadd.f32 %v1918, %v2114
        %v2205 = vadd.f32 %v1919, %v2117
        %v2206 = vadd.f32 %v1920, %v2122
        %v2207 = vadd.f32 %v1921, %v2125
        %v2208 = vadd.f32 %v1922, %v2130
        %v2209 = vadd.f32 %v1923, %v2133
        %v2210 = vadd.f32 %v1924, %v2138
        %v2211 = vadd.f32 %v1925, %v2141
        %v2212 = vadd.f32 %v1926, %v2146
        %v2213 = vadd.f32 %v1927, %v2149
        %v2214 = vadd.f32 %v1928, %v2154
        %v2215 = vadd.f32 %v1929, %v2157
        %v2216 = vadd.f32 %v1930, %v2162
        %v2217 = vadd.f32 %v1931, %v2165
        %v2218 = vadd.f32 %v1932, %v2170
        %v2219 = vadd.f32 %v1933, %v2173
        %v2220 = vadd.f32 %v1934, %v2178
        %v2221 = vadd.f32 %v1935, %v2181
        %v2222 = vadd.f32 %v1936, %v2186
        %v2223 = vadd.f32 %v1937, %v2189
        %v2225 = vrot.slane %v217, 5
        %v2226 = vrot.slane %v2225, 4
        %v2227 = vrot.slane %v218, 5
        %v2228 = vsel %vm1239, %v2226, %v2227
        %v2229 = vrot.slane %v2227, 4
        %v2230 = vrot.slane %v219, 5
        %v2231 = vsel %vm1239, %v2229, %v2230
        %s2232 = scalar_lea.vmem %s1, 320
        %v2233 = vld [vmem:[%s2232] sm:$0xf]
        %v2234 = vld [vmem:[%s2232 + $0x4] sm:$0xf]
        %v2235 = vld [vmem:[%s2232 + $0x8] sm:$0xf]
        %v2236 = vld [vmem:[%s2232 + $0xc] sm:$0xf]
        %v2237 = vld [vmem:[%s2232 + $0x10] sm:$0xf]
        %v2238 = vld [vmem:[%s2232 + $0x14] sm:$0xf]
        %v2239 = vld [vmem:[%s2232 + $0x18] sm:$0xf]
        %v2240 = vld [vmem:[%s2232 + $0x1c] sm:$0xf]
        %v2241 = vld [vmem:[%s2232 + $0x20] sm:$0xf]
        %v2242 = vld [vmem:[%s2232 + $0x24] sm:$0xf]
        %v2243 = vld [vmem:[%s2232 + $0x28] sm:$0xf]
        %v2244 = vld [vmem:[%s2232 + $0x2c] sm:$0xf]
        %v2245 = vld [vmem:[%s2232 + $0x30] sm:$0xf]
        %v2246 = vld [vmem:[%s2232 + $0x34] sm:$0xf]
        %v2247 = vld [vmem:[%s2232 + $0x38] sm:$0xf]
        %v2248 = vld [vmem:[%s2232 + $0x3c] sm:$0xf]
        %v2249 = vunpack.c.l.b16 %v2228
        %v2250 = vunpack.c.l.b16 %v2231
        %v2251 = vpack.c.b16 %v2250, %v2249
        %v2269 = vunpack.c.l.b16 %v2233
        %v2270 = vunpack.c.l.b16 %v2234
        %v2271 = vunpack.c.l.b16 %v2235
        %v2272 = vunpack.c.l.b16 %v2236
        %v2273 = vunpack.c.l.b16 %v2237
        %v2274 = vunpack.c.l.b16 %v2238
        %v2275 = vunpack.c.l.b16 %v2239
        %v2276 = vunpack.c.l.b16 %v2240
        %v2277 = vunpack.c.l.b16 %v2241
        %v2278 = vunpack.c.l.b16 %v2242
        %v2279 = vunpack.c.l.b16 %v2243
        %v2280 = vunpack.c.l.b16 %v2244
        %v2281 = vunpack.c.l.b16 %v2245
        %v2282 = vunpack.c.l.b16 %v2246
        %v2283 = vunpack.c.l.b16 %v2247
        %v2284 = vunpack.c.l.b16 %v2248
        %v2285 = vpack.c.b16 %v2270, %v2269
        %v2286 = vpack.c.b16 %v2272, %v2271
        %v2287 = vpack.c.b16 %v2274, %v2273
        %v2288 = vpack.c.b16 %v2276, %v2275
        %v2289 = vpack.c.b16 %v2278, %v2277
        %v2290 = vpack.c.b16 %v2280, %v2279
        %v2291 = vpack.c.b16 %v2282, %v2281
        %v2292 = vpack.c.b16 %v2284, %v2283
        %2301 = vmatprep.subr.bf16.mxu0 0
        %2302 = vmatpush1.bf16.msra.mxu0 %v2285
        %2303 = vmatprep.subr.bf16.mxu0 0
        %2304 = vmatpush1.bf16.msra.mxu0 %v2286
        %2305 = vmatprep.subr.bf16.mxu0 0
        %2306 = vmatpush1.bf16.msra.mxu0 %v2287
        %2307 = vmatprep.subr.bf16.mxu0 0
        %2308 = vmatpush1.bf16.msra.mxu0 %v2288
        %2309 = vmatprep.subr.bf16.mxu0 0
        %2310 = vmatpush1.bf16.msra.mxu0 %v2289
        %2311 = vmatprep.subr.bf16.mxu0 0
        %2312 = vmatpush1.bf16.msra.mxu0 %v2290
        %2313 = vmatprep.subr.bf16.mxu0 0
        %2314 = vmatpush1.bf16.msra.mxu0 %v2291
        %2315 = vmatprep.subr.bf16.mxu0 0
        %2316 = vmatpush1.bf16.msra.mxu0 %v2292
        %2317 = vmatprep.subr.bf16.mxu0 0
        %2318 = vmatpush1.bf16.msra.mxu0 0
        %2319 = vmatprep.subr.bf16.mxu0 0
        %2320 = vmatpush1.bf16.msra.mxu0 0
        %2321 = vmatprep.subr.bf16.mxu0 0
        %2322 = vmatpush1.bf16.msra.mxu0 0
        %2323 = vmatprep.subr.bf16.mxu0 0
        %2324 = vmatpush1.bf16.msra.mxu0 0
        %2325 = vmatprep.subr.bf16.mxu0 0
        %2326 = vmatpush1.bf16.msra.mxu0 0
        %2327 = vmatprep.subr.bf16.mxu0 0
        %2328 = vmatpush1.bf16.msra.mxu0 0
        %2329 = vmatprep.subr.bf16.mxu0 0
        %2330 = vmatpush1.bf16.msra.mxu0 0
        %2331 = vmatprep.subr.bf16.mxu0 0
        %2332 = vmatpush1.bf16.msra.mxu0 0
        %2333 = vmatprep.mubr.bf16.mxu0 0
        %2334 = vmatmul.mubr.bf16.gmra.mrb[0].mxu0 %v1402
        %v2335 = vpop.f32.mrb[0].mxu0
        %v2336 = vadd.f32 0.0, %v2335
        %v2337 = vpop.f32.mrb[0].mxu0
        %v2338 = vpop.f32.mrb[0].mxu0
        %v2339 = vadd.f32 0.0, %v2338
        %v2340 = vpop.f32.mrb[0].mxu0
        %2341 = vmatprep.mubr.bf16.mxu0 0
        %2342 = vmatmul.mubr.bf16.gmra.mrb[0].mxu0 %v1403
        %v2343 = vpop.f32.mrb[0].mxu0
        %v2344 = vadd.f32 0.0, %v2343
        %v2345 = vpop.f32.mrb[0].mxu0
        %v2346 = vpop.f32.mrb[0].mxu0
        %v2347 = vadd.f32 0.0, %v2346
        %v2348 = vpop.f32.mrb[0].mxu0
        %2349 = vmatprep.mubr.bf16.mxu0 0
        %2350 = vmatmul.mubr.bf16.gmra.mrb[0].mxu0 %v1404
        %v2351 = vpop.f32.mrb[0].mxu0
        %v2352 = vadd.f32 0.0, %v2351
        %v2353 = vpop.f32.mrb[0].mxu0
        %v2354 = vpop.f32.mrb[0].mxu0
        %v2355 = vadd.f32 0.0, %v2354
        %v2356 = vpop.f32.mrb[0].mxu0
        %2357 = vmatprep.mubr.bf16.mxu0 0
        %2358 = vmatmul.mubr.bf16.gmra.mrb[0].mxu0 %v1405
        %v2359 = vpop.f32.mrb[0].mxu0
        %v2360 = vadd.f32 0.0, %v2359
        %v2361 = vpop.f32.mrb[0].mxu0
        %v2362 = vpop.f32.mrb[0].mxu0
        %v2363 = vadd.f32 0.0, %v2362
        %v2364 = vpop.f32.mrb[0].mxu0
        %2365 = vmatprep.mubr.bf16.mxu0 0
        %2366 = vmatmul.mubr.bf16.gmra.mrb[0].mxu0 %v1406
        %v2367 = vpop.f32.mrb[0].mxu0
        %v2368 = vadd.f32 0.0, %v2367
        %v2369 = vpop.f32.mrb[0].mxu0
        %v2370 = vpop.f32.mrb[0].mxu0
        %v2371 = vadd.f32 0.0, %v2370
        %v2372 = vpop.f32.mrb[0].mxu0
        %2373 = vmatprep.mubr.bf16.mxu0 0
        %2374 = vmatmul.mubr.bf16.gmra.mrb[0].mxu0 %v1407
        %v2375 = vpop.f32.mrb[0].mxu0
        %v2376 = vadd.f32 0.0, %v2375
        %v2377 = vpop.f32.mrb[0].mxu0
        %v2378 = vpop.f32.mrb[0].mxu0
        %v2379 = vadd.f32 0.0, %v2378
        %v2380 = vpop.f32.mrb[0].mxu0
        %2381 = vmatprep.mubr.bf16.mxu0 0
        %2382 = vmatmul.mubr.bf16.gmra.mrb[0].mxu0 %v1408
        %v2383 = vpop.f32.mrb[0].mxu0
        %v2384 = vadd.f32 0.0, %v2383
        %v2385 = vpop.f32.mrb[0].mxu0
        %v2386 = vpop.f32.mrb[0].mxu0
        %v2387 = vadd.f32 0.0, %v2386
        %v2388 = vpop.f32.mrb[0].mxu0
        %2389 = vmatprep.mubr.bf16.mxu0 0
        %2390 = vmatmul.mubr.bf16.gmra.mrb[0].mxu0 %v1409
        %v2391 = vpop.f32.mrb[0].mxu0
        %v2392 = vadd.f32 0.0, %v2391
        %v2393 = vpop.f32.mrb[0].mxu0
        %v2394 = vpop.f32.mrb[0].mxu0
        %v2395 = vadd.f32 0.0, %v2394
        %v2396 = vpop.f32.mrb[0].mxu0
        %2397 = vmatprep.mubr.bf16.mxu0 0
        %2398 = vmatmul.mubr.bf16.gmra.mrb[0].mxu0 %v1410
        %v2399 = vpop.f32.mrb[0].mxu0
        %v2400 = vadd.f32 0.0, %v2399
        %v2401 = vpop.f32.mrb[0].mxu0
        %v2402 = vpop.f32.mrb[0].mxu0
        %v2403 = vadd.f32 0.0, %v2402
        %v2404 = vpop.f32.mrb[0].mxu0
        %2405 = vmatprep.mubr.bf16.mxu0 0
        %2406 = vmatmul.mubr.bf16.gmra.mrb[0].mxu0 %v1411
        %v2407 = vpop.f32.mrb[0].mxu0
        %v2408 = vadd.f32 0.0, %v2407
        %v2409 = vpop.f32.mrb[0].mxu0
        %v2410 = vpop.f32.mrb[0].mxu0
        %v2411 = vadd.f32 0.0, %v2410
        %v2412 = vpop.f32.mrb[0].mxu0
        %2413 = vmatprep.mubr.bf16.mxu0 0
        %2414 = vmatmul.mubr.bf16.gmra.mrb[0].mxu0 %v1412
        %v2415 = vpop.f32.mrb[0].mxu0
        %v2416 = vadd.f32 0.0, %v2415
        %v2417 = vpop.f32.mrb[0].mxu0
        %v2418 = vpop.f32.mrb[0].mxu0
        %v2419 = vadd.f32 0.0, %v2418
        %v2420 = vpop.f32.mrb[0].mxu0
        %2421 = vmatprep.mubr.bf16.mxu0 0
        %2422 = vmatmul.mubr.bf16.gmra.mrb[0].mxu0 %v1413
        %v2423 = vpop.f32.mrb[0].mxu0
        %v2424 = vadd.f32 0.0, %v2423
        %v2425 = vpop.f32.mrb[0].mxu0
        %v2426 = vpop.f32.mrb[0].mxu0
        %v2427 = vadd.f32 0.0, %v2426
        %v2428 = vpop.f32.mrb[0].mxu0
        %2429 = vmatprep.mubr.bf16.mxu0 0
        %2430 = vmatmul.mubr.bf16.gmra.mrb[0].mxu0 %v1414
        %v2431 = vpop.f32.mrb[0].mxu0
        %v2432 = vadd.f32 0.0, %v2431
        %v2433 = vpop.f32.mrb[0].mxu0
        %v2434 = vpop.f32.mrb[0].mxu0
        %v2435 = vadd.f32 0.0, %v2434
        %v2436 = vpop.f32.mrb[0].mxu0
        %2437 = vmatprep.mubr.bf16.mxu0 0
        %2438 = vmatmul.mubr.bf16.gmra.mrb[0].mxu0 %v1415
        %v2439 = vpop.f32.mrb[0].mxu0
        %v2440 = vadd.f32 0.0, %v2439
        %v2441 = vpop.f32.mrb[0].mxu0
        %v2442 = vpop.f32.mrb[0].mxu0
        %v2443 = vadd.f32 0.0, %v2442
        %v2444 = vpop.f32.mrb[0].mxu0
        %2445 = vmatprep.mubr.bf16.mxu0 0
        %2446 = vmatmul.mubr.bf16.gmra.mrb[0].mxu0 %v1416
        %v2447 = vpop.f32.mrb[0].mxu0
        %v2448 = vadd.f32 0.0, %v2447
        %v2449 = vpop.f32.mrb[0].mxu0
        %v2450 = vpop.f32.mrb[0].mxu0
        %v2451 = vadd.f32 0.0, %v2450
        %v2452 = vpop.f32.mrb[0].mxu0
        %2453 = vmatprep.mubr.bf16.mxu0 0
        %2454 = vmatmul.mubr.bf16.gmra.mrb[0].mxu0 %v2251
        %v2455 = vpop.f32.mrb[0].mxu0
        %v2456 = vadd.f32 0.0, %v2455
        %v2457 = vpop.f32.mrb[0].mxu0
        %v2458 = vpop.f32.mrb[0].mxu0
        %v2459 = vadd.f32 0.0, %v2458
        %v2460 = vpop.f32.mrb[0].mxu0
        %2461 = vdwg.mxu0
        %v2462 = vadd.f32 %v2192, %v2336
        %v2463 = vadd.f32 %v2193, %v2339
        %v2464 = vadd.f32 %v2194, %v2344
        %v2465 = vadd.f32 %v2195, %v2347
        %v2466 = vadd.f32 %v2196, %v2352
        %v2467 = vadd.f32 %v2197, %v2355
        %v2468 = vadd.f32 %v2198, %v2360
        %v2469 = vadd.f32 %v2199, %v2363
        %v2470 = vadd.f32 %v2200, %v2368
        %v2471 = vadd.f32 %v2201, %v2371
        %v2472 = vadd.f32 %v2202, %v2376
        %v2473 = vadd.f32 %v2203, %v2379
        %v2474 = vadd.f32 %v2204, %v2384
        %v2475 = vadd.f32 %v2205, %v2387
        %v2476 = vadd.f32 %v2206, %v2392
        %v2477 = vadd.f32 %v2207, %v2395
        %v2478 = vadd.f32 %v2208, %v2400
        %v2479 = vadd.f32 %v2209, %v2403
        %v2480 = vadd.f32 %v2210, %v2408
        %v2481 = vadd.f32 %v2211, %v2411
        %v2482 = vadd.f32 %v2212, %v2416
        %v2483 = vadd.f32 %v2213, %v2419
        %v2484 = vadd.f32 %v2214, %v2424
        %v2485 = vadd.f32 %v2215, %v2427
        %v2486 = vadd.f32 %v2216, %v2432
        %v2487 = vadd.f32 %v2217, %v2435
        %v2488 = vadd.f32 %v2218, %v2440
        %v2489 = vadd.f32 %v2219, %v2443
        %v2490 = vadd.f32 %v2220, %v2448
        %v2491 = vadd.f32 %v2221, %v2451
        %v2492 = vadd.f32 %v2222, %v2456
        %v2493 = vadd.f32 %v2223, %v2459
        %s2494 = scalar_lea.vmem %s1, 384
        %v2495 = vld [vmem:[%s2494] sm:$0xf]
        %v2496 = vld [vmem:[%s2494 + $0x4] sm:$0xf]
        %v2497 = vld [vmem:[%s2494 + $0x8] sm:$0xf]
        %v2498 = vld [vmem:[%s2494 + $0xc] sm:$0xf]
        %v2499 = vld [vmem:[%s2494 + $0x10] sm:$0xf]
        %v2500 = vld [vmem:[%s2494 + $0x14] sm:$0xf]
        %v2501 = vld [vmem:[%s2494 + $0x18] sm:$0xf]
        %v2502 = vld [vmem:[%s2494 + $0x1c] sm:$0xf]
        %v2503 = vld [vmem:[%s2494 + $0x20] sm:$0xf]
        %v2504 = vld [vmem:[%s2494 + $0x24] sm:$0xf]
        %v2505 = vld [vmem:[%s2494 + $0x28] sm:$0xf]
        %v2506 = vld [vmem:[%s2494 + $0x2c] sm:$0xf]
        %v2507 = vld [vmem:[%s2494 + $0x30] sm:$0xf]
        %v2508 = vld [vmem:[%s2494 + $0x34] sm:$0xf]
        %v2509 = vld [vmem:[%s2494 + $0x38] sm:$0xf]
        %v2510 = vld [vmem:[%s2494 + $0x3c] sm:$0xf]
        %v2513 = vunpack.c.l.b16 %v220
        %v2514 = vunpack.c.l.b16 %v221
        %v2515 = vpack.c.b16 %v2514, %v2513
        %v2533 = vunpack.c.l.b16 %v2495
        %v2534 = vunpack.c.l.b16 %v2496
        %v2535 = vunpack.c.l.b16 %v2497
        %v2536 = vunpack.c.l.b16 %v2498
        %v2537 = vunpack.c.l.b16 %v2499
        %v2538 = vunpack.c.l.b16 %v2500
        %v2539 = vunpack.c.l.b16 %v2501
        %v2540 = vunpack.c.l.b16 %v2502
        %v2541 = vunpack.c.l.b16 %v2503
        %v2542 = vunpack.c.l.b16 %v2504
        %v2543 = vunpack.c.l.b16 %v2505
        %v2544 = vunpack.c.l.b16 %v2506
        %v2545 = vunpack.c.l.b16 %v2507
        %v2546 = vunpack.c.l.b16 %v2508
        %v2547 = vunpack.c.l.b16 %v2509
        %v2548 = vunpack.c.l.b16 %v2510
        %v2549 = vpack.c.b16 %v2534, %v2533
        %v2550 = vpack.c.b16 %v2536, %v2535
        %v2551 = vpack.c.b16 %v2538, %v2537
        %v2552 = vpack.c.b16 %v2540, %v2539
        %v2553 = vpack.c.b16 %v2542, %v2541
        %v2554 = vpack.c.b16 %v2544, %v2543
        %v2555 = vpack.c.b16 %v2546, %v2545
        %v2556 = vpack.c.b16 %v2548, %v2547
        %2565 = vmatprep.subr.bf16.mxu0 0
        %2566 = vmatpush1.bf16.msra.mxu0 %v2549
        %2567 = vmatprep.subr.bf16.mxu0 0
        %2568 = vmatpush1.bf16.msra.mxu0 %v2550
        %2569 = vmatprep.subr.bf16.mxu0 0
        %2570 = vmatpush1.bf16.msra.mxu0 %v2551
        %2571 = vmatprep.subr.bf16.mxu0 0
        %2572 = vmatpush1.bf16.msra.mxu0 %v2552
        %2573 = vmatprep.subr.bf16.mxu0 0
        %2574 = vmatpush1.bf16.msra.mxu0 %v2553
        %2575 = vmatprep.subr.bf16.mxu0 0
        %2576 = vmatpush1.bf16.msra.mxu0 %v2554
        %2577 = vmatprep.subr.bf16.mxu0 0
        %2578 = vmatpush1.bf16.msra.mxu0 %v2555
        %2579 = vmatprep.subr.bf16.mxu0 0
        %2580 = vmatpush1.bf16.msra.mxu0 %v2556
        %2581 = vmatprep.subr.bf16.mxu0 0
        %2582 = vmatpush1.bf16.msra.mxu0 0
        %2583 = vmatprep.subr.bf16.mxu0 0
        %2584 = vmatpush1.bf16.msra.mxu0 0
        %2585 = vmatprep.subr.bf16.mxu0 0
        %2586 = vmatpush1.bf16.msra.mxu0 0
        %2587 = vmatprep.subr.bf16.mxu0 0
        %2588 = vmatpush1.bf16.msra.mxu0 0
        %2589 = vmatprep.subr.bf16.mxu0 0
        %2590 = vmatpush1.bf16.msra.mxu0 0
        %2591 = vmatprep.subr.bf16.mxu0 0
        %2592 = vmatpush1.bf16.msra.mxu0 0
        %2593 = vmatprep.subr.bf16.mxu0 0
        %2594 = vmatpush1.bf16.msra.mxu0 0
        %2595 = vmatprep.subr.bf16.mxu0 0
        %2596 = vmatpush1.bf16.msra.mxu0 0
        %2597 = vmatprep.mubr.bf16.mxu0 0
        %2598 = vmatmul.mubr.bf16.gmra.mrb[0].mxu0 %v982
        %v2599 = vpop.f32.mrb[0].mxu0
        %v2600 = vadd.f32 0.0, %v2599
        %v2601 = vpop.f32.mrb[0].mxu0
        %v2602 = vpop.f32.mrb[0].mxu0
        %v2603 = vadd.f32 0.0, %v2602
        %v2604 = vpop.f32.mrb[0].mxu0
        %2605 = vmatprep.mubr.bf16.mxu0 0
        %2606 = vmatmul.mubr.bf16.gmra.mrb[0].mxu0 %v983
        %v2607 = vpop.f32.mrb[0].mxu0
        %v2608 = vadd.f32 0.0, %v2607
        %v2609 = vpop.f32.mrb[0].mxu0
        %v2610 = vpop.f32.mrb[0].mxu0
        %v2611 = vadd.f32 0.0, %v2610
        %v2612 = vpop.f32.mrb[0].mxu0
        %2613 = vmatprep.mubr.bf16.mxu0 0
        %2614 = vmatmul.mubr.bf16.gmra.mrb[0].mxu0 %v984
        %v2615 = vpop.f32.mrb[0].mxu0
        %v2616 = vadd.f32 0.0, %v2615
        %v2617 = vpop.f32.mrb[0].mxu0
        %v2618 = vpop.f32.mrb[0].mxu0
        %v2619 = vadd.f32 0.0, %v2618
        %v2620 = vpop.f32.mrb[0].mxu0
        %2621 = vmatprep.mubr.bf16.mxu0 0
        %2622 = vmatmul.mubr.bf16.gmra.mrb[0].mxu0 %v985
        %v2623 = vpop.f32.mrb[0].mxu0
        %v2624 = vadd.f32 0.0, %v2623
        %v2625 = vpop.f32.mrb[0].mxu0
        %v2626 = vpop.f32.mrb[0].mxu0
        %v2627 = vadd.f32 0.0, %v2626
        %v2628 = vpop.f32.mrb[0].mxu0
        %2629 = vmatprep.mubr.bf16.mxu0 0
        %2630 = vmatmul.mubr.bf16.gmra.mrb[0].mxu0 %v986
        %v2631 = vpop.f32.mrb[0].mxu0
        %v2632 = vadd.f32 0.0, %v2631
        %v2633 = vpop.f32.mrb[0].mxu0
        %v2634 = vpop.f32.mrb[0].mxu0
        %v2635 = vadd.f32 0.0, %v2634
        %v2636 = vpop.f32.mrb[0].mxu0
        %2637 = vmatprep.mubr.bf16.mxu0 0
        %2638 = vmatmul.mubr.bf16.gmra.mrb[0].mxu0 %v987
        %v2639 = vpop.f32.mrb[0].mxu0
        %v2640 = vadd.f32 0.0, %v2639
        %v2641 = vpop.f32.mrb[0].mxu0
        %v2642 = vpop.f32.mrb[0].mxu0
        %v2643 = vadd.f32 0.0, %v2642
        %v2644 = vpop.f32.mrb[0].mxu0
        %2645 = vmatprep.mubr.bf16.mxu0 0
        %2646 = vmatmul.mubr.bf16.gmra.mrb[0].mxu0 %v988
        %v2647 = vpop.f32.mrb[0].mxu0
        %v2648 = vadd.f32 0.0, %v2647
        %v2649 = vpop.f32.mrb[0].mxu0
        %v2650 = vpop.f32.mrb[0].mxu0
        %v2651 = vadd.f32 0.0, %v2650
        %v2652 = vpop.f32.mrb[0].mxu0
        %2653 = vmatprep.mubr.bf16.mxu0 0
        %2654 = vmatmul.mubr.bf16.gmra.mrb[0].mxu0 %v989
        %v2655 = vpop.f32.mrb[0].mxu0
        %v2656 = vadd.f32 0.0, %v2655
        %v2657 = vpop.f32.mrb[0].mxu0
        %v2658 = vpop.f32.mrb[0].mxu0
        %v2659 = vadd.f32 0.0, %v2658
        %v2660 = vpop.f32.mrb[0].mxu0
        %2661 = vmatprep.mubr.bf16.mxu0 0
        %2662 = vmatmul.mubr.bf16.gmra.mrb[0].mxu0 %v990
        %v2663 = vpop.f32.mrb[0].mxu0
        %v2664 = vadd.f32 0.0, %v2663
        %v2665 = vpop.f32.mrb[0].mxu0
        %v2666 = vpop.f32.mrb[0].mxu0
        %v2667 = vadd.f32 0.0, %v2666
        %v2668 = vpop.f32.mrb[0].mxu0
        %2669 = vmatprep.mubr.bf16.mxu0 0
        %2670 = vmatmul.mubr.bf16.gmra.mrb[0].mxu0 %v991
        %v2671 = vpop.f32.mrb[0].mxu0
        %v2672 = vadd.f32 0.0, %v2671
        %v2673 = vpop.f32.mrb[0].mxu0
        %v2674 = vpop.f32.mrb[0].mxu0
        %v2675 = vadd.f32 0.0, %v2674
        %v2676 = vpop.f32.mrb[0].mxu0
        %2677 = vmatprep.mubr.bf16.mxu0 0
        %2678 = vmatmul.mubr.bf16.gmra.mrb[0].mxu0 %v992
        %v2679 = vpop.f32.mrb[0].mxu0
        %v2680 = vadd.f32 0.0, %v2679
        %v2681 = vpop.f32.mrb[0].mxu0
        %v2682 = vpop.f32.mrb[0].mxu0
        %v2683 = vadd.f32 0.0, %v2682
        %v2684 = vpop.f32.mrb[0].mxu0
        %2685 = vmatprep.mubr.bf16.mxu0 0
        %2686 = vmatmul.mubr.bf16.gmra.mrb[0].mxu0 %v993
        %v2687 = vpop.f32.mrb[0].mxu0
        %v2688 = vadd.f32 0.0, %v2687
        %v2689 = vpop.f32.mrb[0].mxu0
        %v2690 = vpop.f32.mrb[0].mxu0
        %v2691 = vadd.f32 0.0, %v2690
        %v2692 = vpop.f32.mrb[0].mxu0
        %2693 = vmatprep.mubr.bf16.mxu0 0
        %2694 = vmatmul.mubr.bf16.gmra.mrb[0].mxu0 %v994
        %v2695 = vpop.f32.mrb[0].mxu0
        %v2696 = vadd.f32 0.0, %v2695
        %v2697 = vpop.f32.mrb[0].mxu0
        %v2698 = vpop.f32.mrb[0].mxu0
        %v2699 = vadd.f32 0.0, %v2698
        %v2700 = vpop.f32.mrb[0].mxu0
        %2701 = vmatprep.mubr.bf16.mxu0 0
        %2702 = vmatmul.mubr.bf16.gmra.mrb[0].mxu0 %v995
        %v2703 = vpop.f32.mrb[0].mxu0
        %v2704 = vadd.f32 0.0, %v2703
        %v2705 = vpop.f32.mrb[0].mxu0
        %v2706 = vpop.f32.mrb[0].mxu0
        %v2707 = vadd.f32 0.0, %v2706
        %v2708 = vpop.f32.mrb[0].mxu0
        %2709 = vmatprep.mubr.bf16.mxu0 0
        %2710 = vmatmul.mubr.bf16.gmra.mrb[0].mxu0 %v1695
        %v2711 = vpop.f32.mrb[0].mxu0
        %v2712 = vadd.f32 0.0, %v2711
        %v2713 = vpop.f32.mrb[0].mxu0
        %v2714 = vpop.f32.mrb[0].mxu0
        %v2715 = vadd.f32 0.0, %v2714
        %v2716 = vpop.f32.mrb[0].mxu0
        %2717 = vmatprep.mubr.bf16.mxu0 0
        %2718 = vmatmul.mubr.bf16.gmra.mrb[0].mxu0 %v2515
        %v2719 = vpop.f32.mrb[0].mxu0
        %v2720 = vadd.f32 0.0, %v2719
        %v2721 = vpop.f32.mrb[0].mxu0
        %v2722 = vpop.f32.mrb[0].mxu0
        %v2723 = vadd.f32 0.0, %v2722
        %v2724 = vpop.f32.mrb[0].mxu0
        %2725 = vdwg.mxu0
        %v2726 = vadd.f32 %v2462, %v2600
        %v2727 = vadd.f32 %v2463, %v2603
        %v2728 = vadd.f32 %v2464, %v2608
        %v2729 = vadd.f32 %v2465, %v2611
        %v2730 = vadd.f32 %v2466, %v2616
        %v2731 = vadd.f32 %v2467, %v2619
        %v2732 = vadd.f32 %v2468, %v2624
        %v2733 = vadd.f32 %v2469, %v2627
        %v2734 = vadd.f32 %v2470, %v2632
        %v2735 = vadd.f32 %v2471, %v2635
        %v2736 = vadd.f32 %v2472, %v2640
        %v2737 = vadd.f32 %v2473, %v2643
        %v2738 = vadd.f32 %v2474, %v2648
        %v2739 = vadd.f32 %v2475, %v2651
        %v2740 = vadd.f32 %v2476, %v2656
        %v2741 = vadd.f32 %v2477, %v2659
        %v2742 = vadd.f32 %v2478, %v2664
        %v2743 = vadd.f32 %v2479, %v2667
        %v2744 = vadd.f32 %v2480, %v2672
        %v2745 = vadd.f32 %v2481, %v2675
        %v2746 = vadd.f32 %v2482, %v2680
        %v2747 = vadd.f32 %v2483, %v2683
        %v2748 = vadd.f32 %v2484, %v2688
        %v2749 = vadd.f32 %v2485, %v2691
        %v2750 = vadd.f32 %v2486, %v2696
        %v2751 = vadd.f32 %v2487, %v2699
        %v2752 = vadd.f32 %v2488, %v2704
        %v2753 = vadd.f32 %v2489, %v2707
        %v2754 = vadd.f32 %v2490, %v2712
        %v2755 = vadd.f32 %v2491, %v2715
        %v2756 = vadd.f32 %v2492, %v2720
        %v2757 = vadd.f32 %v2493, %v2723
        %v2759 = vshrl.u32 %v220, 16
        %v2761 = vrot.slane %v2759, 4
        %v2762 = vshll.u32 %v220, 16
        %v2764 = vrot.slane %v2762, 5
        %v2765 = vor.u32 %v2761, %v2764
        %v2766 = vrot.slane %v2765, 4
        %v2768 = vshll.u32 %v221, 16
        %v2770 = vrot.slane %v2768, 5
        %v2771 = vsel %vm241, %v2766, %v2770
        %v2772 = vshrl.u32 %v221, 16
        %v2774 = vrot.slane %v2772, 4
        %v2775 = vor.u32 %v2774, %v2770
        %v2776 = vrot.slane %v2775, 4
        %v2778 = vshll.u32 %v222, 16
        %v2780 = vrot.slane %v2778, 5
        %v2781 = vsel %vm241, %v2776, %v2780
        %s2782 = scalar_lea.vmem %s1, 448
        %v2783 = vld [vmem:[%s2782] sm:$0xf]
        %v2784 = vld [vmem:[%s2782 + $0x4] sm:$0xf]
        %v2785 = vld [vmem:[%s2782 + $0x8] sm:$0xf]
        %v2786 = vld [vmem:[%s2782 + $0xc] sm:$0xf]
        %v2787 = vld [vmem:[%s2782 + $0x10] sm:$0xf]
        %v2788 = vld [vmem:[%s2782 + $0x14] sm:$0xf]
        %v2789 = vld [vmem:[%s2782 + $0x18] sm:$0xf]
        %v2790 = vld [vmem:[%s2782 + $0x1c] sm:$0xf]
        %v2791 = vld [vmem:[%s2782 + $0x20] sm:$0xf]
        %v2792 = vld [vmem:[%s2782 + $0x24] sm:$0xf]
        %v2793 = vld [vmem:[%s2782 + $0x28] sm:$0xf]
        %v2794 = vld [vmem:[%s2782 + $0x2c] sm:$0xf]
        %v2795 = vld [vmem:[%s2782 + $0x30] sm:$0xf]
        %v2796 = vld [vmem:[%s2782 + $0x34] sm:$0xf]
        %v2797 = vld [vmem:[%s2782 + $0x38] sm:$0xf]
        %v2798 = vld [vmem:[%s2782 + $0x3c] sm:$0xf]
        %v2799 = vunpack.c.l.b16 %v2771
        %v2800 = vunpack.c.l.b16 %v2781
        %v2801 = vpack.c.b16 %v2800, %v2799
        %v2819 = vunpack.c.l.b16 %v2783
        %v2820 = vunpack.c.l.b16 %v2784
        %v2821 = vunpack.c.l.b16 %v2785
        %v2822 = vunpack.c.l.b16 %v2786
        %v2823 = vunpack.c.l.b16 %v2787
        %v2824 = vunpack.c.l.b16 %v2788
        %v2825 = vunpack.c.l.b16 %v2789
        %v2826 = vunpack.c.l.b16 %v2790
        %v2827 = vunpack.c.l.b16 %v2791
        %v2828 = vunpack.c.l.b16 %v2792
        %v2829 = vunpack.c.l.b16 %v2793
        %v2830 = vunpack.c.l.b16 %v2794
        %v2831 = vunpack.c.l.b16 %v2795
        %v2832 = vunpack.c.l.b16 %v2796
        %v2833 = vunpack.c.l.b16 %v2797
        %v2834 = vunpack.c.l.b16 %v2798
        %v2835 = vpack.c.b16 %v2820, %v2819
        %v2836 = vpack.c.b16 %v2822, %v2821
        %v2837 = vpack.c.b16 %v2824, %v2823
        %v2838 = vpack.c.b16 %v2826, %v2825
        %v2839 = vpack.c.b16 %v2828, %v2827
        %v2840 = vpack.c.b16 %v2830, %v2829
        %v2841 = vpack.c.b16 %v2832, %v2831
        %v2842 = vpack.c.b16 %v2834, %v2833
        %2851 = vmatprep.subr.bf16.mxu0 0
        %2852 = vmatpush1.bf16.msra.mxu0 %v2835
        %2853 = vmatprep.subr.bf16.mxu0 0
        %2854 = vmatpush1.bf16.msra.mxu0 %v2836
        %2855 = vmatprep.subr.bf16.mxu0 0
        %2856 = vmatpush1.bf16.msra.mxu0 %v2837
        %2857 = vmatprep.subr.bf16.mxu0 0
        %2858 = vmatpush1.bf16.msra.mxu0 %v2838
        %2859 = vmatprep.subr.bf16.mxu0 0
        %2860 = vmatpush1.bf16.msra.mxu0 %v2839
        %2861 = vmatprep.subr.bf16.mxu0 0
        %2862 = vmatpush1.bf16.msra.mxu0 %v2840
        %2863 = vmatprep.subr.bf16.mxu0 0
        %2864 = vmatpush1.bf16.msra.mxu0 %v2841
        %2865 = vmatprep.subr.bf16.mxu0 0
        %2866 = vmatpush1.bf16.msra.mxu0 %v2842
        %2867 = vmatprep.subr.bf16.mxu0 0
        %2868 = vmatpush1.bf16.msra.mxu0 0
        %2869 = vmatprep.subr.bf16.mxu0 0
        %2870 = vmatpush1.bf16.msra.mxu0 0
        %2871 = vmatprep.subr.bf16.mxu0 0
        %2872 = vmatpush1.bf16.msra.mxu0 0
        %2873 = vmatprep.subr.bf16.mxu0 0
        %2874 = vmatpush1.bf16.msra.mxu0 0
        %2875 = vmatprep.subr.bf16.mxu0 0
        %2876 = vmatpush1.bf16.msra.mxu0 0
        %2877 = vmatprep.subr.bf16.mxu0 0
        %2878 = vmatpush1.bf16.msra.mxu0 0
        %2879 = vmatprep.subr.bf16.mxu0 0
        %2880 = vmatpush1.bf16.msra.mxu0 0
        %2881 = vmatprep.subr.bf16.mxu0 0
        %2882 = vmatpush1.bf16.msra.mxu0 0
        %2883 = vmatprep.mubr.bf16.mxu0 0
        %2884 = vmatmul.mubr.bf16.gmra.mrb[0].mxu0 %v677
        %v2885 = vpop.f32.mrb[0].mxu0
        %v2886 = vadd.f32 0.0, %v2885
        %v2887 = vpop.f32.mrb[0].mxu0
        %v2888 = vpop.f32.mrb[0].mxu0
        %v2889 = vadd.f32 0.0, %v2888
        %v2890 = vpop.f32.mrb[0].mxu0
        %2891 = vmatprep.mubr.bf16.mxu0 0
        %2892 = vmatmul.mubr.bf16.gmra.mrb[0].mxu0 %v678
        %v2893 = vpop.f32.mrb[0].mxu0
        %v2894 = vadd.f32 0.0, %v2893
        %v2895 = vpop.f32.mrb[0].mxu0
        %v2896 = vpop.f32.mrb[0].mxu0
        %v2897 = vadd.f32 0.0, %v2896
        %v2898 = vpop.f32.mrb[0].mxu0
        %2899 = vmatprep.mubr.bf16.mxu0 0
        %2900 = vmatmul.mubr.bf16.gmra.mrb[0].mxu0 %v679
        %v2901 = vpop.f32.mrb[0].mxu0
        %v2902 = vadd.f32 0.0, %v2901
        %v2903 = vpop.f32.mrb[0].mxu0
        %v2904 = vpop.f32.mrb[0].mxu0
        %v2905 = vadd.f32 0.0, %v2904
        %v2906 = vpop.f32.mrb[0].mxu0
        %2907 = vmatprep.mubr.bf16.mxu0 0
        %2908 = vmatmul.mubr.bf16.gmra.mrb[0].mxu0 %v680
        %v2909 = vpop.f32.mrb[0].mxu0
        %v2910 = vadd.f32 0.0, %v2909
        %v2911 = vpop.f32.mrb[0].mxu0
        %v2912 = vpop.f32.mrb[0].mxu0
        %v2913 = vadd.f32 0.0, %v2912
        %v2914 = vpop.f32.mrb[0].mxu0
        %2915 = vmatprep.mubr.bf16.mxu0 0
        %2916 = vmatmul.mubr.bf16.gmra.mrb[0].mxu0 %v681
        %v2917 = vpop.f32.mrb[0].mxu0
        %v2918 = vadd.f32 0.0, %v2917
        %v2919 = vpop.f32.mrb[0].mxu0
        %v2920 = vpop.f32.mrb[0].mxu0
        %v2921 = vadd.f32 0.0, %v2920
        %v2922 = vpop.f32.mrb[0].mxu0
        %2923 = vmatprep.mubr.bf16.mxu0 0
        %2924 = vmatmul.mubr.bf16.gmra.mrb[0].mxu0 %v682
        %v2925 = vpop.f32.mrb[0].mxu0
        %v2926 = vadd.f32 0.0, %v2925
        %v2927 = vpop.f32.mrb[0].mxu0
        %v2928 = vpop.f32.mrb[0].mxu0
        %v2929 = vadd.f32 0.0, %v2928
        %v2930 = vpop.f32.mrb[0].mxu0
        %2931 = vmatprep.mubr.bf16.mxu0 0
        %2932 = vmatmul.mubr.bf16.gmra.mrb[0].mxu0 %v683
        %v2933 = vpop.f32.mrb[0].mxu0
        %v2934 = vadd.f32 0.0, %v2933
        %v2935 = vpop.f32.mrb[0].mxu0
        %v2936 = vpop.f32.mrb[0].mxu0
        %v2937 = vadd.f32 0.0, %v2936
        %v2938 = vpop.f32.mrb[0].mxu0
        %2939 = vmatprep.mubr.bf16.mxu0 0
        %2940 = vmatmul.mubr.bf16.gmra.mrb[0].mxu0 %v684
        %v2941 = vpop.f32.mrb[0].mxu0
        %v2942 = vadd.f32 0.0, %v2941
        %v2943 = vpop.f32.mrb[0].mxu0
        %v2944 = vpop.f32.mrb[0].mxu0
        %v2945 = vadd.f32 0.0, %v2944
        %v2946 = vpop.f32.mrb[0].mxu0
        %2947 = vmatprep.mubr.bf16.mxu0 0
        %2948 = vmatmul.mubr.bf16.gmra.mrb[0].mxu0 %v685
        %v2949 = vpop.f32.mrb[0].mxu0
        %v2950 = vadd.f32 0.0, %v2949
        %v2951 = vpop.f32.mrb[0].mxu0
        %v2952 = vpop.f32.mrb[0].mxu0
        %v2953 = vadd.f32 0.0, %v2952
        %v2954 = vpop.f32.mrb[0].mxu0
        %2955 = vmatprep.mubr.bf16.mxu0 0
        %2956 = vmatmul.mubr.bf16.gmra.mrb[0].mxu0 %v686
        %v2957 = vpop.f32.mrb[0].mxu0
        %v2958 = vadd.f32 0.0, %v2957
        %v2959 = vpop.f32.mrb[0].mxu0
        %v2960 = vpop.f32.mrb[0].mxu0
        %v2961 = vadd.f32 0.0, %v2960
        %v2962 = vpop.f32.mrb[0].mxu0
        %2963 = vmatprep.mubr.bf16.mxu0 0
        %2964 = vmatmul.mubr.bf16.gmra.mrb[0].mxu0 %v687
        %v2965 = vpop.f32.mrb[0].mxu0
        %v2966 = vadd.f32 0.0, %v2965
        %v2967 = vpop.f32.mrb[0].mxu0
        %v2968 = vpop.f32.mrb[0].mxu0
        %v2969 = vadd.f32 0.0, %v2968
        %v2970 = vpop.f32.mrb[0].mxu0
        %2971 = vmatprep.mubr.bf16.mxu0 0
        %2972 = vmatmul.mubr.bf16.gmra.mrb[0].mxu0 %v688
        %v2973 = vpop.f32.mrb[0].mxu0
        %v2974 = vadd.f32 0.0, %v2973
        %v2975 = vpop.f32.mrb[0].mxu0
        %v2976 = vpop.f32.mrb[0].mxu0
        %v2977 = vadd.f32 0.0, %v2976
        %v2978 = vpop.f32.mrb[0].mxu0
        %2979 = vmatprep.mubr.bf16.mxu0 0
        %2980 = vmatmul.mubr.bf16.gmra.mrb[0].mxu0 %v689
        %v2981 = vpop.f32.mrb[0].mxu0
        %v2982 = vadd.f32 0.0, %v2981
        %v2983 = vpop.f32.mrb[0].mxu0
        %v2984 = vpop.f32.mrb[0].mxu0
        %v2985 = vadd.f32 0.0, %v2984
        %v2986 = vpop.f32.mrb[0].mxu0
        %2987 = vmatprep.mubr.bf16.mxu0 0
        %2988 = vmatmul.mubr.bf16.gmra.mrb[0].mxu0 %v690
        %v2989 = vpop.f32.mrb[0].mxu0
        %v2990 = vadd.f32 0.0, %v2989
        %v2991 = vpop.f32.mrb[0].mxu0
        %v2992 = vpop.f32.mrb[0].mxu0
        %v2993 = vadd.f32 0.0, %v2992
        %v2994 = vpop.f32.mrb[0].mxu0
        %2995 = vmatprep.mubr.bf16.mxu0 0
        %2996 = vmatmul.mubr.bf16.gmra.mrb[0].mxu0 %v1981
        %v2997 = vpop.f32.mrb[0].mxu0
        %v2998 = vadd.f32 0.0, %v2997
        %v2999 = vpop.f32.mrb[0].mxu0
        %v3000 = vpop.f32.mrb[0].mxu0
        %v3001 = vadd.f32 0.0, %v3000
        %v3002 = vpop.f32.mrb[0].mxu0
        %3003 = vmatprep.mubr.bf16.mxu0 0
        %3004 = vmatmul.mubr.bf16.gmra.mrb[0].mxu0 %v2801
        %v3005 = vpop.f32.mrb[0].mxu0
        %v3006 = vadd.f32 0.0, %v3005
        %v3007 = vpop.f32.mrb[0].mxu0
        %v3008 = vpop.f32.mrb[0].mxu0
        %v3009 = vadd.f32 0.0, %v3008
        %v3010 = vpop.f32.mrb[0].mxu0
        %3011 = vdwg.mxu0
        %v3012 = vadd.f32 %v2726, %v2886
        %v3013 = vadd.f32 %v2727, %v2889
        %v3014 = vadd.f32 %v2728, %v2894
        %v3015 = vadd.f32 %v2729, %v2897
        %v3016 = vadd.f32 %v2730, %v2902
        %v3017 = vadd.f32 %v2731, %v2905
        %v3018 = vadd.f32 %v2732, %v2910
        %v3019 = vadd.f32 %v2733, %v2913
        %v3020 = vadd.f32 %v2734, %v2918
        %v3021 = vadd.f32 %v2735, %v2921
        %v3022 = vadd.f32 %v2736, %v2926
        %v3023 = vadd.f32 %v2737, %v2929
        %v3024 = vadd.f32 %v2738, %v2934
        %v3025 = vadd.f32 %v2739, %v2937
        %v3026 = vadd.f32 %v2740, %v2942
        %v3027 = vadd.f32 %v2741, %v2945
        %v3028 = vadd.f32 %v2742, %v2950
        %v3029 = vadd.f32 %v2743, %v2953
        %v3030 = vadd.f32 %v2744, %v2958
        %v3031 = vadd.f32 %v2745, %v2961
        %v3032 = vadd.f32 %v2746, %v2966
        %v3033 = vadd.f32 %v2747, %v2969
        %v3034 = vadd.f32 %v2748, %v2974
        %v3035 = vadd.f32 %v2749, %v2977
        %v3036 = vadd.f32 %v2750, %v2982
        %v3037 = vadd.f32 %v2751, %v2985
        %v3038 = vadd.f32 %v2752, %v2990
        %v3039 = vadd.f32 %v2753, %v2993
        %v3040 = vadd.f32 %v2754, %v2998
        %v3041 = vadd.f32 %v2755, %v3001
        %v3042 = vadd.f32 %v2756, %v3006
        %v3043 = vadd.f32 %v2757, %v3009
        %v3045 = vrot.slane %v220, 5
        %v3046 = vrot.slane %v3045, 4
        %v3047 = vrot.slane %v221, 5
        %v3048 = vsel %vm1239, %v3046, %v3047
        %v3049 = vrot.slane %v3047, 4
        %v3050 = vrot.slane %v222, 5
        %v3051 = vsel %vm1239, %v3049, %v3050
        %s3052 = scalar_lea.vmem %s1, 512
        %v3053 = vld [vmem:[%s3052] sm:$0xf]
        %v3054 = vld [vmem:[%s3052 + $0x4] sm:$0xf]
        %v3055 = vld [vmem:[%s3052 + $0x8] sm:$0xf]
        %v3056 = vld [vmem:[%s3052 + $0xc] sm:$0xf]
        %v3057 = vld [vmem:[%s3052 + $0x10] sm:$0xf]
        %v3058 = vld [vmem:[%s3052 + $0x14] sm:$0xf]
        %v3059 = vld [vmem:[%s3052 + $0x18] sm:$0xf]
        %v3060 = vld [vmem:[%s3052 + $0x1c] sm:$0xf]
        %v3061 = vld [vmem:[%s3052 + $0x20] sm:$0xf]
        %v3062 = vld [vmem:[%s3052 + $0x24] sm:$0xf]
        %v3063 = vld [vmem:[%s3052 + $0x28] sm:$0xf]
        %v3064 = vld [vmem:[%s3052 + $0x2c] sm:$0xf]
        %v3065 = vld [vmem:[%s3052 + $0x30] sm:$0xf]
        %v3066 = vld [vmem:[%s3052 + $0x34] sm:$0xf]
        %v3067 = vld [vmem:[%s3052 + $0x38] sm:$0xf]
        %v3068 = vld [vmem:[%s3052 + $0x3c] sm:$0xf]
        %v3069 = vunpack.c.l.b16 %v3048
        %v3070 = vunpack.c.l.b16 %v3051
        %v3071 = vpack.c.b16 %v3070, %v3069
        %v3089 = vunpack.c.l.b16 %v3053
        %v3090 = vunpack.c.l.b16 %v3054
        %v3091 = vunpack.c.l.b16 %v3055
        %v3092 = vunpack.c.l.b16 %v3056
        %v3093 = vunpack.c.l.b16 %v3057
        %v3094 = vunpack.c.l.b16 %v3058
        %v3095 = vunpack.c.l.b16 %v3059
        %v3096 = vunpack.c.l.b16 %v3060
        %v3097 = vunpack.c.l.b16 %v3061
        %v3098 = vunpack.c.l.b16 %v3062
        %v3099 = vunpack.c.l.b16 %v3063
        %v3100 = vunpack.c.l.b16 %v3064
        %v3101 = vunpack.c.l.b16 %v3065
        %v3102 = vunpack.c.l.b16 %v3066
        %v3103 = vunpack.c.l.b16 %v3067
        %v3104 = vunpack.c.l.b16 %v3068
        %v3105 = vpack.c.b16 %v3090, %v3089
        %v3106 = vpack.c.b16 %v3092, %v3091
        %v3107 = vpack.c.b16 %v3094, %v3093
        %v3108 = vpack.c.b16 %v3096, %v3095
        %v3109 = vpack.c.b16 %v3098, %v3097
        %v3110 = vpack.c.b16 %v3100, %v3099
        %v3111 = vpack.c.b16 %v3102, %v3101
        %v3112 = vpack.c.b16 %v3104, %v3103
        %3121 = vmatprep.subr.bf16.mxu0 0
        %3122 = vmatpush1.bf16.msra.mxu0 %v3105
        %3123 = vmatprep.subr.bf16.mxu0 0
        %3124 = vmatpush1.bf16.msra.mxu0 %v3106
        %3125 = vmatprep.subr.bf16.mxu0 0
        %3126 = vmatpush1.bf16.msra.mxu0 %v3107
        %3127 = vmatprep.subr.bf16.mxu0 0
        %3128 = vmatpush1.bf16.msra.mxu0 %v3108
        %3129 = vmatprep.subr.bf16.mxu0 0
        %3130 = vmatpush1.bf16.msra.mxu0 %v3109
        %3131 = vmatprep.subr.bf16.mxu0 0
        %3132 = vmatpush1.bf16.msra.mxu0 %v3110
        %3133 = vmatprep.subr.bf16.mxu0 0
        %3134 = vmatpush1.bf16.msra.mxu0 %v3111
        %3135 = vmatprep.subr.bf16.mxu0 0
        %3136 = vmatpush1.bf16.msra.mxu0 %v3112
        %3137 = vmatprep.subr.bf16.mxu0 0
        %3138 = vmatpush1.bf16.msra.mxu0 0
        %3139 = vmatprep.subr.bf16.mxu0 0
        %3140 = vmatpush1.bf16.msra.mxu0 0
        %3141 = vmatprep.subr.bf16.mxu0 0
        %3142 = vmatpush1.bf16.msra.mxu0 0
        %3143 = vmatprep.subr.bf16.mxu0 0
        %3144 = vmatpush1.bf16.msra.mxu0 0
        %3145 = vmatprep.subr.bf16.mxu0 0
        %3146 = vmatpush1.bf16.msra.mxu0 0
        %3147 = vmatprep.subr.bf16.mxu0 0
        %3148 = vmatpush1.bf16.msra.mxu0 0
        %3149 = vmatprep.subr.bf16.mxu0 0
        %3150 = vmatpush1.bf16.msra.mxu0 0
        %3151 = vmatprep.subr.bf16.mxu0 0
        %3152 = vmatpush1.bf16.msra.mxu0 0
        %3153 = vmatprep.mubr.bf16.mxu0 0
        %3154 = vmatmul.mubr.bf16.gmra.mrb[0].mxu0 %v1403
        %v3155 = vpop.f32.mrb[0].mxu0
        %v3156 = vadd.f32 0.0, %v3155
        %v3157 = vpop.f32.mrb[0].mxu0
        %v3158 = vpop.f32.mrb[0].mxu0
        %v3159 = vadd.f32 0.0, %v3158
        %v3160 = vpop.f32.mrb[0].mxu0
        %3161 = vmatprep.mubr.bf16.mxu0 0
        %3162 = vmatmul.mubr.bf16.gmra.mrb[0].mxu0 %v1404
        %v3163 = vpop.f32.mrb[0].mxu0
        %v3164 = vadd.f32 0.0, %v3163
        %v3165 = vpop.f32.mrb[0].mxu0
        %v3166 = vpop.f32.mrb[0].mxu0
        %v3167 = vadd.f32 0.0, %v3166
        %v3168 = vpop.f32.mrb[0].mxu0
        %3169 = vmatprep.mubr.bf16.mxu0 0
        %3170 = vmatmul.mubr.bf16.gmra.mrb[0].mxu0 %v1405
        %v3171 = vpop.f32.mrb[0].mxu0
        %v3172 = vadd.f32 0.0, %v3171
        %v3173 = vpop.f32.mrb[0].mxu0
        %v3174 = vpop.f32.mrb[0].mxu0
        %v3175 = vadd.f32 0.0, %v3174
        %v3176 = vpop.f32.mrb[0].mxu0
        %3177 = vmatprep.mubr.bf16.mxu0 0
        %3178 = vmatmul.mubr.bf16.gmra.mrb[0].mxu0 %v1406
        %v3179 = vpop.f32.mrb[0].mxu0
        %v3180 = vadd.f32 0.0, %v3179
        %v3181 = vpop.f32.mrb[0].mxu0
        %v3182 = vpop.f32.mrb[0].mxu0
        %v3183 = vadd.f32 0.0, %v3182
        %v3184 = vpop.f32.mrb[0].mxu0
        %3185 = vmatprep.mubr.bf16.mxu0 0
        %3186 = vmatmul.mubr.bf16.gmra.mrb[0].mxu0 %v1407
        %v3187 = vpop.f32.mrb[0].mxu0
        %v3188 = vadd.f32 0.0, %v3187
        %v3189 = vpop.f32.mrb[0].mxu0
        %v3190 = vpop.f32.mrb[0].mxu0
        %v3191 = vadd.f32 0.0, %v3190
        %v3192 = vpop.f32.mrb[0].mxu0
        %3193 = vmatprep.mubr.bf16.mxu0 0
        %3194 = vmatmul.mubr.bf16.gmra.mrb[0].mxu0 %v1408
        %v3195 = vpop.f32.mrb[0].mxu0
        %v3196 = vadd.f32 0.0, %v3195
        %v3197 = vpop.f32.mrb[0].mxu0
        %v3198 = vpop.f32.mrb[0].mxu0
        %v3199 = vadd.f32 0.0, %v3198
        %v3200 = vpop.f32.mrb[0].mxu0
        %3201 = vmatprep.mubr.bf16.mxu0 0
        %3202 = vmatmul.mubr.bf16.gmra.mrb[0].mxu0 %v1409
        %v3203 = vpop.f32.mrb[0].mxu0
        %v3204 = vadd.f32 0.0, %v3203
        %v3205 = vpop.f32.mrb[0].mxu0
        %v3206 = vpop.f32.mrb[0].mxu0
        %v3207 = vadd.f32 0.0, %v3206
        %v3208 = vpop.f32.mrb[0].mxu0
        %3209 = vmatprep.mubr.bf16.mxu0 0
        %3210 = vmatmul.mubr.bf16.gmra.mrb[0].mxu0 %v1410
        %v3211 = vpop.f32.mrb[0].mxu0
        %v3212 = vadd.f32 0.0, %v3211
        %v3213 = vpop.f32.mrb[0].mxu0
        %v3214 = vpop.f32.mrb[0].mxu0
        %v3215 = vadd.f32 0.0, %v3214
        %v3216 = vpop.f32.mrb[0].mxu0
        %3217 = vmatprep.mubr.bf16.mxu0 0
        %3218 = vmatmul.mubr.bf16.gmra.mrb[0].mxu0 %v1411
        %v3219 = vpop.f32.mrb[0].mxu0
        %v3220 = vadd.f32 0.0, %v3219
        %v3221 = vpop.f32.mrb[0].mxu0
        %v3222 = vpop.f32.mrb[0].mxu0
        %v3223 = vadd.f32 0.0, %v3222
        %v3224 = vpop.f32.mrb[0].mxu0
        %3225 = vmatprep.mubr.bf16.mxu0 0
        %3226 = vmatmul.mubr.bf16.gmra.mrb[0].mxu0 %v1412
        %v3227 = vpop.f32.mrb[0].mxu0
        %v3228 = vadd.f32 0.0, %v3227
        %v3229 = vpop.f32.mrb[0].mxu0
        %v3230 = vpop.f32.mrb[0].mxu0
        %v3231 = vadd.f32 0.0, %v3230
        %v3232 = vpop.f32.mrb[0].mxu0
        %3233 = vmatprep.mubr.bf16.mxu0 0
        %3234 = vmatmul.mubr.bf16.gmra.mrb[0].mxu0 %v1413
        %v3235 = vpop.f32.mrb[0].mxu0
        %v3236 = vadd.f32 0.0, %v3235
        %v3237 = vpop.f32.mrb[0].mxu0
        %v3238 = vpop.f32.mrb[0].mxu0
        %v3239 = vadd.f32 0.0, %v3238
        %v3240 = vpop.f32.mrb[0].mxu0
        %3241 = vmatprep.mubr.bf16.mxu0 0
        %3242 = vmatmul.mubr.bf16.gmra.mrb[0].mxu0 %v1414
        %v3243 = vpop.f32.mrb[0].mxu0
        %v3244 = vadd.f32 0.0, %v3243
        %v3245 = vpop.f32.mrb[0].mxu0
        %v3246 = vpop.f32.mrb[0].mxu0
        %v3247 = vadd.f32 0.0, %v3246
        %v3248 = vpop.f32.mrb[0].mxu0
        %3249 = vmatprep.mubr.bf16.mxu0 0
        %3250 = vmatmul.mubr.bf16.gmra.mrb[0].mxu0 %v1415
        %v3251 = vpop.f32.mrb[0].mxu0
        %v3252 = vadd.f32 0.0, %v3251
        %v3253 = vpop.f32.mrb[0].mxu0
        %v3254 = vpop.f32.mrb[0].mxu0
        %v3255 = vadd.f32 0.0, %v3254
        %v3256 = vpop.f32.mrb[0].mxu0
        %3257 = vmatprep.mubr.bf16.mxu0 0
        %3258 = vmatmul.mubr.bf16.gmra.mrb[0].mxu0 %v1416
        %v3259 = vpop.f32.mrb[0].mxu0
        %v3260 = vadd.f32 0.0, %v3259
        %v3261 = vpop.f32.mrb[0].mxu0
        %v3262 = vpop.f32.mrb[0].mxu0
        %v3263 = vadd.f32 0.0, %v3262
        %v3264 = vpop.f32.mrb[0].mxu0
        %3265 = vmatprep.mubr.bf16.mxu0 0
        %3266 = vmatmul.mubr.bf16.gmra.mrb[0].mxu0 %v2251
        %v3267 = vpop.f32.mrb[0].mxu0
        %v3268 = vadd.f32 0.0, %v3267
        %v3269 = vpop.f32.mrb[0].mxu0
        %v3270 = vpop.f32.mrb[0].mxu0
        %v3271 = vadd.f32 0.0, %v3270
        %v3272 = vpop.f32.mrb[0].mxu0
        %3273 = vmatprep.mubr.bf16.mxu0 0
        %3274 = vmatmul.mubr.bf16.gmra.mrb[0].mxu0 %v3071
        %v3275 = vpop.f32.mrb[0].mxu0
        %v3276 = vadd.f32 0.0, %v3275
        %v3277 = vpop.f32.mrb[0].mxu0
        %v3278 = vpop.f32.mrb[0].mxu0
        %v3279 = vadd.f32 0.0, %v3278
        %v3280 = vpop.f32.mrb[0].mxu0
        %3281 = vdwg.mxu0
        %v3282 = vadd.f32 %v3012, %v3156
        %v3283 = vadd.f32 %v3013, %v3159
        %v3284 = vadd.f32 %v3014, %v3164
        %v3285 = vadd.f32 %v3015, %v3167
        %v3286 = vadd.f32 %v3016, %v3172
        %v3287 = vadd.f32 %v3017, %v3175
        %v3288 = vadd.f32 %v3018, %v3180
        %v3289 = vadd.f32 %v3019, %v3183
        %v3290 = vadd.f32 %v3020, %v3188
        %v3291 = vadd.f32 %v3021, %v3191
        %v3292 = vadd.f32 %v3022, %v3196
        %v3293 = vadd.f32 %v3023, %v3199
        %v3294 = vadd.f32 %v3024, %v3204
        %v3295 = vadd.f32 %v3025, %v3207
        %v3296 = vadd.f32 %v3026, %v3212
        %v3297 = vadd.f32 %v3027, %v3215
        %v3298 = vadd.f32 %v3028, %v3220
        %v3299 = vadd.f32 %v3029, %v3223
        %v3300 = vadd.f32 %v3030, %v3228
        %v3301 = vadd.f32 %v3031, %v3231
        %v3302 = vadd.f32 %v3032, %v3236
        %v3303 = vadd.f32 %v3033, %v3239
        %v3304 = vadd.f32 %v3034, %v3244
        %v3305 = vadd.f32 %v3035, %v3247
        %v3306 = vadd.f32 %v3036, %v3252
        %v3307 = vadd.f32 %v3037, %v3255
        %v3308 = vadd.f32 %v3038, %v3260
        %v3309 = vadd.f32 %v3039, %v3263
        %v3310 = vadd.f32 %v3040, %v3268
        %v3311 = vadd.f32 %v3041, %v3271
        %v3312 = vadd.f32 %v3042, %v3276
        %v3313 = vadd.f32 %v3043, %v3279
        %v3314 = vld [vmem:[%s2] sm:$0x1]
        %v3316 = vlaneseq
        %v3317 = vshrl.u32 %v3316, 7
        %v3318 = vsub.s32 0, %v3317
        %v3319 = vrot.slane %v3314, %v3318
        %v3321 = vadd.f32 %v3282, %v3319
        %v3322 = vadd.f32 %v3283, %v3319
        %v3323 = vadd.f32 %v3284, %v3319
        %v3324 = vadd.f32 %v3285, %v3319
        %v3325 = vadd.f32 %v3286, %v3319
        %v3326 = vadd.f32 %v3287, %v3319
        %v3327 = vadd.f32 %v3288, %v3319
        %v3328 = vadd.f32 %v3289, %v3319
        %v3329 = vadd.f32 %v3290, %v3319
        %v3330 = vadd.f32 %v3291, %v3319
        %v3331 = vadd.f32 %v3292, %v3319
        %v3332 = vadd.f32 %v3293, %v3319
        %v3333 = vadd.f32 %v3294, %v3319
        %v3334 = vadd.f32 %v3295, %v3319
        %v3335 = vadd.f32 %v3296, %v3319
        %v3336 = vadd.f32 %v3297, %v3319
        %v3337 = vadd.f32 %v3298, %v3319
        %v3338 = vadd.f32 %v3299, %v3319
        %v3339 = vadd.f32 %v3300, %v3319
        %v3340 = vadd.f32 %v3301, %v3319
        %v3341 = vadd.f32 %v3302, %v3319
        %v3342 = vadd.f32 %v3303, %v3319
        %v3343 = vadd.f32 %v3304, %v3319
        %v3344 = vadd.f32 %v3305, %v3319
        %v3345 = vadd.f32 %v3306, %v3319
        %v3346 = vadd.f32 %v3307, %v3319
        %v3347 = vadd.f32 %v3308, %v3319
        %v3348 = vadd.f32 %v3309, %v3319
        %v3349 = vadd.f32 %v3310, %v3319
        %v3350 = vadd.f32 %v3311, %v3319
        %v3351 = vadd.f32 %v3312, %v3319
        %v3352 = vadd.f32 %v3313, %v3319
        %v3353 = vmax.f32 %v3321, 0.0
        %v3354 = vmax.f32 %v3322, 0.0
        %v3355 = vmax.f32 %v3323, 0.0
        %v3356 = vmax.f32 %v3324, 0.0
        %v3357 = vmax.f32 %v3325, 0.0
        %v3358 = vmax.f32 %v3326, 0.0
        %v3359 = vmax.f32 %v3327, 0.0
        %v3360 = vmax.f32 %v3328, 0.0
        %v3361 = vmax.f32 %v3329, 0.0
        %v3362 = vmax.f32 %v3330, 0.0
        %v3363 = vmax.f32 %v3331, 0.0
        %v3364 = vmax.f32 %v3332, 0.0
        %v3365 = vmax.f32 %v3333, 0.0
        %v3366 = vmax.f32 %v3334, 0.0
        %v3367 = vmax.f32 %v3335, 0.0
        %v3368 = vmax.f32 %v3336, 0.0
        %v3369 = vmax.f32 %v3337, 0.0
        %v3370 = vmax.f32 %v3338, 0.0
        %v3371 = vmax.f32 %v3339, 0.0
        %v3372 = vmax.f32 %v3340, 0.0
        %v3373 = vmax.f32 %v3341, 0.0
        %v3374 = vmax.f32 %v3342, 0.0
        %v3375 = vmax.f32 %v3343, 0.0
        %v3376 = vmax.f32 %v3344, 0.0
        %v3377 = vmax.f32 %v3345, 0.0
        %v3378 = vmax.f32 %v3346, 0.0
        %v3379 = vmax.f32 %v3347, 0.0
        %v3380 = vmax.f32 %v3348, 0.0
        %v3381 = vmax.f32 %v3349, 0.0
        %v3382 = vmax.f32 %v3350, 0.0
        %v3383 = vmax.f32 %v3351, 0.0
        %v3384 = vmax.f32 %v3352, 0.0
        %v3385 = vmax.f32 %v3353, 1e-06
        %v3386 = vmax.f32 %v3354, 1e-06
        %v3387 = vmax.f32 %v3355, 1e-06
        %v3388 = vmax.f32 %v3356, 1e-06
        %v3389 = vmax.f32 %v3357, 1e-06
        %v3390 = vmax.f32 %v3358, 1e-06
        %v3391 = vmax.f32 %v3359, 1e-06
        %v3392 = vmax.f32 %v3360, 1e-06
        %v3393 = vmax.f32 %v3361, 1e-06
        %v3394 = vmax.f32 %v3362, 1e-06
        %v3395 = vmax.f32 %v3363, 1e-06
        %v3396 = vmax.f32 %v3364, 1e-06
        %v3397 = vmax.f32 %v3365, 1e-06
        %v3398 = vmax.f32 %v3366, 1e-06
        %v3399 = vmax.f32 %v3367, 1e-06
        %v3400 = vmax.f32 %v3368, 1e-06
        %v3401 = vmax.f32 %v3369, 1e-06
        %v3402 = vmax.f32 %v3370, 1e-06
        %v3403 = vmax.f32 %v3371, 1e-06
        %v3404 = vmax.f32 %v3372, 1e-06
        %v3405 = vmax.f32 %v3373, 1e-06
        %v3406 = vmax.f32 %v3374, 1e-06
        %v3407 = vmax.f32 %v3375, 1e-06
        %v3408 = vmax.f32 %v3376, 1e-06
        %v3409 = vmax.f32 %v3377, 1e-06
        %v3410 = vmax.f32 %v3378, 1e-06
        %v3411 = vmax.f32 %v3379, 1e-06
        %v3412 = vmax.f32 %v3380, 1e-06
        %v3413 = vmax.f32 %v3381, 1e-06
        %v3414 = vmax.f32 %v3382, 1e-06
        %v3415 = vmax.f32 %v3383, 1e-06
        %v3416 = vmax.f32 %v3384, 1e-06
        %v3417 = vmul.f32 %v3385, %v3385
        %v3418 = vmul.f32 %v3386, %v3386
        %v3419 = vmul.f32 %v3387, %v3387
        %v3420 = vmul.f32 %v3388, %v3388
        %v3421 = vmul.f32 %v3389, %v3389
        %v3422 = vmul.f32 %v3390, %v3390
        %v3423 = vmul.f32 %v3391, %v3391
        %v3424 = vmul.f32 %v3392, %v3392
        %v3425 = vmul.f32 %v3393, %v3393
        %v3426 = vmul.f32 %v3394, %v3394
        %v3427 = vmul.f32 %v3395, %v3395
        %v3428 = vmul.f32 %v3396, %v3396
        %v3429 = vmul.f32 %v3397, %v3397
        %v3430 = vmul.f32 %v3398, %v3398
        %v3431 = vmul.f32 %v3399, %v3399
        %v3432 = vmul.f32 %v3400, %v3400
        %v3433 = vmul.f32 %v3401, %v3401
        %v3434 = vmul.f32 %v3402, %v3402
        %v3435 = vmul.f32 %v3403, %v3403
        %v3436 = vmul.f32 %v3404, %v3404
        %v3437 = vmul.f32 %v3405, %v3405
        %v3438 = vmul.f32 %v3406, %v3406
        %v3439 = vmul.f32 %v3407, %v3407
        %v3440 = vmul.f32 %v3408, %v3408
        %v3441 = vmul.f32 %v3409, %v3409
        %v3442 = vmul.f32 %v3410, %v3410
        %v3443 = vmul.f32 %v3411, %v3411
        %v3444 = vmul.f32 %v3412, %v3412
        %v3445 = vmul.f32 %v3413, %v3413
        %v3446 = vmul.f32 %v3414, %v3414
        %v3447 = vmul.f32 %v3415, %v3415
        %v3448 = vmul.f32 %v3416, %v3416
        %v3449 = vmul.f32 %v3417, %v3385
        %v3450 = vmul.f32 %v3418, %v3386
        %v3451 = vmul.f32 %v3419, %v3387
        %v3452 = vmul.f32 %v3420, %v3388
        %v3453 = vmul.f32 %v3421, %v3389
        %v3454 = vmul.f32 %v3422, %v3390
        %v3455 = vmul.f32 %v3423, %v3391
        %v3456 = vmul.f32 %v3424, %v3392
        %v3457 = vmul.f32 %v3425, %v3393
        %v3458 = vmul.f32 %v3426, %v3394
        %v3459 = vmul.f32 %v3427, %v3395
        %v3460 = vmul.f32 %v3428, %v3396
        %v3461 = vmul.f32 %v3429, %v3397
        %v3462 = vmul.f32 %v3430, %v3398
        %v3463 = vmul.f32 %v3431, %v3399
        %v3464 = vmul.f32 %v3432, %v3400
        %v3465 = vmul.f32 %v3433, %v3401
        %v3466 = vmul.f32 %v3434, %v3402
        %v3467 = vmul.f32 %v3435, %v3403
        %v3468 = vmul.f32 %v3436, %v3404
        %v3469 = vmul.f32 %v3437, %v3405
        %v3470 = vmul.f32 %v3438, %v3406
        %v3471 = vmul.f32 %v3439, %v3407
        %v3472 = vmul.f32 %v3440, %v3408
        %v3473 = vmul.f32 %v3441, %v3409
        %v3474 = vmul.f32 %v3442, %v3410
        %v3475 = vmul.f32 %v3443, %v3411
        %v3476 = vmul.f32 %v3444, %v3412
        %v3477 = vmul.f32 %v3445, %v3413
        %v3478 = vmul.f32 %v3446, %v3414
        %v3479 = vmul.f32 %v3447, %v3415
        %v3480 = vmul.f32 %v3448, %v3416
        %v3481 = vadd.f32 %v3449, %v3450
        %v3482 = vadd.f32 %v3481, %v3451
        %v3483 = vadd.f32 %v3482, %v3452
        %v3484 = vadd.f32 %v3483, %v3453
        %v3485 = vadd.f32 %v3484, %v3454
        %v3486 = vadd.f32 %v3485, %v3455
        %v3487 = vadd.f32 %v3486, %v3456
        %v3488 = vadd.f32 %v3487, %v3457
        %v3489 = vadd.f32 %v3488, %v3458
        %v3490 = vadd.f32 %v3489, %v3459
        %v3491 = vadd.f32 %v3490, %v3460
        %v3492 = vadd.f32 %v3491, %v3461
        %v3493 = vadd.f32 %v3492, %v3462
        %v3494 = vadd.f32 %v3493, %v3463
        %v3495 = vadd.f32 %v3494, %v3464
        %v3496 = vadd.f32 %v3495, %v3465
        %v3497 = vadd.f32 %v3496, %v3466
        %v3498 = vadd.f32 %v3497, %v3467
        %v3499 = vadd.f32 %v3498, %v3468
        %v3500 = vadd.f32 %v3499, %v3469
        %v3501 = vadd.f32 %v3500, %v3470
        %v3502 = vadd.f32 %v3501, %v3471
        %v3503 = vadd.f32 %v3502, %v3472
        %v3504 = vadd.f32 %v3503, %v3473
        %v3505 = vadd.f32 %v3504, %v3474
        %v3506 = vadd.f32 %v3505, %v3475
        %v3507 = vadd.f32 %v3506, %v3476
        %v3508 = vadd.f32 %v3507, %v3477
        %v3509 = vadd.f32 %v3508, %v3478
        %v3510 = vadd.f32 %v3509, %v3479
        %v3511 = vadd.f32 %v3510, %v3480
        %v3512 = vrot.slane %v3511, 4
        %v3513 = vadd.f32 %v3511, %v3512
        %v3514 = vrot.slane %v3513, 2
        %v3515 = vadd.f32 %v3513, %v3514
        %v3516 = vrot.slane %v3515, 1
        %v3517 = vadd.f32 %v3515, %v3516
        %v3518 = vrcp.pop 256.0
        %v3519 = vmul.f32 %v3517, %v3518
        %v3520 = vpow.f32 %v3519, 0.33333334
        %3521 = vst [vmem:[%s162] sm:$0x1] %v3520
        %s3522 = sand.u32 %s93, 1
        %s3523 = scalar_lea.sflag [#allocation3], %s3522
        %s3524 = sand.u32 %s93, 1
        %s3525 = scalar_lea.vmem [#allocation2], %s3524
        // Predicated region
        $region33: #{tpu_custom_call.1} parent=31 // pred_check
          %p3526 = pneg %p103
        $region34: #{tpu_custom_call.1} parent=31 // pred_check_branch
          %3528 = sbr.rel (%p3526) target = $region36
        $region35: #{tpu_custom_call.1} parent=31 // pred_region
          %s3530 = ssub.s32 16, 16
          %3531 = vsyncadd %s3523, %s3530
          %s3532 = smul.addr %s17, 16
          %s3533 = scalar_lea.hbm %s3, %s3532
          %s3535 = sshll.u32 %s3525, 4
          %s3536 = int_to_ptr.vmem [resolvable:$true] %s3535
          %3538 = dma.vmem_to_hbm [thread:$0]  %s3536, 16, %s3533, %s3523
        $region36: #{tpu_custom_call.1} parent=31 // pred_fallthru
          _
      $region32: #{tpu_custom_call.1} parent=5 // pred_fallthru
        _
      %p3539 = scmp.le.s32.totalorder 2, %s12
      // Predicated region
      $region37: #{tpu_custom_call.1} parent=5 // pred_check
        %p3540 = pneg %p3539
      $region38: #{tpu_custom_call.1} parent=5 // pred_check_branch
        %3542 = sbr.rel (%p3540) target = $region40
      $region39: #{tpu_custom_call.1} parent=5 // pred_region
        %s3543 = ssub.s32 %s12, 2
        // Predicated region
        $region41: #{tpu_custom_call.1} parent=39 // pred_check
          %p3544 = pneg %p109
        $region42: #{tpu_custom_call.1} parent=39 // pred_check_branch
          %3546 = sbr.rel (%p3544) target = $region44
        $region43: #{tpu_custom_call.1} parent=39 // pred_region
          %s3547 = sand.u32 %s94, 1
          %s3548 = scalar_lea.sflag [#allocation3], %s3547
          %s3549 = sand.u32 %s94, 1
          %s3550 = scalar_lea.vmem [#allocation2], %s3549
          %3551 = dma.done %s3548, 16
        $region44: #{tpu_custom_call.1} parent=39 // pred_fallthru
          _
      $region40: #{tpu_custom_call.1} parent=5 // pred_fallthru
        _
    $region6: #{tpu_custom_call.1} parent=1 // loop_footer
      %s16 = sadd.s32 1, %s12
    $region7: #{tpu_custom_call.1} parent=1 // loop_footer_branch
      %11 = sbr.rel target = $region3
    $region8: #{tpu_custom_call.1} parent=1 // loop_exit
      _
    %3552 = vsyncpa [#allocation3], 1
    %s3553 = scalar_lea.sflag [#allocation3], 1
    %3554 = vsyncpa %s3553, 1

</llo_original>
